<compile_context>
chip_gen: v7x
topology: tpu7x:2x2x1
jax: 0.10.0
libtpu: 0.0.40
codegen_flags: <defaults>
</compile_context>

<pallas_src>
import functools

import jax
import jax.numpy as jnp
from jax import lax
from jax.experimental import pallas as pl
from jax.experimental.pallas import tpu as pltpu

# Small, TPU-tile-friendly shapes consistent with the module's forward
# (module: embed=768, block=128, head=256, num_heads=6, dropout=0.4).
EMBED = 128        # multiple of 128 -> lane-dense activations / output stores
SEQ = 64           # <= module block_size; keeps MXU rows reasonably filled
NUM_HEADS = 2
HEAD = 64          # num_heads * head = embed (to_stream maps nH*H -> embed, as in the module)
BATCH = 2
DROPOUT = 0.4
LN_EPS = 1e-5      # torch.nn.LayerNorm default
NEG_INF = -1e30    # finite mask value (avoids inf arithmetic inside exp)
LANE = 128


def _round_up(n, m):
    return (n + m - 1) // m * m


def block_kernel(x_ref, ln1g_ref, ln1b_ref, wqkv_ref, wo_ref, bo_ref,
                 ln2g_ref, ln2b_ref, w1_ref, b1_ref, w2_ref, b2_ref,
                 *rest, num_heads, head_pad, dropout_rate):
    if dropout_rate > 0.0:
        m_attn_ref, m_proj_ref, m_mlp_ref, o_ref, attn_sc = rest
    else:
        o_ref, attn_sc = rest

    x = x_ref[...]                                    # (Bb, T, E)
    Bb, T, E = x.shape
    M = Bb * T
    xf = x.reshape(M, E).astype(jnp.float32)          # fold batch into the sublane axis

    def layernorm(z, g, b):
        mu = jnp.mean(z, axis=-1, keepdims=True)
        zc = z - mu
        var = jnp.mean(zc * zc, axis=-1, keepdims=True)
        return zc * lax.rsqrt(var + LN_EPS) * g + b

    inv_keep = 1.0 / (1.0 - dropout_rate) if dropout_rate > 0.0 else 1.0

    # ---- LayerNorm1 + fused QKV projection: ONE wide bf16 MXU matmul for all heads ----
    # wqkv is laid out [Q_all | K_all | V_all] with each head's block padded to a
    # 128-lane boundary, so every slice below is lane-aligned (no masked/strided loads).
    x1 = layernorm(xf, ln1g_ref[...], ln1b_ref[...])
    qkv = jnp.dot(x1.astype(wqkv_ref.dtype), wqkv_ref[...],
                  preferred_element_type=jnp.float32)           # (M, 3*nH*Hp), f32 accum

    hp = head_pad
    nhp = num_heads * hp
    scale = float(E) ** (-0.5)   # module scales by embed**-0.5 (not head_size**-0.5)

    # Causal mask: computed once per kernel invocation, hoisted out of all loops.
    row = lax.broadcasted_iota(jnp.int32, (T, T), 0)
    col = lax.broadcasted_iota(jnp.int32, (T, T), 1)
    causal = col <= row

    # ---- multi-head causal self-attention with the output projection folded in ----
    # acc += (softmax(qk^T) @ v_h) @ Wo_h  -> no lane/sublane concatenates, bounded live ranges.
    for b in range(Bb):                                   # static unroll (Bb=1 per grid step by default)
        qkv_b = qkv[b * T:(b + 1) * T, :]                 # static sublane slice
        acc = jnp.zeros((T, E), jnp.float32)
        for h in range(num_heads):                        # TODO(synk): use fori_loop / batched dot at production nH=6
            q = qkv_b[:, h * hp:(h + 1) * hp]             # 128-lane-aligned slices
            k = qkv_b[:, nhp + h * hp: nhp + (h + 1) * hp]
            v = qkv_b[:, 2 * nhp + h * hp: 2 * nhp + (h + 1) * hp]
            # q @ k.T without materializing a transpose: contract the last dims (f32 for accuracy).
            s = lax.dot_general(q, k, (((1,), (1,)), ((), ())),
                                preferred_element_type=jnp.float32) * scale
            s = jnp.where(causal, s, NEG_INF)
            p = jnp.exp(s - jnp.max(s, axis=-1, keepdims=True))
            a = p * pl.reciprocal(jnp.sum(p, axis=-1, keepdims=True), approx=True)
            if dropout_rate > 0.0:
                a = a * (m_attn_ref[b, h].astype(jnp.float32) * inv_keep)
            head = jnp.dot(a, v, preferred_element_type=jnp.float32)      # (T, Hp)
            acc = acc + jnp.dot(head.astype(wo_ref.dtype),
                                wo_ref[h * hp:(h + 1) * hp, :],           # zero rows in padding
                                preferred_element_type=jnp.float32)
        attn_sc[b * T:(b + 1) * T, :] = acc               # store, not concat

    # ---- output bias + dropout + residual ----
    attn = attn_sc[...] + bo_ref[...]
    if dropout_rate > 0.0:
        attn = attn * (m_proj_ref[...].reshape(M, E).astype(jnp.float32) * inv_keep)
    y = attn + xf

    # ---- LayerNorm2 + MLP (Linear 4E -> ReLU -> Linear E -> dropout) + residual ----
    x2 = layernorm(y, ln2g_ref[...], ln2b_ref[...])
    h1 = jnp.dot(x2.astype(w1_ref.dtype), w1_ref[...],
                 preferred_element_type=jnp.float32) + b1_ref[...]
    h1 = jnp.maximum(h1, 0.0)
    mlp = jnp.dot(h1.astype(w2_ref.dtype), w2_ref[...],
                  preferred_element_type=jnp.float32) + b2_ref[...]
    if dropout_rate > 0.0:
        mlp = mlp * (m_mlp_ref[...].reshape(M, E).astype(jnp.float32) * inv_keep)

    out = mlp + y
    o_ref[...] = out.reshape(Bb, T, E).astype(o_ref.dtype)


def block_forward(x, params, *, num_heads, head_size,
                  dropout_rate=0.0, dropout_masks=None, batch_block=None):
    """x: (B, T, E). params hold 'natural' f32 weights:
       wq/wk/wv (nH, E, H), wo (nH*H, E), bo (E,), w1 (E, 4E), w2 (4E, E), biases, LN params.
       The wrapper lays weights out bf16 + head-padded for the kernel. Returns (B, T, E)."""
    B, T, E = x.shape
    if batch_block is None:
        # grid=(2,) by default so each v7x TensorCore gets half the batch; on v5e/v6e
        # (1 TC) the extra grid step only costs ~0.35us.
        batch_block = B // 2 if (B % 2 == 0 and B >= 2) else B
    Bb = batch_block
    assert B % Bb == 0

    hp = _round_up(head_size, LANE)          # pad each head block to a 128-lane boundary
    hidden = params["w1"].shape[1]
    cdt = jnp.bfloat16                       # matmul operand dtype (accumulation stays f32)

    # ---- weight layout prep (plain XLA ops, outside the kernel) ----
    def pad_heads(w):                        # (nH, E, H) -> (E, nH*Hp), zero pad columns
        wpad = jnp.pad(w, ((0, 0), (0, 0), (0, hp - head_size)))
        return jnp.transpose(wpad, (1, 0, 2)).reshape(E, num_heads * hp)

    wqkv_pad = jnp.concatenate(
        [pad_heads(params["wq"]), pad_heads(params["wk"]), pad_heads(params["wv"])],
        axis=-1).astype(cdt)                                           # (E, 3*nH*Hp)
    wo_pad = jnp.pad(params["wo"].reshape(num_heads, head_size, E),
                     ((0, 0), (0, hp - head_size), (0, 0))
                     ).reshape(num_heads * hp, E).astype(cdt)          # (nH*Hp, E), zero pad rows

    def as2d(v):
        return v.reshape(1, -1)

    inputs = [
        x,
        as2d(params["ln1_g"]), as2d(params["ln1_b"]),
        wqkv_pad, wo_pad, as2d(params["bo"]),
        as2d(params["ln2_g"]), as2d(params["ln2_b"]),
        params["w1"].astype(cdt), as2d(params["b1"]),
        params["w2"].astype(cdt), as2d(params["b2"]),
    ]

    def full2d(shape):
        return pl.BlockSpec(shape, lambda i: (0, 0))

    in_specs = [
        pl.BlockSpec((Bb, T, E), lambda i: (i, 0, 0)),
        full2d((1, E)), full2d((1, E)),
        full2d((E, 3 * num_heads * hp)), full2d((num_heads * hp, E)), full2d((1, E)),
        full2d((1, E)), full2d((1, E)),
        full2d((E, hidden)), full2d((1, hidden)),
        full2d((hidden, E)), full2d((1, E)),
    ]

    if dropout_rate > 0.0:
        assert dropout_masks is not None, "train-mode dropout needs precomputed keep-masks"
        inputs += [dropout_masks["attn"], dropout_masks["proj"], dropout_masks["mlp"]]
        in_specs += [
            pl.BlockSpec((Bb, num_heads, T, T), lambda i: (i, 0, 0, 0)),
            pl.BlockSpec((Bb, T, E), lambda i: (i, 0, 0)),
            pl.BlockSpec((Bb, T, E), lambda i: (i, 0, 0)),
        ]

    kernel = functools.partial(block_kernel, num_heads=num_heads,
                               head_pad=hp, dropout_rate=float(dropout_rate))

    # TODO(synk): at the module's real dims (E=768, hh=1536, hidden=3072) also set
    # vmem_limit_bytes and single-buffer the constant-index weight BlockSpecs.
    return pl.pallas_call(
        kernel,
        out_shape=jax.ShapeDtypeStruct((B, T, E), x.dtype),
        grid=(B // Bb,),
        in_specs=in_specs,
        out_specs=pl.BlockSpec((Bb, T, E), lambda i: (i, 0, 0)),
        scratch_shapes=[pltpu.VMEM((Bb * T, E), jnp.float32)],
        compiler_params=pltpu.CompilerParams(
            dimension_semantics=("parallel",)),   # batch axis shards across v7x's 2 TCs
    )(*inputs)


def block_ref(x, params, *, num_heads, head_size, dropout_rate=0.0, dropout_masks=None):
    """Pure-JAX f32 reference mirroring the PyTorch Block forward (uses the same keep-masks)."""
    B, T, E = x.shape
    inv_keep = 1.0 / (1.0 - dropout_rate) if dropout_rate > 0.0 else 1.0

    def ln(z, g, b):
        mu = z.mean(axis=-1, keepdims=True)
        var = ((z - mu) ** 2).mean(axis=-1, keepdims=True)
        return (z - mu) / jnp.sqrt(var + LN_EPS) * g + b

    def drop(z, m):
        if dropout_rate == 0.0:
            return z
        return z * (m.astype(jnp.float32) * inv_keep)

    x1 = ln(x, params["ln1_g"], params["ln1_b"])
    causal = jnp.tril(jnp.ones((T, T), dtype=bool))
    heads = []
    for h in range(num_heads):
        q = x1 @ params["wq"][h]
        k = x1 @ params["wk"][h]
        v = x1 @ params["wv"][h]
        s = jnp.einsum("btd,bsd->bts", q, k) * (float(E) ** -0.5)
        s = jnp.where(causal, s, -jnp.inf)
        a = jax.nn.softmax(s, axis=-1)
        if dropout_rate > 0.0:
            a = drop(a, dropout_masks["attn"][:, h])
        heads.append(jnp.einsum("bts,bsd->btd", a, v))
    multi = jnp.concatenate(heads, axis=-1)
    attn = multi @ params["wo"] + params["bo"]
    if dropout_rate > 0.0:
        attn = drop(attn, dropout_masks["proj"])
    y = attn + x
    x2 = ln(y, params["ln2_g"], params["ln2_b"])
    h1 = jax.nn.relu(x2 @ params["w1"] + params["b1"])
    mlp = h1 @ params["w2"] + params["b2"]
    if dropout_rate > 0.0:
        mlp = drop(mlp, dropout_masks["mlp"])
    return mlp + y


if __name__ == "__main__":
    B, T, E, NH, H = BATCH, SEQ, EMBED, NUM_HEADS, HEAD
    hh = NH * H
    hidden = 4 * E

    key = jax.random.PRNGKey(0)
    ks = jax.random.split(key, 15)
    x = jax.random.normal(ks[0], (B, T, E), dtype=jnp.float32)

    def linear_init(k, fan_in, shape):
        bound = 1.0 / (fan_in ** 0.5)
        return jax.random.uniform(k, shape, jnp.float32, -bound, bound)

    params = {
        "ln1_g": 1.0 + 0.1 * jax.random.normal(ks[1], (E,), jnp.float32),
        "ln1_b": 0.1 * jax.random.normal(ks[2], (E,), jnp.float32),
        "wq": linear_init(ks[3], E, (NH, E, H)),
        "wk": linear_init(ks[4], E, (NH, E, H)),
        "wv": linear_init(ks[5], E, (NH, E, H)),
        "wo": linear_init(ks[6], hh, (hh, E)),
        "bo": linear_init(ks[7], hh, (E,)),
        "ln2_g": 1.0 + 0.1 * jax.random.normal(ks[8], (E,), jnp.float32),
        "ln2_b": 0.1 * jax.random.normal(ks[9], (E,), jnp.float32),
        "w1": linear_init(ks[10], E, (E, hidden)),
        "b1": linear_init(ks[11], E, (hidden,)),
        "w2": linear_init(ks[12], hidden, (hidden, E)),
        "b2": linear_init(ks[13], hidden, (E,)),
    }

    # --- eval mode (dropout disabled) vs. pure-JAX f32 reference ---
    out_eval = jax.block_until_ready(
        block_forward(x, params, num_heads=NH, head_size=H, dropout_rate=0.0))
    ref_eval = jax.block_until_ready(
        block_ref(x, params, num_heads=NH, head_size=H, dropout_rate=0.0))
    assert out_eval.shape == (B, T, E)
    assert jnp.allclose(out_eval, ref_eval, atol=5e-2, rtol=5e-2), \
        float(jnp.max(jnp.abs(out_eval - ref_eval)))

    # --- train mode (dropout=0.4) with deterministic host-generated bf16 {0,1} keep-masks,
    #     compared against the reference using the SAME masks ---
    dk = jax.random.split(ks[14], 3)
    keep = 1.0 - DROPOUT
    masks = {
        "attn": (jax.random.uniform(dk[0], (B, NH, T, T)) < keep).astype(jnp.bfloat16),
        "proj": (jax.random.uniform(dk[1], (B, T, E)) < keep).astype(jnp.bfloat16),
        "mlp": (jax.random.uniform(dk[2], (B, T, E)) < keep).astype(jnp.bfloat16),
    }
    out_train = jax.block_until_ready(
        block_forward(x, params, num_heads=NH, head_size=H,
                      dropout_rate=DROPOUT, dropout_masks=masks))
    ref_train = jax.block_until_ready(
        block_ref(x, params, num_heads=NH, head_size=H,
                  dropout_rate=DROPOUT, dropout_masks=masks))
    assert out_train.shape == (B, T, E)
    assert jnp.allclose(out_train, ref_train, atol=5e-2, rtol=5e-2), \
        float(jnp.max(jnp.abs(out_train - ref_train)))
    assert bool(jnp.all(jnp.isfinite(out_train)))

    print("KERNEL_OK")
</pallas_src>

<mosaic_0001>
module attributes {stable_mosaic.version = 11 : i64} {
  func.func @block_kernel(%arg0: i32, %arg1: memref<1x64x128xf32, #tpu.memory_space<vmem>>, %arg2: memref<1x128xf32, #tpu.memory_space<vmem>>, %arg3: memref<1x128xf32, #tpu.memory_space<vmem>>, %arg4: memref<128x768xbf16, #tpu.memory_space<vmem>>, %arg5: memref<256x128xbf16, #tpu.memory_space<vmem>>, %arg6: memref<1x128xf32, #tpu.memory_space<vmem>>, %arg7: memref<1x128xf32, #tpu.memory_space<vmem>>, %arg8: memref<1x128xf32, #tpu.memory_space<vmem>>, %arg9: memref<128x512xbf16, #tpu.memory_space<vmem>>, %arg10: memref<1x512xf32, #tpu.memory_space<vmem>>, %arg11: memref<512x128xbf16, #tpu.memory_space<vmem>>, %arg12: memref<1x128xf32, #tpu.memory_space<vmem>>, %arg13: memref<1x64x128xf32, #tpu.memory_space<vmem>>, %arg14: memref<64x128xf32, #tpu.memory_space<vmem>>) attributes {dimension_semantics = [#tpu.dimension_semantics<parallel>], iteration_bounds = array<i64: 2>, scalar_prefetch = 0 : i64, scratch_operands = 1 : i64, tpu.core_type = #tpu.core_type<tc>, window_params = [{transform_indices = @transform_0, window_bounds = array<i64: 1, 64, 128>}, {pipeline_mode = #tpu.pipeline_mode<synchronous>, transform_indices = @transform_1, window_bounds = array<i64: 1, 128>}, {pipeline_mode = #tpu.pipeline_mode<synchronous>, transform_indices = @transform_2, window_bounds = array<i64: 1, 128>}, {pipeline_mode = #tpu.pipeline_mode<synchronous>, transform_indices = @transform_3, window_bounds = array<i64: 128, 768>}, {pipeline_mode = #tpu.pipeline_mode<synchronous>, transform_indices = @transform_4, window_bounds = array<i64: 256, 128>}, {pipeline_mode = #tpu.pipeline_mode<synchronous>, transform_indices = @transform_5, window_bounds = array<i64: 1, 128>}, {pipeline_mode = #tpu.pipeline_mode<synchronous>, transform_indices = @transform_6, window_bounds = array<i64: 1, 128>}, {pipeline_mode = #tpu.pipeline_mode<synchronous>, transform_indices = @transform_7, window_bounds = array<i64: 1, 128>}, {pipeline_mode = #tpu.pipeline_mode<synchronous>, transform_indices = @transform_8, window_bounds = array<i64: 128, 512>}, {pipeline_mode = #tpu.pipeline_mode<synchronous>, transform_indices = @transform_9, window_bounds = array<i64: 1, 512>}, {pipeline_mode = #tpu.pipeline_mode<synchronous>, transform_indices = @transform_10, window_bounds = array<i64: 512, 128>}, {pipeline_mode = #tpu.pipeline_mode<synchronous>, transform_indices = @transform_11, window_bounds = array<i64: 1, 128>}, {transform_indices = @transform_12, window_bounds = array<i64: 1, 64, 128>}]} {
    %c0 = arith.constant 0 : index
    %c0_0 = arith.constant 0 : index
    %c0_1 = arith.constant 0 : index
    %0 = vector.load %arg1[%c0, %c0_0, %c0_1] : memref<1x64x128xf32, #tpu.memory_space<vmem>>, vector<1x64x128xf32>
    %1 = vector.shape_cast %0 : vector<1x64x128xf32> to vector<64x128xf32>
    %c0_2 = arith.constant 0 : index
    %c0_3 = arith.constant 0 : index
    %2 = vector.load %arg2[%c0_2, %c0_3] : memref<1x128xf32, #tpu.memory_space<vmem>>, vector<1x128xf32>
    %c0_4 = arith.constant 0 : index
    %c0_5 = arith.constant 0 : index
    %3 = vector.load %arg3[%c0_4, %c0_5] : memref<1x128xf32, #tpu.memory_space<vmem>>, vector<1x128xf32>
    %cst = arith.constant dense<0.000000e+00> : vector<64xf32>
    %4 = vector.multi_reduction <add>, %1, %cst [1] : vector<64x128xf32> to vector<64xf32>
    %5 = vector.shape_cast %4 : vector<64xf32> to vector<64x1xf32>
    %cst_6 = arith.constant 1.280000e+02 : f32
    %6 = vector.broadcast %cst_6 : f32 to vector<64x1xf32>
    %7 = arith.divf %5, %6 : vector<64x1xf32>
    %8 = vector.broadcast %7 : vector<64x1xf32> to vector<64x128xf32>
    %9 = arith.subf %1, %8 : vector<64x128xf32>
    %10 = arith.mulf %9, %9 : vector<64x128xf32>
    %cst_7 = arith.constant dense<0.000000e+00> : vector<64xf32>
    %11 = vector.multi_reduction <add>, %10, %cst_7 [1] : vector<64x128xf32> to vector<64xf32>
    %12 = vector.shape_cast %11 : vector<64xf32> to vector<64x1xf32>
    %cst_8 = arith.constant 1.280000e+02 : f32
    %13 = vector.broadcast %cst_8 : f32 to vector<64x1xf32>
    %14 = arith.divf %12, %13 : vector<64x1xf32>
    %cst_9 = arith.constant 9.99999974E-6 : f32
    %15 = vector.broadcast %cst_9 : f32 to vector<64x1xf32>
    %16 = arith.addf %14, %15 : vector<64x1xf32>
    %17 = math.rsqrt %16 : vector<64x1xf32>
    %18 = vector.broadcast %17 : vector<64x1xf32> to vector<64x128xf32>
    %19 = arith.mulf %9, %18 : vector<64x128xf32>
    %20 = vector.broadcast %2 : vector<1x128xf32> to vector<64x128xf32>
    %21 = arith.mulf %19, %20 : vector<64x128xf32>
    %22 = vector.broadcast %3 : vector<1x128xf32> to vector<64x128xf32>
    %23 = arith.addf %21, %22 : vector<64x128xf32>
    %24 = arith.truncf %23 : vector<64x128xf32> to vector<64x128xbf16>
    %c0_10 = arith.constant 0 : index
    %c0_11 = arith.constant 0 : index
    %25 = vector.load %arg4[%c0_10, %c0_11] : memref<128x768xbf16, #tpu.memory_space<vmem>>, vector<128x768xbf16>
    %cst_12 = arith.constant dense<0.000000e+00> : vector<64x768xf32>
    %26 = tpu.matmul %24, %25, %cst_12 {dimension_numbers = #tpu.dot_dimension_numbers<[1], [0], [0], [1], [0, 0, 1, 1], [], []>} : vector<64x128xbf16>, vector<128x768xbf16>, vector<64x768xf32> -> vector<64x768xf32>
    %27 = tpu.iota {dimensions = array<i32: 0>} : vector<64x64xi32>
    %28 = tpu.iota {dimensions = array<i32: 1>} : vector<64x64xi32>
    %29 = arith.cmpi sle, %28, %27 : vector<64x64xi32>
    %cst_13 = arith.constant 0.000000e+00 : f32
    %30 = vector.broadcast %cst_13 : f32 to vector<64x128xf32>
    %31 = vector.extract_strided_slice %26 {offsets = [0, 0], sizes = [64, 128], strides = [1, 1]} : vector<64x768xf32> to vector<64x128xf32>
    %32 = vector.extract_strided_slice %26 {offsets = [0, 256], sizes = [64, 128], strides = [1, 1]} : vector<64x768xf32> to vector<64x128xf32>
    %33 = vector.extract_strided_slice %26 {offsets = [0, 512], sizes = [64, 128], strides = [1, 1]} : vector<64x768xf32> to vector<64x128xf32>
    %cst_14 = arith.constant dense<0.000000e+00> : vector<64x64xf32>
    %34 = tpu.matmul %31, %32, %cst_14 {dimension_numbers = #tpu.dot_dimension_numbers<[1], [1], [0], [0], [0, 0, 1, 0], [], []>} : vector<64x128xf32>, vector<64x128xf32>, vector<64x64xf32> -> vector<64x64xf32>
    %cst_15 = arith.constant 0.0883883461 : f32
    %35 = vector.broadcast %cst_15 : f32 to vector<64x64xf32>
    %36 = arith.mulf %34, %35 : vector<64x64xf32>
    %cst_16 = arith.constant -1.000000e+30 : f32
    %37 = vector.broadcast %cst_16 : f32 to vector<64x64xf32>
    %38 = arith.select %29, %36, %37 : vector<64x64xi1>, vector<64x64xf32>
    %cst_17 = arith.constant dense<0xFF800000> : vector<64xf32>
    %39 = vector.multi_reduction <maximumf>, %38, %cst_17 [1] : vector<64x64xf32> to vector<64xf32>
    %40 = vector.shape_cast %39 : vector<64xf32> to vector<64x1xf32>
    %41 = vector.broadcast %40 : vector<64x1xf32> to vector<64x64xf32>
    %42 = arith.subf %38, %41 : vector<64x64xf32>
    %43 = math.exp %42 : vector<64x64xf32>
    %cst_18 = arith.constant dense<0.000000e+00> : vector<64xf32>
    %44 = vector.multi_reduction <add>, %43, %cst_18 [1] : vector<64x64xf32> to vector<64xf32>
    %45 = vector.shape_cast %44 : vector<64xf32> to vector<64x1xf32>
    %46 = tpu.reciprocal %45 {approx = true} : vector<64x1xf32> -> vector<64x1xf32>
    %47 = vector.broadcast %46 : vector<64x1xf32> to vector<64x64xf32>
    %48 = arith.mulf %43, %47 : vector<64x64xf32>
    %cst_19 = arith.constant dense<0.000000e+00> : vector<64x128xf32>
    %49 = tpu.matmul %48, %33, %cst_19 {dimension_numbers = #tpu.dot_dimension_numbers<[1], [0], [0], [1], [0, 0, 1, 1], [], []>} : vector<64x64xf32>, vector<64x128xf32>, vector<64x128xf32> -> vector<64x128xf32>
    %50 = arith.truncf %49 : vector<64x128xf32> to vector<64x128xbf16>
    %c0_20 = arith.constant 0 : index
    %c0_21 = arith.constant 0 : index
    %51 = vector.load %arg5[%c0_20, %c0_21] : memref<256x128xbf16, #tpu.memory_space<vmem>>, vector<128x128xbf16>
    %cst_22 = arith.constant dense<0.000000e+00> : vector<64x128xf32>
    %52 = tpu.matmul %50, %51, %cst_22 {dimension_numbers = #tpu.dot_dimension_numbers<[1], [0], [0], [1], [0, 0, 1, 1], [], []>} : vector<64x128xbf16>, vector<128x128xbf16>, vector<64x128xf32> -> vector<64x128xf32>
    %53 = arith.addf %30, %52 : vector<64x128xf32>
    %54 = vector.extract_strided_slice %26 {offsets = [0, 128], sizes = [64, 128], strides = [1, 1]} : vector<64x768xf32> to vector<64x128xf32>
    %55 = vector.extract_strided_slice %26 {offsets = [0, 384], sizes = [64, 128], strides = [1, 1]} : vector<64x768xf32> to vector<64x128xf32>
    %56 = vector.extract_strided_slice %26 {offsets = [0, 640], sizes = [64, 128], strides = [1, 1]} : vector<64x768xf32> to vector<64x128xf32>
    %cst_23 = arith.constant dense<0.000000e+00> : vector<64x64xf32>
    %57 = tpu.matmul %54, %55, %cst_23 {dimension_numbers = #tpu.dot_dimension_numbers<[1], [1], [0], [0], [0, 0, 1, 0], [], []>} : vector<64x128xf32>, vector<64x128xf32>, vector<64x64xf32> -> vector<64x64xf32>
    %cst_24 = arith.constant 0.0883883461 : f32
    %58 = vector.broadcast %cst_24 : f32 to vector<64x64xf32>
    %59 = arith.mulf %57, %58 : vector<64x64xf32>
    %cst_25 = arith.constant -1.000000e+30 : f32
    %60 = vector.broadcast %cst_25 : f32 to vector<64x64xf32>
    %61 = arith.select %29, %59, %60 : vector<64x64xi1>, vector<64x64xf32>
    %cst_26 = arith.constant dense<0xFF800000> : vector<64xf32>
    %62 = vector.multi_reduction <maximumf>, %61, %cst_26 [1] : vector<64x64xf32> to vector<64xf32>
    %63 = vector.shape_cast %62 : vector<64xf32> to vector<64x1xf32>
    %64 = vector.broadcast %63 : vector<64x1xf32> to vector<64x64xf32>
    %65 = arith.subf %61, %64 : vector<64x64xf32>
    %66 = math.exp %65 : vector<64x64xf32>
    %cst_27 = arith.constant dense<0.000000e+00> : vector<64xf32>
    %67 = vector.multi_reduction <add>, %66, %cst_27 [1] : vector<64x64xf32> to vector<64xf32>
    %68 = vector.shape_cast %67 : vector<64xf32> to vector<64x1xf32>
    %69 = tpu.reciprocal %68 {approx = true} : vector<64x1xf32> -> vector<64x1xf32>
    %70 = vector.broadcast %69 : vector<64x1xf32> to vector<64x64xf32>
    %71 = arith.mulf %66, %70 : vector<64x64xf32>
    %cst_28 = arith.constant dense<0.000000e+00> : vector<64x128xf32>
    %72 = tpu.matmul %71, %56, %cst_28 {dimension_numbers = #tpu.dot_dimension_numbers<[1], [0], [0], [1], [0, 0, 1, 1], [], []>} : vector<64x64xf32>, vector<64x128xf32>, vector<64x128xf32> -> vector<64x128xf32>
    %73 = arith.truncf %72 : vector<64x128xf32> to vector<64x128xbf16>
    %c128 = arith.constant 128 : index
    %c0_29 = arith.constant 0 : index
    %74 = vector.load %arg5[%c128, %c0_29] : memref<256x128xbf16, #tpu.memory_space<vmem>>, vector<128x128xbf16>
    %cst_30 = arith.constant dense<0.000000e+00> : vector<64x128xf32>
    %75 = tpu.matmul %73, %74, %cst_30 {dimension_numbers = #tpu.dot_dimension_numbers<[1], [0], [0], [1], [0, 0, 1, 1], [], []>} : vector<64x128xbf16>, vector<128x128xbf16>, vector<64x128xf32> -> vector<64x128xf32>
    %76 = arith.addf %53, %75 : vector<64x128xf32>
    %c0_31 = arith.constant 0 : index
    %c0_32 = arith.constant 0 : index
    %77 = vector.load %arg14[%c0_31, %c0_32] : memref<64x128xf32, #tpu.memory_space<vmem>>, vector<64x128xf32>
    tpu.vector_store %arg14[%c0_31, %c0_32], %76 {strides = array<i32>} : memref<64x128xf32, #tpu.memory_space<vmem>>, vector<64x128xf32>,
    %c0_33 = arith.constant 0 : index
    %c0_34 = arith.constant 0 : index
    %78 = vector.load %arg14[%c0_33, %c0_34] : memref<64x128xf32, #tpu.memory_space<vmem>>, vector<64x128xf32>
    %c0_35 = arith.constant 0 : index
    %c0_36 = arith.constant 0 : index
    %79 = vector.load %arg6[%c0_35, %c0_36] : memref<1x128xf32, #tpu.memory_space<vmem>>, vector<1x128xf32>
    %80 = vector.broadcast %79 : vector<1x128xf32> to vector<64x128xf32>
    %81 = arith.addf %78, %80 : vector<64x128xf32>
    %82 = arith.addf %81, %1 : vector<64x128xf32>
    %c0_37 = arith.constant 0 : index
    %c0_38 = arith.constant 0 : index
    %83 = vector.load %arg7[%c0_37, %c0_38] : memref<1x128xf32, #tpu.memory_space<vmem>>, vector<1x128xf32>
    %c0_39 = arith.constant 0 : index
    %c0_40 = arith.constant 0 : index
    %84 = vector.load %arg8[%c0_39, %c0_40] : memref<1x128xf32, #tpu.memory_space<vmem>>, vector<1x128xf32>
    %cst_41 = arith.constant dense<0.000000e+00> : vector<64xf32>
    %85 = vector.multi_reduction <add>, %82, %cst_41 [1] : vector<64x128xf32> to vector<64xf32>
    %86 = vector.shape_cast %85 : vector<64xf32> to vector<64x1xf32>
    %cst_42 = arith.constant 1.280000e+02 : f32
    %87 = vector.broadcast %cst_42 : f32 to vector<64x1xf32>
    %88 = arith.divf %86, %87 : vector<64x1xf32>
    %89 = vector.broadcast %88 : vector<64x1xf32> to vector<64x128xf32>
    %90 = arith.subf %82, %89 : vector<64x128xf32>
    %91 = arith.mulf %90, %90 : vector<64x128xf32>
    %cst_43 = arith.constant dense<0.000000e+00> : vector<64xf32>
    %92 = vector.multi_reduction <add>, %91, %cst_43 [1] : vector<64x128xf32> to vector<64xf32>
    %93 = vector.shape_cast %92 : vector<64xf32> to vector<64x1xf32>
    %cst_44 = arith.constant 1.280000e+02 : f32
    %94 = vector.broadcast %cst_44 : f32 to vector<64x1xf32>
    %95 = arith.divf %93, %94 : vector<64x1xf32>
    %cst_45 = arith.constant 9.99999974E-6 : f32
    %96 = vector.broadcast %cst_45 : f32 to vector<64x1xf32>
    %97 = arith.addf %95, %96 : vector<64x1xf32>
    %98 = math.rsqrt %97 : vector<64x1xf32>
    %99 = vector.broadcast %98 : vector<64x1xf32> to vector<64x128xf32>
    %100 = arith.mulf %90, %99 : vector<64x128xf32>
    %101 = vector.broadcast %83 : vector<1x128xf32> to vector<64x128xf32>
    %102 = arith.mulf %100, %101 : vector<64x128xf32>
    %103 = vector.broadcast %84 : vector<1x128xf32> to vector<64x128xf32>
    %104 = arith.addf %102, %103 : vector<64x128xf32>
    %105 = arith.truncf %104 : vector<64x128xf32> to vector<64x128xbf16>
    %c0_46 = arith.constant 0 : index
    %c0_47 = arith.constant 0 : index
    %106 = vector.load %arg9[%c0_46, %c0_47] : memref<128x512xbf16, #tpu.memory_space<vmem>>, vector<128x512xbf16>
    %cst_48 = arith.constant dense<0.000000e+00> : vector<64x512xf32>
    %107 = tpu.matmul %105, %106, %cst_48 {dimension_numbers = #tpu.dot_dimension_numbers<[1], [0], [0], [1], [0, 0, 1, 1], [], []>} : vector<64x128xbf16>, vector<128x512xbf16>, vector<64x512xf32> -> vector<64x512xf32>
    %c0_49 = arith.constant 0 : index
    %c0_50 = arith.constant 0 : index
    %108 = vector.load %arg10[%c0_49, %c0_50] : memref<1x512xf32, #tpu.memory_space<vmem>>, vector<1x512xf32>
    %109 = vector.broadcast %108 : vector<1x512xf32> to vector<64x512xf32>
    %110 = arith.addf %107, %109 : vector<64x512xf32>
    %cst_51 = arith.constant 0.000000e+00 : f32
    %111 = vector.broadcast %cst_51 : f32 to vector<64x512xf32>
    %112 = arith.maximumf %110, %111 : vector<64x512xf32>
    %113 = arith.truncf %112 : vector<64x512xf32> to vector<64x512xbf16>
    %c0_52 = arith.constant 0 : index
    %c0_53 = arith.constant 0 : index
    %114 = vector.load %arg11[%c0_52, %c0_53] : memref<512x128xbf16, #tpu.memory_space<vmem>>, vector<512x128xbf16>
    %cst_54 = arith.constant dense<0.000000e+00> : vector<64x128xf32>
    %115 = tpu.matmul %113, %114, %cst_54 {dimension_numbers = #tpu.dot_dimension_numbers<[1], [0], [0], [1], [0, 0, 1, 1], [], []>} : vector<64x512xbf16>, vector<512x128xbf16>, vector<64x128xf32> -> vector<64x128xf32>
    %c0_55 = arith.constant 0 : index
    %c0_56 = arith.constant 0 : index
    %116 = vector.load %arg12[%c0_55, %c0_56] : memref<1x128xf32, #tpu.memory_space<vmem>>, vector<1x128xf32>
    %117 = vector.broadcast %116 : vector<1x128xf32> to vector<64x128xf32>
    %118 = arith.addf %115, %117 : vector<64x128xf32>
    %119 = arith.addf %118, %82 : vector<64x128xf32>
    %120 = vector.shape_cast %119 : vector<64x128xf32> to vector<1x64x128xf32>
    %c0_57 = arith.constant 0 : index
    %c0_58 = arith.constant 0 : index
    %c0_59 = arith.constant 0 : index
    %121 = vector.load %arg13[%c0_57, %c0_58, %c0_59] : memref<1x64x128xf32, #tpu.memory_space<vmem>>, vector<1x64x128xf32>
    tpu.vector_store %arg13[%c0_57, %c0_58, %c0_59], %120 {strides = array<i32>} : memref<1x64x128xf32, #tpu.memory_space<vmem>>, vector<1x64x128xf32>,
    return
  }
  func.func @transform_0(%arg0: i32) -> (i32, i32, i32) {
    %c0_i32 = arith.constant 0 : i32
    %c0_i32_0 = arith.constant 0 : i32
    %c0_i32_1 = arith.constant 0 : i32
    return %arg0, %c0_i32, %c0_i32_0 : i32, i32, i32
  }
  func.func @transform_1(%arg0: i32) -> (i32, i32) {
    %c0_i32 = arith.constant 0 : i32
    %c0_i32_0 = arith.constant 0 : i32
    %c0_i32_1 = arith.constant 0 : i32
    return %c0_i32, %c0_i32_0 : i32, i32
  }
  func.func @transform_2(%arg0: i32) -> (i32, i32) {
    %c0_i32 = arith.constant 0 : i32
    %c0_i32_0 = arith.constant 0 : i32
    %c0_i32_1 = arith.constant 0 : i32
    return %c0_i32, %c0_i32_0 : i32, i32
  }
  func.func @transform_3(%arg0: i32) -> (i32, i32) {
    %c0_i32 = arith.constant 0 : i32
    %c0_i32_0 = arith.constant 0 : i32
    %c0_i32_1 = arith.constant 0 : i32
    return %c0_i32, %c0_i32_0 : i32, i32
  }
  func.func @transform_4(%arg0: i32) -> (i32, i32) {
    %c0_i32 = arith.constant 0 : i32
    %c0_i32_0 = arith.constant 0 : i32
    %c0_i32_1 = arith.constant 0 : i32
    return %c0_i32, %c0_i32_0 : i32, i32
  }
  func.func @transform_5(%arg0: i32) -> (i32, i32) {
    %c0_i32 = arith.constant 0 : i32
    %c0_i32_0 = arith.constant 0 : i32
    %c0_i32_1 = arith.constant 0 : i32
    return %c0_i32, %c0_i32_0 : i32, i32
  }
  func.func @transform_6(%arg0: i32) -> (i32, i32) {
    %c0_i32 = arith.constant 0 : i32
    %c0_i32_0 = arith.constant 0 : i32
    %c0_i32_1 = arith.constant 0 : i32
    return %c0_i32, %c0_i32_0 : i32, i32
  }
  func.func @transform_7(%arg0: i32) -> (i32, i32) {
    %c0_i32 = arith.constant 0 : i32
    %c0_i32_0 = arith.constant 0 : i32
    %c0_i32_1 = arith.constant 0 : i32
    return %c0_i32, %c0_i32_0 : i32, i32
  }
  func.func @transform_8(%arg0: i32) -> (i32, i32) {
    %c0_i32 = arith.constant 0 : i32
    %c0_i32_0 = arith.constant 0 : i32
    %c0_i32_1 = arith.constant 0 : i32
    return %c0_i32, %c0_i32_0 : i32, i32
  }
  func.func @transform_9(%arg0: i32) -> (i32, i32) {
    %c0_i32 = arith.constant 0 : i32
    %c0_i32_0 = arith.constant 0 : i32
    %c0_i32_1 = arith.constant 0 : i32
    return %c0_i32, %c0_i32_0 : i32, i32
  }
  func.func @transform_10(%arg0: i32) -> (i32, i32) {
    %c0_i32 = arith.constant 0 : i32
    %c0_i32_0 = arith.constant 0 : i32
    %c0_i32_1 = arith.constant 0 : i32
    return %c0_i32, %c0_i32_0 : i32, i32
  }
  func.func @transform_11(%arg0: i32) -> (i32, i32) {
    %c0_i32 = arith.constant 0 : i32
    %c0_i32_0 = arith.constant 0 : i32
    %c0_i32_1 = arith.constant 0 : i32
    return %c0_i32, %c0_i32_0 : i32, i32
  }
  func.func @transform_12(%arg0: i32) -> (i32, i32, i32) {
    %c0_i32 = arith.constant 0 : i32
    %c0_i32_0 = arith.constant 0 : i32
    %c0_i32_1 = arith.constant 0 : i32
    return %arg0, %c0_i32, %c0_i32_0 : i32, i32, i32
  }
}

</mosaic_0001>

<llo_original>
// kernel: tpu_custom_call.1
$region0: #{tpu_custom_call.1}
  #allocation0 [shape = 'u32[]', space=smem, size = 0x4, offset = 0x4, fixed_abs, tag = 'smem constant byte address 0x4 - core index']
  #allocation1 [shape = 'u32[144,128]{1,0:T(1,128)}', space=vmem, size = 0x12000, scoped, tag = 'internal scratch']
  #allocation2 [shape = 'f32[64,128]{1,0:T(8,128)}', space=vmem, size = 0x8000, scoped, tag = 'scratch operand']
  %s0 = inlined_call_operand.hbm [shape: f32[2,64,128], index: 0, kind: input, shape index: {}]
  %s1 = inlined_call_operand.vmem [shape: f32[1,128], index: 1, kind: input, shape index: {}]
  %s2 = inlined_call_operand.vmem [shape: f32[1,128], index: 2, kind: input, shape index: {}]
  %s3 = inlined_call_operand.hbm [shape: bf16[128,768], index: 3, kind: input, shape index: {}]
  %s4 = inlined_call_operand.hbm [shape: bf16[256,128], index: 4, kind: input, shape index: {}]
  %s5 = inlined_call_operand.vmem [shape: f32[1,128], index: 5, kind: input, shape index: {}]
  %s6 = inlined_call_operand.vmem [shape: f32[1,128], index: 6, kind: input, shape index: {}]
  %s7 = inlined_call_operand.vmem [shape: f32[1,128], index: 7, kind: input, shape index: {}]
  %s8 = inlined_call_operand.hbm [shape: bf16[128,512], index: 8, kind: input, shape index: {}]
  %s9 = inlined_call_operand.vmem [shape: f32[1,512], index: 9, kind: input, shape index: {}]
  %s10 = inlined_call_operand.hbm [shape: bf16[512,128], index: 10, kind: input, shape index: {}]
  %s11 = inlined_call_operand.vmem [shape: f32[1,128], index: 11, kind: input, shape index: {}]
  %s12 = inlined_call_operand.hbm [shape: f32[2,64,128], index: 12, kind: output, shape index: {}]
  %s13 = sld [smem:[#allocation0]]
  $region101: #{tpu_custom_call.1} parent=0
    _
  %s15 = ssub.s32 1, %s13
  %s16 = scalar_select 0, %s15, %s13
  $region1: #{tpu_custom_call.1} parent=0
    #allocation3 [shape = 'u8[65536]{0}', space=vmem, size = 0x10000, scoped, tag = 'input window, operand 0']
    #allocation4 [shape = 's32[2]{0}', space=sflag, size = 0x8, scoped, tag = 'scoped memory for tpu_custom_call.1']
    #allocation5 [shape = 's32[2]{0}', space=sflag, size = 0x8, scoped, tag = 'scoped memory for tpu_custom_call.1']
    #allocation6 [shape = 'u8[196608]{0}', space=vmem, size = 0x30000, scoped, tag = 'input window, operand 3, single buffered']
    #allocation7 [shape = 's32[1]{0}', space=sflag, size = 0x4, scoped, tag = 'scoped memory for tpu_custom_call.1']
    #allocation8 [shape = 'u8[65536]{0}', space=vmem, size = 0x10000, scoped, tag = 'input window, operand 4, single buffered']
    #allocation9 [shape = 'u8[131072]{0}', space=vmem, size = 0x20000, scoped, tag = 'input window, operand 8, single buffered']
    #allocation10 [shape = 's32[1]{0}', space=sflag, size = 0x4, scoped, tag = 'scoped memory for tpu_custom_call.1']
    #allocation11 [shape = 'u8[131072]{0}', space=vmem, size = 0x20000, scoped, tag = 'input window, operand 10, single buffered']
    #allocation12 [shape = 'u8[65536]{0}', space=vmem, size = 0x10000, scoped, tag = 'output window, operand 0']
    %17 = vsyncpa [#allocation4], 0
    %s18 = scalar_lea.sflag [#allocation4], 1
    %19 = vsyncpa %s18, 0
    %20 = vsyncpa [#allocation7], 0
    %21 = vsyncpa [#allocation10], 0
    %22 = vsyncpa [#allocation5], 0
    %s23 = scalar_lea.sflag [#allocation5], 1
    %24 = vsyncpa %s23, 0
    loop: start=0, step=1, limit=4
    $region2: #{tpu_custom_call.1} parent=1 // loop_pre_header
      _
    $region3: #{tpu_custom_call.1} parent=1 // loop_header
      %s26 = sphi 0, %s30
      %p27 = scmp.ge.s32.totalorder %s26, 4
      %s36 = sphi 0, %s38
      %s39 = sphi 0, %s36
      %s40 = sphi 0, %s39
      %s56 = sphi 0, %s40
      %s60 = sphi 0, %s60
      %s62 = sphi 0, %s60
      %s63 = sphi 0, %s62
      %s77 = sphi 0, %s63
      %s81 = sphi 0, %s81
      %s83 = sphi 0, %s81
      %s84 = sphi 0, %s83
      %s98 = sphi 0, %s84
      %s102 = sphi 0, %s102
      %s104 = sphi 0, %s102
      %s105 = sphi 0, %s104
      %s119 = sphi 0, %s105
      %s123 = sphi 0, %s123
      %s125 = sphi 0, %s123
      %s126 = sphi 0, %s125
      %s140 = sphi 0, %s126
      %s144 = sphi 0, %s144
      %s146 = sphi 0, %s144
      %s147 = sphi 0, %s146
      %s161 = sphi 0, %s147
      %s165 = sphi 0, %s165
      %s167 = sphi 0, %s165
      %s168 = sphi 0, %s167
      %s182 = sphi 0, %s168
      %s186 = sphi 0, %s186
      %s188 = sphi 0, %s186
      %s189 = sphi 0, %s188
      %s203 = sphi 0, %s189
      %s207 = sphi 0, %s207
      %s209 = sphi 0, %s207
      %s210 = sphi 0, %s209
      %s224 = sphi 0, %s210
      %s228 = sphi 0, %s228
      %s230 = sphi 0, %s228
      %s231 = sphi 0, %s230
      %s245 = sphi 0, %s231
      %s249 = sphi 0, %s249
      %s251 = sphi 0, %s249
      %s252 = sphi 0, %s251
      %s266 = sphi 0, %s252
      %s270 = sphi 0, %s270
      %s272 = sphi 0, %s270
      %s273 = sphi 0, %s272
      %s287 = sphi 0, %s273
      %s293 = sphi 0, %s295
      %s296 = sphi 0, %s293
      %s297 = sphi 0, %s296
      %s313 = sphi 0, %s297
    $region4: #{tpu_custom_call.1} parent=1 // loop_header_branch
      %29 = sbr.rel (%p27) target = $region8
    $region5: #{tpu_custom_call.1} parent=1 // loop_body
      %s31 = ssub.s32 %s26, 1
      %s32 = ssub.s32 %s26, 2
      %s33 = sadd.s32 %s26, 1
      %s34 = ssub.s32 %s26, %s33
      %p35 = scmp.eq.s32.totalorder %s34, 0
      %s37 = sadd.s32 %s36, 1
      %s38 = scalar_select %p35, %s36, %s37
      %p41 = pneg %p35
      %p42 = scmp.eq.s32.totalorder %s26, 1
      %p43 = por %p41, %p42
      %p44 = scmp.ne.s32.totalorder %s36, %s39
      %p45 = scmp.eq.s32.totalorder %s26, 0
      %p46 = por %p44, %p45
      %p47 = scmp.ne.s32.totalorder %s36, %s39
      %p48 = scmp.eq.s32.totalorder %s31, 1
      %p49 = por %p47, %p48
      %p50 = scmp.ne.s32.totalorder %s39, %s40
      %p51 = scmp.eq.s32.totalorder %s31, 0
      %p52 = por %p50, %p51
      %p53 = scmp.ne.s32.totalorder %s39, %s40
      %p54 = scmp.eq.s32.totalorder %s32, 1
      %p55 = por %p53, %p54
      %p57 = scmp.ne.s32.totalorder %s40, %s56
      %p58 = scmp.eq.s32.totalorder %s32, 0
      %p59 = por %p57, %p58
      %s61 = sadd.s32 %s60, 1
      %p64 = scmp.eq.s32.totalorder %s26, 1
      %p65 = scmp.ne.s32.totalorder %s60, %s62
      %p66 = scmp.eq.s32.totalorder %s26, 0
      %p67 = por %p65, %p66
      %p68 = scmp.ne.s32.totalorder %s60, %s62
      %p69 = scmp.eq.s32.totalorder %s31, 1
      %p70 = por %p68, %p69
      %p71 = scmp.ne.s32.totalorder %s62, %s63
      %p72 = scmp.eq.s32.totalorder %s31, 0
      %p73 = por %p71, %p72
      %p74 = scmp.ne.s32.totalorder %s62, %s63
      %p75 = scmp.eq.s32.totalorder %s32, 1
      %p76 = por %p74, %p75
      %p78 = scmp.ne.s32.totalorder %s63, %s77
      %p79 = scmp.eq.s32.totalorder %s32, 0
      %p80 = por %p78, %p79
      %s82 = sadd.s32 %s81, 1
      %p85 = scmp.eq.s32.totalorder %s26, 1
      %p86 = scmp.ne.s32.totalorder %s81, %s83
      %p87 = scmp.eq.s32.totalorder %s26, 0
      %p88 = por %p86, %p87
      %p89 = scmp.ne.s32.totalorder %s81, %s83
      %p90 = scmp.eq.s32.totalorder %s31, 1
      %p91 = por %p89, %p90
      %p92 = scmp.ne.s32.totalorder %s83, %s84
      %p93 = scmp.eq.s32.totalorder %s31, 0
      %p94 = por %p92, %p93
      %p95 = scmp.ne.s32.totalorder %s83, %s84
      %p96 = scmp.eq.s32.totalorder %s32, 1
      %p97 = por %p95, %p96
      %p99 = scmp.ne.s32.totalorder %s84, %s98
      %p100 = scmp.eq.s32.totalorder %s32, 0
      %p101 = por %p99, %p100
      %s103 = sadd.s32 %s102, 1
      %p106 = scmp.eq.s32.totalorder %s26, 1
      %p107 = scmp.ne.s32.totalorder %s102, %s104
      %p108 = scmp.eq.s32.totalorder %s26, 0
      %p109 = por %p107, %p108
      %p110 = scmp.ne.s32.totalorder %s102, %s104
      %p111 = scmp.eq.s32.totalorder %s31, 1
      %p112 = por %p110, %p111
      %p113 = scmp.ne.s32.totalorder %s104, %s105
      %p114 = scmp.eq.s32.totalorder %s31, 0
      %p115 = por %p113, %p114
      %p116 = scmp.ne.s32.totalorder %s104, %s105
      %p117 = scmp.eq.s32.totalorder %s32, 1
      %p118 = por %p116, %p117
      %p120 = scmp.ne.s32.totalorder %s105, %s119
      %p121 = scmp.eq.s32.totalorder %s32, 0
      %p122 = por %p120, %p121
      %s124 = sadd.s32 %s123, 1
      %p127 = scmp.eq.s32.totalorder %s26, 1
      %p128 = scmp.ne.s32.totalorder %s123, %s125
      %p129 = scmp.eq.s32.totalorder %s26, 0
      %p130 = por %p128, %p129
      %p131 = scmp.ne.s32.totalorder %s123, %s125
      %p132 = scmp.eq.s32.totalorder %s31, 1
      %p133 = por %p131, %p132
      %p134 = scmp.ne.s32.totalorder %s125, %s126
      %p135 = scmp.eq.s32.totalorder %s31, 0
      %p136 = por %p134, %p135
      %p137 = scmp.ne.s32.totalorder %s125, %s126
      %p138 = scmp.eq.s32.totalorder %s32, 1
      %p139 = por %p137, %p138
      %p141 = scmp.ne.s32.totalorder %s126, %s140
      %p142 = scmp.eq.s32.totalorder %s32, 0
      %p143 = por %p141, %p142
      %s145 = sadd.s32 %s144, 1
      %p148 = scmp.eq.s32.totalorder %s26, 1
      %p149 = scmp.ne.s32.totalorder %s144, %s146
      %p150 = scmp.eq.s32.totalorder %s26, 0
      %p151 = por %p149, %p150
      %p152 = scmp.ne.s32.totalorder %s144, %s146
      %p153 = scmp.eq.s32.totalorder %s31, 1
      %p154 = por %p152, %p153
      %p155 = scmp.ne.s32.totalorder %s146, %s147
      %p156 = scmp.eq.s32.totalorder %s31, 0
      %p157 = por %p155, %p156
      %p158 = scmp.ne.s32.totalorder %s146, %s147
      %p159 = scmp.eq.s32.totalorder %s32, 1
      %p160 = por %p158, %p159
      %p162 = scmp.ne.s32.totalorder %s147, %s161
      %p163 = scmp.eq.s32.totalorder %s32, 0
      %p164 = por %p162, %p163
      %s166 = sadd.s32 %s165, 1
      %p169 = scmp.eq.s32.totalorder %s26, 1
      %p170 = scmp.ne.s32.totalorder %s165, %s167
      %p171 = scmp.eq.s32.totalorder %s26, 0
      %p172 = por %p170, %p171
      %p173 = scmp.ne.s32.totalorder %s165, %s167
      %p174 = scmp.eq.s32.totalorder %s31, 1
      %p175 = por %p173, %p174
      %p176 = scmp.ne.s32.totalorder %s167, %s168
      %p177 = scmp.eq.s32.totalorder %s31, 0
      %p178 = por %p176, %p177
      %p179 = scmp.ne.s32.totalorder %s167, %s168
      %p180 = scmp.eq.s32.totalorder %s32, 1
      %p181 = por %p179, %p180
      %p183 = scmp.ne.s32.totalorder %s168, %s182
      %p184 = scmp.eq.s32.totalorder %s32, 0
      %p185 = por %p183, %p184
      %s187 = sadd.s32 %s186, 1
      %p190 = scmp.eq.s32.totalorder %s26, 1
      %p191 = scmp.ne.s32.totalorder %s186, %s188
      %p192 = scmp.eq.s32.totalorder %s26, 0
      %p193 = por %p191, %p192
      %p194 = scmp.ne.s32.totalorder %s186, %s188
      %p195 = scmp.eq.s32.totalorder %s31, 1
      %p196 = por %p194, %p195
      %p197 = scmp.ne.s32.totalorder %s188, %s189
      %p198 = scmp.eq.s32.totalorder %s31, 0
      %p199 = por %p197, %p198
      %p200 = scmp.ne.s32.totalorder %s188, %s189
      %p201 = scmp.eq.s32.totalorder %s32, 1
      %p202 = por %p200, %p201
      %p204 = scmp.ne.s32.totalorder %s189, %s203
      %p205 = scmp.eq.s32.totalorder %s32, 0
      %p206 = por %p204, %p205
      %s208 = sadd.s32 %s207, 1
      %p211 = scmp.eq.s32.totalorder %s26, 1
      %p212 = scmp.ne.s32.totalorder %s207, %s209
      %p213 = scmp.eq.s32.totalorder %s26, 0
      %p214 = por %p212, %p213
      %p215 = scmp.ne.s32.totalorder %s207, %s209
      %p216 = scmp.eq.s32.totalorder %s31, 1
      %p217 = por %p215, %p216
      %p218 = scmp.ne.s32.totalorder %s209, %s210
      %p219 = scmp.eq.s32.totalorder %s31, 0
      %p220 = por %p218, %p219
      %p221 = scmp.ne.s32.totalorder %s209, %s210
      %p222 = scmp.eq.s32.totalorder %s32, 1
      %p223 = por %p221, %p222
      %p225 = scmp.ne.s32.totalorder %s210, %s224
      %p226 = scmp.eq.s32.totalorder %s32, 0
      %p227 = por %p225, %p226
      %s229 = sadd.s32 %s228, 1
      %p232 = scmp.eq.s32.totalorder %s26, 1
      %p233 = scmp.ne.s32.totalorder %s228, %s230
      %p234 = scmp.eq.s32.totalorder %s26, 0
      %p235 = por %p233, %p234
      %p236 = scmp.ne.s32.totalorder %s228, %s230
      %p237 = scmp.eq.s32.totalorder %s31, 1
      %p238 = por %p236, %p237
      %p239 = scmp.ne.s32.totalorder %s230, %s231
      %p240 = scmp.eq.s32.totalorder %s31, 0
      %p241 = por %p239, %p240
      %p242 = scmp.ne.s32.totalorder %s230, %s231
      %p243 = scmp.eq.s32.totalorder %s32, 1
      %p244 = por %p242, %p243
      %p246 = scmp.ne.s32.totalorder %s231, %s245
      %p247 = scmp.eq.s32.totalorder %s32, 0
      %p248 = por %p246, %p247
      %s250 = sadd.s32 %s249, 1
      %p253 = scmp.eq.s32.totalorder %s26, 1
      %p254 = scmp.ne.s32.totalorder %s249, %s251
      %p255 = scmp.eq.s32.totalorder %s26, 0
      %p256 = por %p254, %p255
      %p257 = scmp.ne.s32.totalorder %s249, %s251
      %p258 = scmp.eq.s32.totalorder %s31, 1
      %p259 = por %p257, %p258
      %p260 = scmp.ne.s32.totalorder %s251, %s252
      %p261 = scmp.eq.s32.totalorder %s31, 0
      %p262 = por %p260, %p261
      %p263 = scmp.ne.s32.totalorder %s251, %s252
      %p264 = scmp.eq.s32.totalorder %s32, 1
      %p265 = por %p263, %p264
      %p267 = scmp.ne.s32.totalorder %s252, %s266
      %p268 = scmp.eq.s32.totalorder %s32, 0
      %p269 = por %p267, %p268
      %s271 = sadd.s32 %s270, 1
      %p274 = scmp.eq.s32.totalorder %s26, 1
      %p275 = scmp.ne.s32.totalorder %s270, %s272
      %p276 = scmp.eq.s32.totalorder %s26, 0
      %p277 = por %p275, %p276
      %p278 = scmp.ne.s32.totalorder %s270, %s272
      %p279 = scmp.eq.s32.totalorder %s31, 1
      %p280 = por %p278, %p279
      %p281 = scmp.ne.s32.totalorder %s272, %s273
      %p282 = scmp.eq.s32.totalorder %s31, 0
      %p283 = por %p281, %p282
      %p284 = scmp.ne.s32.totalorder %s272, %s273
      %p285 = scmp.eq.s32.totalorder %s32, 1
      %p286 = por %p284, %p285
      %p288 = scmp.ne.s32.totalorder %s273, %s287
      %p289 = scmp.eq.s32.totalorder %s32, 0
      %p290 = por %p288, %p289
      %s291 = ssub.s32 %s26, %s33
      %p292 = scmp.eq.s32.totalorder %s291, 0
      %s294 = sadd.s32 %s293, 1
      %s295 = scalar_select %p292, %s293, %s294
      %p298 = pneg %p292
      %p299 = scmp.eq.s32.totalorder %s26, 1
      %p300 = por %p298, %p299
      %p301 = scmp.ne.s32.totalorder %s293, %s296
      %p302 = scmp.eq.s32.totalorder %s26, 0
      %p303 = por %p301, %p302
      %p304 = scmp.ne.s32.totalorder %s293, %s296
      %p305 = scmp.eq.s32.totalorder %s31, 1
      %p306 = por %p304, %p305
      %p307 = scmp.ne.s32.totalorder %s296, %s297
      %p308 = scmp.eq.s32.totalorder %s31, 0
      %p309 = por %p307, %p308
      %p310 = scmp.ne.s32.totalorder %s296, %s297
      %p311 = scmp.eq.s32.totalorder %s32, 1
      %p312 = por %p310, %p311
      %p314 = scmp.ne.s32.totalorder %s297, %s313
      %p315 = scmp.eq.s32.totalorder %s32, 0
      %p316 = por %p314, %p315
      %p317 = scmp.le.s32.totalorder 1, %s26
      %p318 = scmp.lt.s32.totalorder %s26, 3
      %p319 = pnand %p317, %p318
      %p320 = pneg %p319
      // Predicated region
      $region9: #{tpu_custom_call.1} parent=5 // pred_check
        _
      $region10: #{tpu_custom_call.1} parent=5 // pred_check_branch
        %322 = sbr.rel (%p319) target = $region12
      $region11: #{tpu_custom_call.1} parent=5 // pred_region
        %s323 = ssub.s32 %s26, 1
        // Predicated region
        $region13: #{tpu_custom_call.1} parent=11 // pred_check
          %p324 = pneg %p73
        $region14: #{tpu_custom_call.1} parent=11 // pred_check_branch
          %326 = sbr.rel (%p324) target = $region16
        $region15: #{tpu_custom_call.1} parent=11 // pred_region
          _
        $region16: #{tpu_custom_call.1} parent=11 // pred_fallthru
          _
        // Predicated region
        $region17: #{tpu_custom_call.1} parent=11 // pred_check
          %p327 = pneg %p94
        $region18: #{tpu_custom_call.1} parent=11 // pred_check_branch
          %329 = sbr.rel (%p327) target = $region20
        $region19: #{tpu_custom_call.1} parent=11 // pred_region
          _
        $region20: #{tpu_custom_call.1} parent=11 // pred_fallthru
          _
        // Predicated region
        $region21: #{tpu_custom_call.1} parent=11 // pred_check
          %p330 = pneg %p115
        $region22: #{tpu_custom_call.1} parent=11 // pred_check_branch
          %332 = sbr.rel (%p330) target = $region24
        $region23: #{tpu_custom_call.1} parent=11 // pred_region
          %s334 = ssub.s32 6144, 6144
          %335 = vsyncadd [#allocation7], %s334
          %s336 = sshll.u32 [#allocation6], 4
          %s337 = int_to_ptr.vmem [resolvable:$true] %s336
          %342 = dma.hbm_to_vmem [thread:$0]  %s3, 6144, %s337, [#allocation7], 384, 384, 24
        $region24: #{tpu_custom_call.1} parent=11 // pred_fallthru
          _
        // Predicated region
        $region25: #{tpu_custom_call.1} parent=11 // pred_check
          %p343 = pneg %p136
        $region26: #{tpu_custom_call.1} parent=11 // pred_check_branch
          %345 = sbr.rel (%p343) target = $region28
        $region27: #{tpu_custom_call.1} parent=11 // pred_region
          %s347 = ssub.s32 2048, 2048
          %348 = vsyncadd [#allocation7], %s347
          %s349 = sshll.u32 [#allocation8], 4
          %s350 = int_to_ptr.vmem [resolvable:$true] %s349
          %355 = dma.hbm_to_vmem [thread:$0]  %s4, 2048, %s350, [#allocation7], 64, 64, 4
        $region28: #{tpu_custom_call.1} parent=11 // pred_fallthru
          _
        // Predicated region
        $region29: #{tpu_custom_call.1} parent=11 // pred_check
          %p356 = pneg %p157
        $region30: #{tpu_custom_call.1} parent=11 // pred_check_branch
          %358 = sbr.rel (%p356) target = $region32
        $region31: #{tpu_custom_call.1} parent=11 // pred_region
          _
        $region32: #{tpu_custom_call.1} parent=11 // pred_fallthru
          _
        // Predicated region
        $region33: #{tpu_custom_call.1} parent=11 // pred_check
          %p359 = pneg %p178
        $region34: #{tpu_custom_call.1} parent=11 // pred_check_branch
          %361 = sbr.rel (%p359) target = $region36
        $region35: #{tpu_custom_call.1} parent=11 // pred_region
          _
        $region36: #{tpu_custom_call.1} parent=11 // pred_fallthru
          _
        // Predicated region
        $region37: #{tpu_custom_call.1} parent=11 // pred_check
          %p362 = pneg %p199
        $region38: #{tpu_custom_call.1} parent=11 // pred_check_branch
          %364 = sbr.rel (%p362) target = $region40
        $region39: #{tpu_custom_call.1} parent=11 // pred_region
          _
        $region40: #{tpu_custom_call.1} parent=11 // pred_fallthru
          _
        // Predicated region
        $region41: #{tpu_custom_call.1} parent=11 // pred_check
          %p365 = pneg %p220
        $region42: #{tpu_custom_call.1} parent=11 // pred_check_branch
          %367 = sbr.rel (%p365) target = $region44
        $region43: #{tpu_custom_call.1} parent=11 // pred_region
          %s369 = ssub.s32 4096, 4096
          %370 = vsyncadd [#allocation10], %s369
          %s371 = sshll.u32 [#allocation9], 4
          %s372 = int_to_ptr.vmem [resolvable:$true] %s371
          %377 = dma.hbm_to_vmem [thread:$0]  %s8, 4096, %s372, [#allocation10], 256, 256, 16
        $region44: #{tpu_custom_call.1} parent=11 // pred_fallthru
          _
        // Predicated region
        $region45: #{tpu_custom_call.1} parent=11 // pred_check
          %p378 = pneg %p241
        $region46: #{tpu_custom_call.1} parent=11 // pred_check_branch
          %380 = sbr.rel (%p378) target = $region48
        $region47: #{tpu_custom_call.1} parent=11 // pred_region
          _
        $region48: #{tpu_custom_call.1} parent=11 // pred_fallthru
          _
        // Predicated region
        $region49: #{tpu_custom_call.1} parent=11 // pred_check
          %p381 = pneg %p262
        $region50: #{tpu_custom_call.1} parent=11 // pred_check_branch
          %383 = sbr.rel (%p381) target = $region52
        $region51: #{tpu_custom_call.1} parent=11 // pred_region
          %s385 = ssub.s32 4096, 4096
          %386 = vsyncadd [#allocation10], %s385
          %s387 = sshll.u32 [#allocation11], 4
          %s388 = int_to_ptr.vmem [resolvable:$true] %s387
          %393 = dma.hbm_to_vmem [thread:$0]  %s10, 4096, %s388, [#allocation10], 64, 64, 4
        $region52: #{tpu_custom_call.1} parent=11 // pred_fallthru
          _
        // Predicated region
        $region53: #{tpu_custom_call.1} parent=11 // pred_check
          %p394 = pneg %p283
        $region54: #{tpu_custom_call.1} parent=11 // pred_check_branch
          %396 = sbr.rel (%p394) target = $region56
        $region55: #{tpu_custom_call.1} parent=11 // pred_region
          _
        $region56: #{tpu_custom_call.1} parent=11 // pred_fallthru
          _
      $region12: #{tpu_custom_call.1} parent=5 // pred_fallthru
        _
      %p397 = scmp.lt.s32.totalorder %s26, 2
      // Predicated region
      $region57: #{tpu_custom_call.1} parent=5 // pred_check
        %p398 = pneg %p397
      $region58: #{tpu_custom_call.1} parent=5 // pred_check_branch
        %400 = sbr.rel (%p398) target = $region60
      $region59: #{tpu_custom_call.1} parent=5 // pred_region
        // Predicated region
        $region61: #{tpu_custom_call.1} parent=59 // pred_check
          %p401 = pneg %p46
        $region62: #{tpu_custom_call.1} parent=59 // pred_check_branch
          %403 = sbr.rel (%p401) target = $region64
        $region63: #{tpu_custom_call.1} parent=59 // pred_region
          %s404 = sand.u32 %s36, 1
          %s405 = scalar_lea.sflag [#allocation4], %s404
          %s406 = sand.u32 %s36, 1
          %s407 = smul.addr %s406, 64
          %s408 = scalar_lea.vmem [#allocation3], %s407
          %s410 = ssub.s32 1024, 1024
          %411 = vsyncadd %s405, %s410
          %s412 = smul.addr %s26, 8
          %s413 = smul.addr %s412, 128
          %s414 = scalar_lea.hbm %s0, %s413
          %s415 = sshll.u32 %s408, 4
          %s416 = int_to_ptr.vmem [resolvable:$true] %s415
          %421 = dma.hbm_to_vmem [thread:$0]  %s414, 1024, %s416, %s405, 128, 128, 8
        $region64: #{tpu_custom_call.1} parent=59 // pred_fallthru
          _
      $region60: #{tpu_custom_call.1} parent=5 // pred_fallthru
        _
      %p422 = scmp.le.s32.totalorder 1, %s26
      %p423 = scmp.lt.s32.totalorder %s26, 3
      %p424 = pnand %p422, %p423
      %p425 = pneg %p424
      // Predicated region
      $region65: #{tpu_custom_call.1} parent=5 // pred_check
        _
      $region66: #{tpu_custom_call.1} parent=5 // pred_check_branch
        %427 = sbr.rel (%p424) target = $region68
      $region67: #{tpu_custom_call.1} parent=5 // pred_region
        %s428 = ssub.s32 %s26, 1
        %s429 = sand.u32 %s39, 1
        %s430 = scalar_lea.sflag [#allocation4], %s429
        %s431 = sand.u32 %s39, 1
        %s432 = smul.addr %s431, 64
        %s433 = scalar_lea.vmem [#allocation3], %s432
        // Predicated region
        $region69: #{tpu_custom_call.1} parent=67 // pred_check
          %p434 = pneg %p52
        $region70: #{tpu_custom_call.1} parent=67 // pred_check_branch
          %436 = sbr.rel (%p434) target = $region72
        $region71: #{tpu_custom_call.1} parent=67 // pred_region
          %437 = dma.done %s430, 1024
        $region72: #{tpu_custom_call.1} parent=67 // pred_fallthru
          _
        // Predicated region
        $region73: #{tpu_custom_call.1} parent=67 // pred_check
          %p438 = pneg %p115
        $region74: #{tpu_custom_call.1} parent=67 // pred_check_branch
          %440 = sbr.rel (%p438) target = $region76
        $region75: #{tpu_custom_call.1} parent=67 // pred_region
          %441 = dma.done [#allocation7], 6144
        $region76: #{tpu_custom_call.1} parent=67 // pred_fallthru
          _
        // Predicated region
        $region77: #{tpu_custom_call.1} parent=67 // pred_check
          %p442 = pneg %p136
        $region78: #{tpu_custom_call.1} parent=67 // pred_check_branch
          %444 = sbr.rel (%p442) target = $region80
        $region79: #{tpu_custom_call.1} parent=67 // pred_region
          %445 = dma.done [#allocation7], 2048
        $region80: #{tpu_custom_call.1} parent=67 // pred_fallthru
          _
        // Predicated region
        $region81: #{tpu_custom_call.1} parent=67 // pred_check
          %p446 = pneg %p220
        $region82: #{tpu_custom_call.1} parent=67 // pred_check_branch
          %448 = sbr.rel (%p446) target = $region84
        $region83: #{tpu_custom_call.1} parent=67 // pred_region
          %449 = dma.done [#allocation10], 4096
        $region84: #{tpu_custom_call.1} parent=67 // pred_fallthru
          _
        // Predicated region
        $region85: #{tpu_custom_call.1} parent=67 // pred_check
          %p450 = pneg %p262
        $region86: #{tpu_custom_call.1} parent=67 // pred_check_branch
          %452 = sbr.rel (%p450) target = $region88
        $region87: #{tpu_custom_call.1} parent=67 // pred_region
          %453 = dma.done [#allocation10], 4096
        $region88: #{tpu_custom_call.1} parent=67 // pred_fallthru
          _
        %s454 = sand.u32 %s39, 1
        %s455 = scalar_lea.sflag [#allocation4], %s454
        %s456 = sand.u32 %s39, 1
        %s457 = smul.addr %s456, 64
        %s458 = scalar_lea.vmem [#allocation3], %s457
        %p459 = pneg %p52
        %p460 = pneg %p49
        %p461 = pneg %p73
        %p462 = pneg %p70
        %p463 = pneg %p94
        %p464 = pneg %p91
        %p465 = pneg %p115
        %p466 = pneg %p112
        %p467 = pneg %p136
        %p468 = pneg %p133
        %p469 = pneg %p157
        %p470 = pneg %p154
        %p471 = pneg %p178
        %p472 = pneg %p175
        %p473 = pneg %p199
        %p474 = pneg %p196
        %p475 = pneg %p220
        %p476 = pneg %p217
        %p477 = pneg %p241
        %p478 = pneg %p238
        %p479 = pneg %p262
        %p480 = pneg %p259
        %p481 = pneg %p283
        %p482 = pneg %p280
        %p483 = pneg %p309
        %p484 = pneg %p306
        %s485 = sand.u32 %s296, 1
        %s486 = scalar_lea.sflag [#allocation5], %s485
        %s487 = sand.u32 %s296, 1
        %s488 = smul.addr %s487, 64
        %s489 = scalar_lea.vmem [#allocation12], %s488
        %v491 = vld [vmem:[%s433] sm:$0xff]
        %v492 = vld [vmem:[%s433 + $0x8] sm:$0xff]
        %v493 = vld [vmem:[%s433 + $0x10] sm:$0xff]
        %v494 = vld [vmem:[%s433 + $0x18] sm:$0xff]
        %v495 = vld [vmem:[%s433 + $0x20] sm:$0xff]
        %v496 = vld [vmem:[%s433 + $0x28] sm:$0xff]
        %v497 = vld [vmem:[%s433 + $0x30] sm:$0xff]
        %v498 = vld [vmem:[%s433 + $0x38] sm:$0xff]
        %v499 = vld [vmem:[%s1] sm:$0x1]
        %v500 = vld [vmem:[%s2] sm:$0x1]
        %501 = vadd.xlane.f32.xlu0 %v491
        %v502 = vpop.xlane.xlu0 %501
        %503 = vadd.xlane.f32.xlu0 %v492
        %v504 = vpop.xlane.xlu0 %503
        %505 = vadd.xlane.f32.xlu0 %v493
        %v506 = vpop.xlane.xlu0 %505
        %507 = vadd.xlane.f32.xlu0 %v494
        %v508 = vpop.xlane.xlu0 %507
        %509 = vadd.xlane.f32.xlu0 %v495
        %v510 = vpop.xlane.xlu0 %509
        %511 = vadd.xlane.f32.xlu0 %v496
        %v512 = vpop.xlane.xlu0 %511
        %513 = vadd.xlane.f32.xlu0 %v497
        %v514 = vpop.xlane.xlu0 %513
        %515 = vadd.xlane.f32.xlu0 %v498
        %v516 = vpop.xlane.xlu0 %515
        %v517 = vrcp.pop 128.0
        %v518 = vmul.f32 %v502, %v517
        %v519 = vmul.f32 %v504, %v517
        %v520 = vmul.f32 %v506, %v517
        %v521 = vmul.f32 %v508, %v517
        %v522 = vmul.f32 %v510, %v517
        %v523 = vmul.f32 %v512, %v517
        %v524 = vmul.f32 %v514, %v517
        %v525 = vmul.f32 %v516, %v517
        %v526 = vsub.f32 %v491, %v518
        %v527 = vsub.f32 %v492, %v519
        %v528 = vsub.f32 %v493, %v520
        %v529 = vsub.f32 %v494, %v521
        %v530 = vsub.f32 %v495, %v522
        %v531 = vsub.f32 %v496, %v523
        %v532 = vsub.f32 %v497, %v524
        %v533 = vsub.f32 %v498, %v525
        %v534 = vmul.f32 %v526, %v526
        %v535 = vmul.f32 %v527, %v527
        %v536 = vmul.f32 %v528, %v528
        %v537 = vmul.f32 %v529, %v529
        %v538 = vmul.f32 %v530, %v530
        %v539 = vmul.f32 %v531, %v531
        %v540 = vmul.f32 %v532, %v532
        %v541 = vmul.f32 %v533, %v533
        %542 = vadd.xlane.f32.xlu0 %v534
        %v543 = vpop.xlane.xlu0 %542
        %544 = vadd.xlane.f32.xlu0 %v535
        %v545 = vpop.xlane.xlu0 %544
        %546 = vadd.xlane.f32.xlu0 %v536
        %v547 = vpop.xlane.xlu0 %546
        %548 = vadd.xlane.f32.xlu0 %v537
        %v549 = vpop.xlane.xlu0 %548
        %550 = vadd.xlane.f32.xlu0 %v538
        %v551 = vpop.xlane.xlu0 %550
        %552 = vadd.xlane.f32.xlu0 %v539
        %v553 = vpop.xlane.xlu0 %552
        %554 = vadd.xlane.f32.xlu0 %v540
        %v555 = vpop.xlane.xlu0 %554
        %556 = vadd.xlane.f32.xlu0 %v541
        %v557 = vpop.xlane.xlu0 %556
        %v558 = vmul.f32 %v543, %v517
        %v559 = vmul.f32 %v545, %v517
        %v560 = vmul.f32 %v547, %v517
        %v561 = vmul.f32 %v549, %v517
        %v562 = vmul.f32 %v551, %v517
        %v563 = vmul.f32 %v553, %v517
        %v564 = vmul.f32 %v555, %v517
        %v565 = vmul.f32 %v557, %v517
        %v566 = vadd.f32 %v558, 1e-05
        %v567 = vadd.f32 %v559, 1e-05
        %v568 = vadd.f32 %v560, 1e-05
        %v569 = vadd.f32 %v561, 1e-05
        %v570 = vadd.f32 %v562, 1e-05
        %v571 = vadd.f32 %v563, 1e-05
        %v572 = vadd.f32 %v564, 1e-05
        %v573 = vadd.f32 %v565, 1e-05
        %v574 = vrsqrt.pop %v566
        %v575 = vrsqrt.pop %v567
        %v576 = vrsqrt.pop %v568
        %v577 = vrsqrt.pop %v569
        %v578 = vrsqrt.pop %v570
        %v579 = vrsqrt.pop %v571
        %v580 = vrsqrt.pop %v572
        %v581 = vrsqrt.pop %v573
        %v582 = vmul.f32 %v526, %v574
        %v583 = vmul.f32 %v527, %v575
        %v584 = vmul.f32 %v528, %v576
        %v585 = vmul.f32 %v529, %v577
        %v586 = vmul.f32 %v530, %v578
        %v587 = vmul.f32 %v531, %v579
        %v588 = vmul.f32 %v532, %v580
        %v589 = vmul.f32 %v533, %v581
        %v591 = vlaneseq
        %v592 = vshrl.u32 %v591, 7
        %v593 = vsub.s32 0, %v592
        %v594 = vrot.slane %v499, %v593
        %v596 = vmul.f32 %v582, %v594
        %v597 = vmul.f32 %v583, %v594
        %v598 = vmul.f32 %v584, %v594
        %v599 = vmul.f32 %v585, %v594
        %v600 = vmul.f32 %v586, %v594
        %v601 = vmul.f32 %v587, %v594
        %v602 = vmul.f32 %v588, %v594
        %v603 = vmul.f32 %v589, %v594
        %v605 = vlaneseq
        %v606 = vshrl.u32 %v605, 7
        %v607 = vsub.s32 0, %v606
        %v608 = vrot.slane %v500, %v607
        %v610 = vadd.f32 %v596, %v608
        %v611 = vadd.f32 %v597, %v608
        %v612 = vadd.f32 %v598, %v608
        %v613 = vadd.f32 %v599, %v608
        %v614 = vadd.f32 %v600, %v608
        %v615 = vadd.f32 %v601, %v608
        %v616 = vadd.f32 %v602, %v608
        %v617 = vadd.f32 %v603, %v608
        %v618 = vpack.c.bf16 %v611, %v610
        %v619 = vpack.c.bf16 %v613, %v612
        %v620 = vpack.c.bf16 %v615, %v614
        %v621 = vpack.c.bf16 %v617, %v616
        %v622 = vld [vmem:[#allocation6] sm:$0xff]
        %v623 = vld [vmem:[#allocation6 + $0x8] sm:$0xff]
        %v624 = vld [vmem:[#allocation6 + $0x10] sm:$0xff]
        %v625 = vld [vmem:[#allocation6 + $0x18] sm:$0xff]
        %v626 = vld [vmem:[#allocation6 + $0x20] sm:$0xff]
        %v627 = vld [vmem:[#allocation6 + $0x28] sm:$0xff]
        %v628 = vld [vmem:[#allocation6 + $0x30] sm:$0xff]
        %v629 = vld [vmem:[#allocation6 + $0x38] sm:$0xff]
        %v630 = vld [vmem:[#allocation6 + $0x40] sm:$0xff]
        %v631 = vld [vmem:[#allocation6 + $0x48] sm:$0xff]
        %v632 = vld [vmem:[#allocation6 + $0x50] sm:$0xff]
        %v633 = vld [vmem:[#allocation6 + $0x58] sm:$0xff]
        %v634 = vld [vmem:[#allocation6 + $0x60] sm:$0xff]
        %v635 = vld [vmem:[#allocation6 + $0x68] sm:$0xff]
        %v636 = vld [vmem:[#allocation6 + $0x70] sm:$0xff]
        %v637 = vld [vmem:[#allocation6 + $0x78] sm:$0xff]
        %v638 = vld [vmem:[#allocation6 + $0x80] sm:$0xff]
        %v639 = vld [vmem:[#allocation6 + $0x88] sm:$0xff]
        %v640 = vld [vmem:[#allocation6 + $0x90] sm:$0xff]
        %v641 = vld [vmem:[#allocation6 + $0x98] sm:$0xff]
        %v642 = vld [vmem:[#allocation6 + $0xa0] sm:$0xff]
        %v643 = vld [vmem:[#allocation6 + $0xa8] sm:$0xff]
        %v644 = vld [vmem:[#allocation6 + $0xb0] sm:$0xff]
        %v645 = vld [vmem:[#allocation6 + $0xb8] sm:$0xff]
        %v646 = vld [vmem:[#allocation6 + $0xc0] sm:$0xff]
        %v647 = vld [vmem:[#allocation6 + $0xc8] sm:$0xff]
        %v648 = vld [vmem:[#allocation6 + $0xd0] sm:$0xff]
        %v649 = vld [vmem:[#allocation6 + $0xd8] sm:$0xff]
        %v650 = vld [vmem:[#allocation6 + $0xe0] sm:$0xff]
        %v651 = vld [vmem:[#allocation6 + $0xe8] sm:$0xff]
        %v652 = vld [vmem:[#allocation6 + $0xf0] sm:$0xff]
        %v653 = vld [vmem:[#allocation6 + $0xf8] sm:$0xff]
        %v654 = vld [vmem:[#allocation6 + $0x100] sm:$0xff]
        %v655 = vld [vmem:[#allocation6 + $0x108] sm:$0xff]
        %v656 = vld [vmem:[#allocation6 + $0x110] sm:$0xff]
        %v657 = vld [vmem:[#allocation6 + $0x118] sm:$0xff]
        %v658 = vld [vmem:[#allocation6 + $0x120] sm:$0xff]
        %v659 = vld [vmem:[#allocation6 + $0x128] sm:$0xff]
        %v660 = vld [vmem:[#allocation6 + $0x130] sm:$0xff]
        %v661 = vld [vmem:[#allocation6 + $0x138] sm:$0xff]
        %v662 = vld [vmem:[#allocation6 + $0x140] sm:$0xff]
        %v663 = vld [vmem:[#allocation6 + $0x148] sm:$0xff]
        %v664 = vld [vmem:[#allocation6 + $0x150] sm:$0xff]
        %v665 = vld [vmem:[#allocation6 + $0x158] sm:$0xff]
        %v666 = vld [vmem:[#allocation6 + $0x160] sm:$0xff]
        %v667 = vld [vmem:[#allocation6 + $0x168] sm:$0xff]
        %v668 = vld [vmem:[#allocation6 + $0x170] sm:$0xff]
        %v669 = vld [vmem:[#allocation6 + $0x178] sm:$0xff]
        %v718 = vunpack.c.l.b16 %v622
        %v719 = vunpack.c.h.b16 %v622
        %v720 = vunpack.c.l.b16 %v623
        %v721 = vunpack.c.h.b16 %v623
        %v722 = vunpack.c.l.b16 %v624
        %v723 = vunpack.c.h.b16 %v624
        %v724 = vunpack.c.l.b16 %v625
        %v725 = vunpack.c.h.b16 %v625
        %v726 = vunpack.c.l.b16 %v626
        %v727 = vunpack.c.h.b16 %v626
        %v728 = vunpack.c.l.b16 %v627
        %v729 = vunpack.c.h.b16 %v627
        %v730 = vunpack.c.l.b16 %v628
        %v731 = vunpack.c.h.b16 %v628
        %v732 = vunpack.c.l.b16 %v629
        %v733 = vunpack.c.h.b16 %v629
        %v734 = vunpack.c.l.b16 %v630
        %v735 = vunpack.c.h.b16 %v630
        %v736 = vunpack.c.l.b16 %v631
        %v737 = vunpack.c.h.b16 %v631
        %v738 = vunpack.c.l.b16 %v632
        %v739 = vunpack.c.h.b16 %v632
        %v740 = vunpack.c.l.b16 %v633
        %v741 = vunpack.c.h.b16 %v633
        %v742 = vunpack.c.l.b16 %v634
        %v743 = vunpack.c.h.b16 %v634
        %v744 = vunpack.c.l.b16 %v635
        %v745 = vunpack.c.h.b16 %v635
        %v746 = vunpack.c.l.b16 %v636
        %v747 = vunpack.c.h.b16 %v636
        %v748 = vunpack.c.l.b16 %v637
        %v749 = vunpack.c.h.b16 %v637
        %v750 = vunpack.c.l.b16 %v638
        %v751 = vunpack.c.h.b16 %v638
        %v752 = vunpack.c.l.b16 %v639
        %v753 = vunpack.c.h.b16 %v639
        %v754 = vunpack.c.l.b16 %v640
        %v755 = vunpack.c.h.b16 %v640
        %v756 = vunpack.c.l.b16 %v641
        %v757 = vunpack.c.h.b16 %v641
        %v758 = vunpack.c.l.b16 %v642
        %v759 = vunpack.c.h.b16 %v642
        %v760 = vunpack.c.l.b16 %v643
        %v761 = vunpack.c.h.b16 %v643
        %v762 = vunpack.c.l.b16 %v644
        %v763 = vunpack.c.h.b16 %v644
        %v764 = vunpack.c.l.b16 %v645
        %v765 = vunpack.c.h.b16 %v645
        %v766 = vunpack.c.l.b16 %v646
        %v767 = vunpack.c.h.b16 %v646
        %v768 = vunpack.c.l.b16 %v647
        %v769 = vunpack.c.h.b16 %v647
        %v770 = vunpack.c.l.b16 %v648
        %v771 = vunpack.c.h.b16 %v648
        %v772 = vunpack.c.l.b16 %v649
        %v773 = vunpack.c.h.b16 %v649
        %v774 = vunpack.c.l.b16 %v650
        %v775 = vunpack.c.h.b16 %v650
        %v776 = vunpack.c.l.b16 %v651
        %v777 = vunpack.c.h.b16 %v651
        %v778 = vunpack.c.l.b16 %v652
        %v779 = vunpack.c.h.b16 %v652
        %v780 = vunpack.c.l.b16 %v653
        %v781 = vunpack.c.h.b16 %v653
        %v782 = vunpack.c.l.b16 %v654
        %v783 = vunpack.c.h.b16 %v654
        %v784 = vunpack.c.l.b16 %v655
        %v785 = vunpack.c.h.b16 %v655
        %v786 = vunpack.c.l.b16 %v656
        %v787 = vunpack.c.h.b16 %v656
        %v788 = vunpack.c.l.b16 %v657
        %v789 = vunpack.c.h.b16 %v657
        %v790 = vunpack.c.l.b16 %v658
        %v791 = vunpack.c.h.b16 %v658
        %v792 = vunpack.c.l.b16 %v659
        %v793 = vunpack.c.h.b16 %v659
        %v794 = vunpack.c.l.b16 %v660
        %v795 = vunpack.c.h.b16 %v660
        %v796 = vunpack.c.l.b16 %v661
        %v797 = vunpack.c.h.b16 %v661
        %v798 = vunpack.c.l.b16 %v662
        %v799 = vunpack.c.h.b16 %v662
        %v800 = vunpack.c.l.b16 %v663
        %v801 = vunpack.c.h.b16 %v663
        %v802 = vunpack.c.l.b16 %v664
        %v803 = vunpack.c.h.b16 %v664
        %v804 = vunpack.c.l.b16 %v665
        %v805 = vunpack.c.h.b16 %v665
        %v806 = vunpack.c.l.b16 %v666
        %v807 = vunpack.c.h.b16 %v666
        %v808 = vunpack.c.l.b16 %v667
        %v809 = vunpack.c.h.b16 %v667
        %v810 = vunpack.c.l.b16 %v668
        %v811 = vunpack.c.h.b16 %v668
        %v812 = vunpack.c.l.b16 %v669
        %v813 = vunpack.c.h.b16 %v669
        %v814 = vpack.c.b16 %v724, %v718
        %v815 = vpack.c.b16 %v725, %v719
        %v816 = vpack.c.b16 %v726, %v720
        %v817 = vpack.c.b16 %v727, %v721
        %v818 = vpack.c.b16 %v728, %v722
        %v819 = vpack.c.b16 %v729, %v723
        %v820 = vpack.c.b16 %v736, %v730
        %v821 = vpack.c.b16 %v737, %v731
        %v822 = vpack.c.b16 %v738, %v732
        %v823 = vpack.c.b16 %v739, %v733
        %v824 = vpack.c.b16 %v740, %v734
        %v825 = vpack.c.b16 %v741, %v735
        %v826 = vpack.c.b16 %v748, %v742
        %v827 = vpack.c.b16 %v749, %v743
        %v828 = vpack.c.b16 %v750, %v744
        %v829 = vpack.c.b16 %v751, %v745
        %v830 = vpack.c.b16 %v752, %v746
        %v831 = vpack.c.b16 %v753, %v747
        %v832 = vpack.c.b16 %v760, %v754
        %v833 = vpack.c.b16 %v761, %v755
        %v834 = vpack.c.b16 %v762, %v756
        %v835 = vpack.c.b16 %v763, %v757
        %v836 = vpack.c.b16 %v764, %v758
        %v837 = vpack.c.b16 %v765, %v759
        %v838 = vpack.c.b16 %v772, %v766
        %v839 = vpack.c.b16 %v773, %v767
        %v840 = vpack.c.b16 %v774, %v768
        %v841 = vpack.c.b16 %v775, %v769
        %v842 = vpack.c.b16 %v776, %v770
        %v843 = vpack.c.b16 %v777, %v771
        %v844 = vpack.c.b16 %v784, %v778
        %v845 = vpack.c.b16 %v785, %v779
        %v846 = vpack.c.b16 %v786, %v780
        %v847 = vpack.c.b16 %v787, %v781
        %v848 = vpack.c.b16 %v788, %v782
        %v849 = vpack.c.b16 %v789, %v783
        %v850 = vpack.c.b16 %v796, %v790
        %v851 = vpack.c.b16 %v797, %v791
        %v852 = vpack.c.b16 %v798, %v792
        %v853 = vpack.c.b16 %v799, %v793
        %v854 = vpack.c.b16 %v800, %v794
        %v855 = vpack.c.b16 %v801, %v795
        %v856 = vpack.c.b16 %v808, %v802
        %v857 = vpack.c.b16 %v809, %v803
        %v858 = vpack.c.b16 %v810, %v804
        %v859 = vpack.c.b16 %v811, %v805
        %v860 = vpack.c.b16 %v812, %v806
        %v861 = vpack.c.b16 %v813, %v807
        %910 = vmatprep.subr.bf16.mxu0 %v815
        %911 = vmatpush1.bf16.msra.mxu0 %v814
        %912 = vmatprep.subr.bf16.mxu0 %v821
        %913 = vmatpush1.bf16.msra.mxu0 %v820
        %914 = vmatprep.subr.bf16.mxu0 %v827
        %915 = vmatpush1.bf16.msra.mxu0 %v826
        %916 = vmatprep.subr.bf16.mxu0 %v833
        %917 = vmatpush1.bf16.msra.mxu0 %v832
        %918 = vmatprep.subr.bf16.mxu0 %v839
        %919 = vmatpush1.bf16.msra.mxu0 %v838
        %920 = vmatprep.subr.bf16.mxu0 %v845
        %921 = vmatpush1.bf16.msra.mxu0 %v844
        %922 = vmatprep.subr.bf16.mxu0 %v851
        %923 = vmatpush1.bf16.msra.mxu0 %v850
        %924 = vmatprep.subr.bf16.mxu0 %v857
        %925 = vmatpush1.bf16.msra.mxu0 %v856
        %926 = vmatprep.subr.bf16.mxu0 0
        %927 = vmatpush1.bf16.msra.mxu0 0
        %928 = vmatprep.subr.bf16.mxu0 0
        %929 = vmatpush1.bf16.msra.mxu0 0
        %930 = vmatprep.subr.bf16.mxu0 0
        %931 = vmatpush1.bf16.msra.mxu0 0
        %932 = vmatprep.subr.bf16.mxu0 0
        %933 = vmatpush1.bf16.msra.mxu0 0
        %934 = vmatprep.subr.bf16.mxu0 0
        %935 = vmatpush1.bf16.msra.mxu0 0
        %936 = vmatprep.subr.bf16.mxu0 0
        %937 = vmatpush1.bf16.msra.mxu0 0
        %938 = vmatprep.subr.bf16.mxu0 0
        %939 = vmatpush1.bf16.msra.mxu0 0
        %940 = vmatprep.subr.bf16.mxu0 0
        %941 = vmatpush1.bf16.msra.mxu0 0
        %942 = vmatprep.mubr.bf16.mxu0 0
        %943 = vmatmul.mubr.bf16.gmra.mrb[0].mxu0 %v618
        %v944 = vpop.f32.mrb[0].mxu0
        %v945 = vadd.f32 0.0, %v944
        %v946 = vpop.f32.mrb[0].mxu0
        %v947 = vadd.f32 0.0, %v946
        %v948 = vpop.f32.mrb[0].mxu0
        %v949 = vadd.f32 0.0, %v948
        %v950 = vpop.f32.mrb[0].mxu0
        %v951 = vadd.f32 0.0, %v950
        %952 = vmatprep.mubr.bf16.mxu0 0
        %953 = vmatmul.mubr.bf16.gmra.mrb[0].mxu0 %v619
        %v954 = vpop.f32.mrb[0].mxu0
        %v955 = vadd.f32 0.0, %v954
        %v956 = vpop.f32.mrb[0].mxu0
        %v957 = vadd.f32 0.0, %v956
        %v958 = vpop.f32.mrb[0].mxu0
        %v959 = vadd.f32 0.0, %v958
        %v960 = vpop.f32.mrb[0].mxu0
        %v961 = vadd.f32 0.0, %v960
        %962 = vmatprep.mubr.bf16.mxu0 0
        %963 = vmatmul.mubr.bf16.gmra.mrb[0].mxu0 %v620
        %v964 = vpop.f32.mrb[0].mxu0
        %v965 = vadd.f32 0.0, %v964
        %v966 = vpop.f32.mrb[0].mxu0
        %v967 = vadd.f32 0.0, %v966
        %v968 = vpop.f32.mrb[0].mxu0
        %v969 = vadd.f32 0.0, %v968
        %v970 = vpop.f32.mrb[0].mxu0
        %v971 = vadd.f32 0.0, %v970
        %972 = vmatprep.mubr.bf16.mxu0 0
        %973 = vmatmul.mubr.bf16.gmra.mrb[0].mxu0 %v621
        %v974 = vpop.f32.mrb[0].mxu0
        %v975 = vadd.f32 0.0, %v974
        %v976 = vpop.f32.mrb[0].mxu0
        %v977 = vadd.f32 0.0, %v976
        %v978 = vpop.f32.mrb[0].mxu0
        %v979 = vadd.f32 0.0, %v978
        %v980 = vpop.f32.mrb[0].mxu0
        %v981 = vadd.f32 0.0, %v980
        %982 = vdwg.mxu0
        %983 = vmatprep.subr.bf16.mxu0 %v817
        %984 = vmatpush1.bf16.msra.mxu0 %v816
        %985 = vmatprep.subr.bf16.mxu0 %v823
        %986 = vmatpush1.bf16.msra.mxu0 %v822
        %987 = vmatprep.subr.bf16.mxu0 %v829
        %988 = vmatpush1.bf16.msra.mxu0 %v828
        %989 = vmatprep.subr.bf16.mxu0 %v835
        %990 = vmatpush1.bf16.msra.mxu0 %v834
        %991 = vmatprep.subr.bf16.mxu0 %v841
        %992 = vmatpush1.bf16.msra.mxu0 %v840
        %993 = vmatprep.subr.bf16.mxu0 %v847
        %994 = vmatpush1.bf16.msra.mxu0 %v846
        %995 = vmatprep.subr.bf16.mxu0 %v853
        %996 = vmatpush1.bf16.msra.mxu0 %v852
        %997 = vmatprep.subr.bf16.mxu0 %v859
        %998 = vmatpush1.bf16.msra.mxu0 %v858
        %999 = vmatprep.subr.bf16.mxu0 0
        %1000 = vmatpush1.bf16.msra.mxu0 0
        %1001 = vmatprep.subr.bf16.mxu0 0
        %1002 = vmatpush1.bf16.msra.mxu0 0
        %1003 = vmatprep.subr.bf16.mxu0 0
        %1004 = vmatpush1.bf16.msra.mxu0 0
        %1005 = vmatprep.subr.bf16.mxu0 0
        %1006 = vmatpush1.bf16.msra.mxu0 0
        %1007 = vmatprep.subr.bf16.mxu0 0
        %1008 = vmatpush1.bf16.msra.mxu0 0
        %1009 = vmatprep.subr.bf16.mxu0 0
        %1010 = vmatpush1.bf16.msra.mxu0 0
        %1011 = vmatprep.subr.bf16.mxu0 0
        %1012 = vmatpush1.bf16.msra.mxu0 0
        %1013 = vmatprep.subr.bf16.mxu0 0
        %1014 = vmatpush1.bf16.msra.mxu0 0
        %1015 = vmatprep.mubr.bf16.mxu0 0
        %1016 = vmatmul.mubr.bf16.gmra.mrb[0].mxu0 %v618
        %v1017 = vpop.f32.mrb[0].mxu0
        %v1018 = vadd.f32 0.0, %v1017
        %v1019 = vpop.f32.mrb[0].mxu0
        %v1020 = vadd.f32 0.0, %v1019
        %v1021 = vpop.f32.mrb[0].mxu0
        %v1022 = vadd.f32 0.0, %v1021
        %v1023 = vpop.f32.mrb[0].mxu0
        %v1024 = vadd.f32 0.0, %v1023
        %1025 = vmatprep.mubr.bf16.mxu0 0
        %1026 = vmatmul.mubr.bf16.gmra.mrb[0].mxu0 %v619
        %v1027 = vpop.f32.mrb[0].mxu0
        %v1028 = vadd.f32 0.0, %v1027
        %v1029 = vpop.f32.mrb[0].mxu0
        %v1030 = vadd.f32 0.0, %v1029
        %v1031 = vpop.f32.mrb[0].mxu0
        %v1032 = vadd.f32 0.0, %v1031
        %v1033 = vpop.f32.mrb[0].mxu0
        %v1034 = vadd.f32 0.0, %v1033
        %1035 = vmatprep.mubr.bf16.mxu0 0
        %1036 = vmatmul.mubr.bf16.gmra.mrb[0].mxu0 %v620
        %v1037 = vpop.f32.mrb[0].mxu0
        %v1038 = vadd.f32 0.0, %v1037
        %v1039 = vpop.f32.mrb[0].mxu0
        %v1040 = vadd.f32 0.0, %v1039
        %v1041 = vpop.f32.mrb[0].mxu0
        %v1042 = vadd.f32 0.0, %v1041
        %v1043 = vpop.f32.mrb[0].mxu0
        %v1044 = vadd.f32 0.0, %v1043
        %1045 = vmatprep.mubr.bf16.mxu0 0
        %1046 = vmatmul.mubr.bf16.gmra.mrb[0].mxu0 %v621
        %v1047 = vpop.f32.mrb[0].mxu0
        %v1048 = vadd.f32 0.0, %v1047
        %v1049 = vpop.f32.mrb[0].mxu0
        %v1050 = vadd.f32 0.0, %v1049
        %v1051 = vpop.f32.mrb[0].mxu0
        %v1052 = vadd.f32 0.0, %v1051
        %v1053 = vpop.f32.mrb[0].mxu0
        %v1054 = vadd.f32 0.0, %v1053
        %1055 = vdwg.mxu0
        %1056 = vmatprep.subr.bf16.mxu0 %v819
        %1057 = vmatpush1.bf16.msra.mxu0 %v818
        %1058 = vmatprep.subr.bf16.mxu0 %v825
        %1059 = vmatpush1.bf16.msra.mxu0 %v824
        %1060 = vmatprep.subr.bf16.mxu0 %v831
        %1061 = vmatpush1.bf16.msra.mxu0 %v830
        %1062 = vmatprep.subr.bf16.mxu0 %v837
        %1063 = vmatpush1.bf16.msra.mxu0 %v836
        %1064 = vmatprep.subr.bf16.mxu0 %v843
        %1065 = vmatpush1.bf16.msra.mxu0 %v842
        %1066 = vmatprep.subr.bf16.mxu0 %v849
        %1067 = vmatpush1.bf16.msra.mxu0 %v848
        %1068 = vmatprep.subr.bf16.mxu0 %v855
        %1069 = vmatpush1.bf16.msra.mxu0 %v854
        %1070 = vmatprep.subr.bf16.mxu0 %v861
        %1071 = vmatpush1.bf16.msra.mxu0 %v860
        %1072 = vmatprep.subr.bf16.mxu0 0
        %1073 = vmatpush1.bf16.msra.mxu0 0
        %1074 = vmatprep.subr.bf16.mxu0 0
        %1075 = vmatpush1.bf16.msra.mxu0 0
        %1076 = vmatprep.subr.bf16.mxu0 0
        %1077 = vmatpush1.bf16.msra.mxu0 0
        %1078 = vmatprep.subr.bf16.mxu0 0
        %1079 = vmatpush1.bf16.msra.mxu0 0
        %1080 = vmatprep.subr.bf16.mxu0 0
        %1081 = vmatpush1.bf16.msra.mxu0 0
        %1082 = vmatprep.subr.bf16.mxu0 0
        %1083 = vmatpush1.bf16.msra.mxu0 0
        %1084 = vmatprep.subr.bf16.mxu0 0
        %1085 = vmatpush1.bf16.msra.mxu0 0
        %1086 = vmatprep.subr.bf16.mxu0 0
        %1087 = vmatpush1.bf16.msra.mxu0 0
        %1088 = vmatprep.mubr.bf16.mxu0 0
        %1089 = vmatmul.mubr.bf16.gmra.mrb[0].mxu0 %v618
        %v1090 = vpop.f32.mrb[0].mxu0
        %v1091 = vadd.f32 0.0, %v1090
        %v1092 = vpop.f32.mrb[0].mxu0
        %v1093 = vadd.f32 0.0, %v1092
        %v1094 = vpop.f32.mrb[0].mxu0
        %v1095 = vadd.f32 0.0, %v1094
        %v1096 = vpop.f32.mrb[0].mxu0
        %v1097 = vadd.f32 0.0, %v1096
        %1098 = vmatprep.mubr.bf16.mxu0 0
        %1099 = vmatmul.mubr.bf16.gmra.mrb[0].mxu0 %v619
        %v1100 = vpop.f32.mrb[0].mxu0
        %v1101 = vadd.f32 0.0, %v1100
        %v1102 = vpop.f32.mrb[0].mxu0
        %v1103 = vadd.f32 0.0, %v1102
        %v1104 = vpop.f32.mrb[0].mxu0
        %v1105 = vadd.f32 0.0, %v1104
        %v1106 = vpop.f32.mrb[0].mxu0
        %v1107 = vadd.f32 0.0, %v1106
        %1108 = vmatprep.mubr.bf16.mxu0 0
        %1109 = vmatmul.mubr.bf16.gmra.mrb[0].mxu0 %v620
        %v1110 = vpop.f32.mrb[0].mxu0
        %v1111 = vadd.f32 0.0, %v1110
        %v1112 = vpop.f32.mrb[0].mxu0
        %v1113 = vadd.f32 0.0, %v1112
        %v1114 = vpop.f32.mrb[0].mxu0
        %v1115 = vadd.f32 0.0, %v1114
        %v1116 = vpop.f32.mrb[0].mxu0
        %v1117 = vadd.f32 0.0, %v1116
        %1118 = vmatprep.mubr.bf16.mxu0 0
        %1119 = vmatmul.mubr.bf16.gmra.mrb[0].mxu0 %v621
        %v1120 = vpop.f32.mrb[0].mxu0
        %v1121 = vadd.f32 0.0, %v1120
        %v1122 = vpop.f32.mrb[0].mxu0
        %v1123 = vadd.f32 0.0, %v1122
        %v1124 = vpop.f32.mrb[0].mxu0
        %v1125 = vadd.f32 0.0, %v1124
        %v1126 = vpop.f32.mrb[0].mxu0
        %v1127 = vadd.f32 0.0, %v1126
        %1128 = vdwg.mxu0
        %v1129 = vlaneseq
        %v1130 = vshrl.u32 %v1129, 7
        %v1131 = vadd.s32 %v1130, 8
        %v1132 = vadd.s32 %v1130, 16
        %v1133 = vadd.s32 %v1130, 24
        %v1134 = vadd.s32 %v1130, 32
        %v1135 = vadd.s32 %v1130, 40
        %v1136 = vadd.s32 %v1130, 48
        %v1137 = vadd.s32 %v1130, 56
        %v1138 = vlaneseq
        %v1139 = vand.u32 %v1138, 127
        %vm1140 = vcmp.le.s32.totalorder %v1139, %v1130
        %vm1141 = vcmp.le.s32.totalorder %v1139, %v1131
        %vm1142 = vcmp.le.s32.totalorder %v1139, %v1132
        %vm1143 = vcmp.le.s32.totalorder %v1139, %v1133
        %vm1144 = vcmp.le.s32.totalorder %v1139, %v1134
        %vm1145 = vcmp.le.s32.totalorder %v1139, %v1135
        %vm1146 = vcmp.le.s32.totalorder %v1139, %v1136
        %vm1147 = vcmp.le.s32.totalorder %v1139, %v1137
        %1148 = vmatprep.subr.mxu0 0.0
        %1149 = vmatpush1.xpose.msra.mxu0 %v1018
        %1150 = vmatprep.subr.mxu0 0.0
        %1151 = vmatpush1.xpose.msra.mxu0 %v1022
        %1152 = vmatprep.subr.mxu0 0.0
        %1153 = vmatpush1.xpose.msra.mxu0 %v1028
        %1154 = vmatprep.subr.mxu0 0.0
        %1155 = vmatpush1.xpose.msra.mxu0 %v1032
        %1156 = vmatprep.subr.mxu0 0.0
        %1157 = vmatpush1.xpose.msra.mxu0 %v1038
        %1158 = vmatprep.subr.mxu0 0.0
        %1159 = vmatpush1.xpose.msra.mxu0 %v1042
        %1160 = vmatprep.subr.mxu0 0.0
        %1161 = vmatpush1.xpose.msra.mxu0 %v1048
        %1162 = vmatprep.subr.mxu0 0.0
        %1163 = vmatpush1.xpose.msra.mxu0 %v1052
        %1164 = vmatprep.subr.mxu0 0.0
        %1165 = vmatpush1.xpose.msra.mxu0 0.0
        %1166 = vmatprep.subr.mxu0 0.0
        %1167 = vmatpush1.xpose.msra.mxu0 0.0
        %1168 = vmatprep.subr.mxu0 0.0
        %1169 = vmatpush1.xpose.msra.mxu0 0.0
        %1170 = vmatprep.subr.mxu0 0.0
        %1171 = vmatpush1.xpose.msra.mxu0 0.0
        %1172 = vmatprep.subr.mxu0 0.0
        %1173 = vmatpush1.xpose.msra.mxu0 0.0
        %1174 = vmatprep.subr.mxu0 0.0
        %1175 = vmatpush1.xpose.msra.mxu0 0.0
        %1176 = vmatprep.subr.mxu0 0.0
        %1177 = vmatpush1.xpose.msra.mxu0 0.0
        %1178 = vmatprep.subr.mxu0 0.0
        %1179 = vmatpush1.xpose.msra.mxu0 0.0
        %1180 = vmatprep.subr.mxu0 0.0
        %1181 = vmatpush1.xpose.msra.mxu0 0.0
        %1182 = vmatprep.subr.mxu0 0.0
        %1183 = vmatpush1.xpose.msra.mxu0 0.0
        %1184 = vmatprep.subr.mxu0 0.0
        %1185 = vmatpush1.xpose.msra.mxu0 0.0
        %1186 = vmatprep.subr.mxu0 0.0
        %1187 = vmatpush1.xpose.msra.mxu0 0.0
        %1188 = vmatprep.subr.mxu0 0.0
        %1189 = vmatpush1.xpose.msra.mxu0 0.0
        %1190 = vmatprep.subr.mxu0 0.0
        %1191 = vmatpush1.xpose.msra.mxu0 0.0
        %1192 = vmatprep.subr.mxu0 0.0
        %1193 = vmatpush1.xpose.msra.mxu0 0.0
        %1194 = vmatprep.subr.mxu0 0.0
        %1195 = vmatpush1.xpose.msra.mxu0 0.0
        %1196 = vmatprep.subr.mxu0 0.0
        %1197 = vmatpush1.xpose.msra.mxu0 0.0
        %1198 = vmatprep.subr.mxu0 0.0
        %1199 = vmatpush1.xpose.msra.mxu0 0.0
        %1200 = vmatprep.subr.mxu0 0.0
        %1201 = vmatpush1.xpose.msra.mxu0 0.0
        %1202 = vmatprep.subr.mxu0 0.0
        %1203 = vmatpush1.xpose.msra.mxu0 0.0
        %1204 = vmatprep.subr.mxu0 0.0
        %1205 = vmatpush1.xpose.msra.mxu0 0.0
        %1206 = vmatprep.subr.mxu0 0.0
        %1207 = vmatpush1.xpose.msra.mxu0 0.0
        %1208 = vmatprep.subr.mxu0 0.0
        %1209 = vmatpush1.xpose.msra.mxu0 0.0
        %1210 = vmatprep.subr.mxu0 0.0
        %1211 = vmatpush1.xpose.msra.mxu0 0.0
        %1212 = vmatprep.mubr.f32.mxu0 0.0
        %1213 = vmatmul.mubr.f32.gmra.mrb[0].mxu0 %v945
        %v1214 = vpop.f32.mrb[0].mxu0
        %v1215 = vadd.f32 0.0, %v1214
        %v1216 = vpop.f32.mrb[0].mxu0
        %1217 = vmatprep.mubr.f32.mxu0 0.0
        %1218 = vmatmul.mubr.f32.gmra.mrb[0].mxu0 %v949
        %v1219 = vpop.f32.mrb[0].mxu0
        %v1220 = vadd.f32 0.0, %v1219
        %v1221 = vpop.f32.mrb[0].mxu0
        %1222 = vmatprep.mubr.f32.mxu0 0.0
        %1223 = vmatmul.mubr.f32.gmra.mrb[0].mxu0 %v955
        %v1224 = vpop.f32.mrb[0].mxu0
        %v1225 = vadd.f32 0.0, %v1224
        %v1226 = vpop.f32.mrb[0].mxu0
        %1227 = vmatprep.mubr.f32.mxu0 0.0
        %1228 = vmatmul.mubr.f32.gmra.mrb[0].mxu0 %v959
        %v1229 = vpop.f32.mrb[0].mxu0
        %v1230 = vadd.f32 0.0, %v1229
        %v1231 = vpop.f32.mrb[0].mxu0
        %1232 = vmatprep.mubr.f32.mxu0 0.0
        %1233 = vmatmul.mubr.f32.gmra.mrb[0].mxu0 %v965
        %v1234 = vpop.f32.mrb[0].mxu0
        %v1235 = vadd.f32 0.0, %v1234
        %v1236 = vpop.f32.mrb[0].mxu0
        %1237 = vmatprep.mubr.f32.mxu0 0.0
        %1238 = vmatmul.mubr.f32.gmra.mrb[0].mxu0 %v969
        %v1239 = vpop.f32.mrb[0].mxu0
        %v1240 = vadd.f32 0.0, %v1239
        %v1241 = vpop.f32.mrb[0].mxu0
        %1242 = vmatprep.mubr.f32.mxu0 0.0
        %1243 = vmatmul.mubr.f32.gmra.mrb[0].mxu0 %v975
        %v1244 = vpop.f32.mrb[0].mxu0
        %v1245 = vadd.f32 0.0, %v1244
        %v1246 = vpop.f32.mrb[0].mxu0
        %1247 = vmatprep.mubr.f32.mxu0 0.0
        %1248 = vmatmul.mubr.f32.gmra.mrb[0].mxu0 %v979
        %v1249 = vpop.f32.mrb[0].mxu0
        %v1250 = vadd.f32 0.0, %v1249
        %v1251 = vpop.f32.mrb[0].mxu0
        %1252 = vdwg.mxu0
        %v1253 = vmul.f32 %v1215, 0.088388346
        %v1254 = vmul.f32 %v1220, 0.088388346
        %v1255 = vmul.f32 %v1225, 0.088388346
        %v1256 = vmul.f32 %v1230, 0.088388346
        %v1257 = vmul.f32 %v1235, 0.088388346
        %v1258 = vmul.f32 %v1240, 0.088388346
        %v1259 = vmul.f32 %v1245, 0.088388346
        %v1260 = vmul.f32 %v1250, 0.088388346
        %v1261 = vsel %vm1140, %v1253, -1e+30
        %v1262 = vsel %vm1141, %v1254, -1e+30
        %v1263 = vsel %vm1142, %v1255, -1e+30
        %v1264 = vsel %vm1143, %v1256, -1e+30
        %v1265 = vsel %vm1144, %v1257, -1e+30
        %v1266 = vsel %vm1145, %v1258, -1e+30
        %v1267 = vsel %vm1146, %v1259, -1e+30
        %v1268 = vsel %vm1147, %v1260, -1e+30
        %vm1269 = vcmask 523264
        %v1270 = vsel %vm1269, %v1261, -inf
        %1271 = vmax.xlane.f32.xlu0 %v1270
        %v1272 = vpop.xlane.xlu0 %1271
        %v1273 = vsel %vm1269, %v1262, -inf
        %1274 = vmax.xlane.f32.xlu0 %v1273
        %v1275 = vpop.xlane.xlu0 %1274
        %v1276 = vsel %vm1269, %v1263, -inf
        %1277 = vmax.xlane.f32.xlu0 %v1276
        %v1278 = vpop.xlane.xlu0 %1277
        %v1279 = vsel %vm1269, %v1264, -inf
        %1280 = vmax.xlane.f32.xlu0 %v1279
        %v1281 = vpop.xlane.xlu0 %1280
        %v1282 = vsel %vm1269, %v1265, -inf
        %1283 = vmax.xlane.f32.xlu0 %v1282
        %v1284 = vpop.xlane.xlu0 %1283
        %v1285 = vsel %vm1269, %v1266, -inf
        %1286 = vmax.xlane.f32.xlu0 %v1285
        %v1287 = vpop.xlane.xlu0 %1286
        %v1288 = vsel %vm1269, %v1267, -inf
        %1289 = vmax.xlane.f32.xlu0 %v1288
        %v1290 = vpop.xlane.xlu0 %1289
        %v1291 = vsel %vm1269, %v1268, -inf
        %1292 = vmax.xlane.f32.xlu0 %v1291
        %v1293 = vpop.xlane.xlu0 %1292
        %v1294 = vsub.f32 %v1261, %v1272
        %v1295 = vsub.f32 %v1262, %v1275
        %v1296 = vsub.f32 %v1263, %v1278
        %v1297 = vsub.f32 %v1264, %v1281
        %v1298 = vsub.f32 %v1265, %v1284
        %v1299 = vsub.f32 %v1266, %v1287
        %v1300 = vsub.f32 %v1267, %v1290
        %v1301 = vsub.f32 %v1268, %v1293
        %v1302 = vmul.f32 %v1294, 1.442695
        %v1303 = vpow.pop %v1302
        %v1304 = vmul.f32 %v1295, 1.442695
        %v1305 = vpow.pop %v1304
        %v1306 = vmul.f32 %v1296, 1.442695
        %v1307 = vpow.pop %v1306
        %v1308 = vmul.f32 %v1297, 1.442695
        %v1309 = vpow.pop %v1308
        %v1310 = vmul.f32 %v1298, 1.442695
        %v1311 = vpow.pop %v1310
        %v1312 = vmul.f32 %v1299, 1.442695
        %v1313 = vpow.pop %v1312
        %v1314 = vmul.f32 %v1300, 1.442695
        %v1315 = vpow.pop %v1314
        %v1316 = vmul.f32 %v1301, 1.442695
        %v1317 = vpow.pop %v1316
        %v1318 = vsel %vm1269, %v1303, 0.0
        %1319 = vadd.xlane.f32.xlu0 %v1318
        %v1320 = vpop.xlane.xlu0 %1319
        %v1321 = vsel %vm1269, %v1305, 0.0
        %1322 = vadd.xlane.f32.xlu0 %v1321
        %v1323 = vpop.xlane.xlu0 %1322
        %v1324 = vsel %vm1269, %v1307, 0.0
        %1325 = vadd.xlane.f32.xlu0 %v1324
        %v1326 = vpop.xlane.xlu0 %1325
        %v1327 = vsel %vm1269, %v1309, 0.0
        %1328 = vadd.xlane.f32.xlu0 %v1327
        %v1329 = vpop.xlane.xlu0 %1328
        %v1330 = vsel %vm1269, %v1311, 0.0
        %1331 = vadd.xlane.f32.xlu0 %v1330
        %v1332 = vpop.xlane.xlu0 %1331
        %v1333 = vsel %vm1269, %v1313, 0.0
        %1334 = vadd.xlane.f32.xlu0 %v1333
        %v1335 = vpop.xlane.xlu0 %1334
        %v1336 = vsel %vm1269, %v1315, 0.0
        %1337 = vadd.xlane.f32.xlu0 %v1336
        %v1338 = vpop.xlane.xlu0 %1337
        %v1339 = vsel %vm1269, %v1317, 0.0
        %1340 = vadd.xlane.f32.xlu0 %v1339
        %v1341 = vpop.xlane.xlu0 %1340
        %v1342 = vrcp.pop %v1320
        %v1343 = vrcp.pop %v1323
        %v1344 = vrcp.pop %v1326
        %v1345 = vrcp.pop %v1329
        %v1346 = vrcp.pop %v1332
        %v1347 = vrcp.pop %v1335
        %v1348 = vrcp.pop %v1338
        %v1349 = vrcp.pop %v1341
        %v1350 = vmul.f32 %v1303, %v1342
        %v1351 = vmul.f32 %v1305, %v1343
        %v1352 = vmul.f32 %v1307, %v1344
        %v1353 = vmul.f32 %v1309, %v1345
        %v1354 = vmul.f32 %v1311, %v1346
        %v1355 = vmul.f32 %v1313, %v1347
        %v1356 = vmul.f32 %v1315, %v1348
        %v1357 = vmul.f32 %v1317, %v1349
        %v1359 = vsel %vm1269, %v1350, 0
        %v1362 = vsel %vm1269, %v1351, 0
        %v1365 = vsel %vm1269, %v1352, 0
        %v1368 = vsel %vm1269, %v1353, 0
        %v1371 = vsel %vm1269, %v1354, 0
        %v1374 = vsel %vm1269, %v1355, 0
        %v1377 = vsel %vm1269, %v1356, 0
        %v1380 = vsel %vm1269, %v1357, 0
        %1382 = vmatprep.subr.mxu0 0.0
        %1383 = vmatpush1.msra.mxu0 %v1091
        %1384 = vmatprep.subr.mxu0 0.0
        %1385 = vmatpush1.msra.mxu0 %v1095
        %1386 = vmatprep.subr.mxu0 0.0
        %1387 = vmatpush1.msra.mxu0 %v1101
        %1388 = vmatprep.subr.mxu0 0.0
        %1389 = vmatpush1.msra.mxu0 %v1105
        %1390 = vmatprep.subr.mxu0 0.0
        %1391 = vmatpush1.msra.mxu0 %v1111
        %1392 = vmatprep.subr.mxu0 0.0
        %1393 = vmatpush1.msra.mxu0 %v1115
        %1394 = vmatprep.subr.mxu0 0.0
        %1395 = vmatpush1.msra.mxu0 %v1121
        %1396 = vmatprep.subr.mxu0 0.0
        %1397 = vmatpush1.msra.mxu0 %v1125
        %1398 = vmatprep.subr.mxu0 0.0
        %1399 = vmatpush1.msra.mxu0 0.0
        %1400 = vmatprep.subr.mxu0 0.0
        %1401 = vmatpush1.msra.mxu0 0.0
        %1402 = vmatprep.subr.mxu0 0.0
        %1403 = vmatpush1.msra.mxu0 0.0
        %1404 = vmatprep.subr.mxu0 0.0
        %1405 = vmatpush1.msra.mxu0 0.0
        %1406 = vmatprep.subr.mxu0 0.0
        %1407 = vmatpush1.msra.mxu0 0.0
        %1408 = vmatprep.subr.mxu0 0.0
        %1409 = vmatpush1.msra.mxu0 0.0
        %1410 = vmatprep.subr.mxu0 0.0
        %1411 = vmatpush1.msra.mxu0 0.0
        %1412 = vmatprep.subr.mxu0 0.0
        %1413 = vmatpush1.msra.mxu0 0.0
        %1414 = vmatprep.subr.mxu0 0.0
        %1415 = vmatpush1.msra.mxu0 0.0
        %1416 = vmatprep.subr.mxu0 0.0
        %1417 = vmatpush1.msra.mxu0 0.0
        %1418 = vmatprep.subr.mxu0 0.0
        %1419 = vmatpush1.msra.mxu0 0.0
        %1420 = vmatprep.subr.mxu0 0.0
        %1421 = vmatpush1.msra.mxu0 0.0
        %1422 = vmatprep.subr.mxu0 0.0
        %1423 = vmatpush1.msra.mxu0 0.0
        %1424 = vmatprep.subr.mxu0 0.0
        %1425 = vmatpush1.msra.mxu0 0.0
        %1426 = vmatprep.subr.mxu0 0.0
        %1427 = vmatpush1.msra.mxu0 0.0
        %1428 = vmatprep.subr.mxu0 0.0
        %1429 = vmatpush1.msra.mxu0 0.0
        %1430 = vmatprep.subr.mxu0 0.0
        %1431 = vmatpush1.msra.mxu0 0.0
        %1432 = vmatprep.subr.mxu0 0.0
        %1433 = vmatpush1.msra.mxu0 0.0
        %1434 = vmatprep.subr.mxu0 0.0
        %1435 = vmatpush1.msra.mxu0 0.0
        %1436 = vmatprep.subr.mxu0 0.0
        %1437 = vmatpush1.msra.mxu0 0.0
        %1438 = vmatprep.subr.mxu0 0.0
        %1439 = vmatpush1.msra.mxu0 0.0
        %1440 = vmatprep.subr.mxu0 0.0
        %1441 = vmatpush1.msra.mxu0 0.0
        %1442 = vmatprep.subr.mxu0 0.0
        %1443 = vmatpush1.msra.mxu0 0.0
        %1444 = vmatprep.subr.mxu0 0.0
        %1445 = vmatpush1.msra.mxu0 0.0
        %1446 = vmatprep.mubr.f32.mxu0 0.0
        %1447 = vmatmul.mubr.f32.gmra.mrb[0].mxu0 %v1359
        %v1448 = vpop.f32.mrb[0].mxu0
        %v1449 = vadd.f32 0.0, %v1448
        %v1450 = vpop.f32.mrb[0].mxu0
        %1451 = vmatprep.mubr.f32.mxu0 0.0
        %1452 = vmatmul.mubr.f32.gmra.mrb[0].mxu0 %v1362
        %v1453 = vpop.f32.mrb[0].mxu0
        %v1454 = vadd.f32 0.0, %v1453
        %v1455 = vpop.f32.mrb[0].mxu0
        %1456 = vmatprep.mubr.f32.mxu0 0.0
        %1457 = vmatmul.mubr.f32.gmra.mrb[0].mxu0 %v1365
        %v1458 = vpop.f32.mrb[0].mxu0
        %v1459 = vadd.f32 0.0, %v1458
        %v1460 = vpop.f32.mrb[0].mxu0
        %1461 = vmatprep.mubr.f32.mxu0 0.0
        %1462 = vmatmul.mubr.f32.gmra.mrb[0].mxu0 %v1368
        %v1463 = vpop.f32.mrb[0].mxu0
        %v1464 = vadd.f32 0.0, %v1463
        %v1465 = vpop.f32.mrb[0].mxu0
        %1466 = vmatprep.mubr.f32.mxu0 0.0
        %1467 = vmatmul.mubr.f32.gmra.mrb[0].mxu0 %v1371
        %v1468 = vpop.f32.mrb[0].mxu0
        %v1469 = vadd.f32 0.0, %v1468
        %v1470 = vpop.f32.mrb[0].mxu0
        %1471 = vmatprep.mubr.f32.mxu0 0.0
        %1472 = vmatmul.mubr.f32.gmra.mrb[0].mxu0 %v1374
        %v1473 = vpop.f32.mrb[0].mxu0
        %v1474 = vadd.f32 0.0, %v1473
        %v1475 = vpop.f32.mrb[0].mxu0
        %1476 = vmatprep.mubr.f32.mxu0 0.0
        %1477 = vmatmul.mubr.f32.gmra.mrb[0].mxu0 %v1377
        %v1478 = vpop.f32.mrb[0].mxu0
        %v1479 = vadd.f32 0.0, %v1478
        %v1480 = vpop.f32.mrb[0].mxu0
        %1481 = vmatprep.mubr.f32.mxu0 0.0
        %1482 = vmatmul.mubr.f32.gmra.mrb[0].mxu0 %v1380
        %v1483 = vpop.f32.mrb[0].mxu0
        %v1484 = vadd.f32 0.0, %v1483
        %v1485 = vpop.f32.mrb[0].mxu0
        %1486 = vdwg.mxu0
        %v1487 = vpack.c.bf16 %v1454, %v1449
        %v1488 = vpack.c.bf16 %v1464, %v1459
        %v1489 = vpack.c.bf16 %v1474, %v1469
        %v1490 = vpack.c.bf16 %v1484, %v1479
        %v1491 = vld [vmem:[#allocation8] sm:$0xf]
        %v1492 = vld [vmem:[#allocation8 + $0x4] sm:$0xf]
        %v1493 = vld [vmem:[#allocation8 + $0x8] sm:$0xf]
        %v1494 = vld [vmem:[#allocation8 + $0xc] sm:$0xf]
        %v1495 = vld [vmem:[#allocation8 + $0x10] sm:$0xf]
        %v1496 = vld [vmem:[#allocation8 + $0x14] sm:$0xf]
        %v1497 = vld [vmem:[#allocation8 + $0x18] sm:$0xf]
        %v1498 = vld [vmem:[#allocation8 + $0x1c] sm:$0xf]
        %v1499 = vld [vmem:[#allocation8 + $0x20] sm:$0xf]
        %v1500 = vld [vmem:[#allocation8 + $0x24] sm:$0xf]
        %v1501 = vld [vmem:[#allocation8 + $0x28] sm:$0xf]
        %v1502 = vld [vmem:[#allocation8 + $0x2c] sm:$0xf]
        %v1503 = vld [vmem:[#allocation8 + $0x30] sm:$0xf]
        %v1504 = vld [vmem:[#allocation8 + $0x34] sm:$0xf]
        %v1505 = vld [vmem:[#allocation8 + $0x38] sm:$0xf]
        %v1506 = vld [vmem:[#allocation8 + $0x3c] sm:$0xf]
        %1507 = vmatprep.subr.mxu0 0.0
        %1508 = vmatpush1.xpose.msra.mxu0 %v1020
        %1509 = vmatprep.subr.mxu0 0.0
        %1510 = vmatpush1.xpose.msra.mxu0 %v1024
        %1511 = vmatprep.subr.mxu0 0.0
        %1512 = vmatpush1.xpose.msra.mxu0 %v1030
        %1513 = vmatprep.subr.mxu0 0.0
        %1514 = vmatpush1.xpose.msra.mxu0 %v1034
        %1515 = vmatprep.subr.mxu0 0.0
        %1516 = vmatpush1.xpose.msra.mxu0 %v1040
        %1517 = vmatprep.subr.mxu0 0.0
        %1518 = vmatpush1.xpose.msra.mxu0 %v1044
        %1519 = vmatprep.subr.mxu0 0.0
        %1520 = vmatpush1.xpose.msra.mxu0 %v1050
        %1521 = vmatprep.subr.mxu0 0.0
        %1522 = vmatpush1.xpose.msra.mxu0 %v1054
        %1523 = vmatprep.subr.mxu0 0.0
        %1524 = vmatpush1.xpose.msra.mxu0 0.0
        %1525 = vmatprep.subr.mxu0 0.0
        %1526 = vmatpush1.xpose.msra.mxu0 0.0
        %1527 = vmatprep.subr.mxu0 0.0
        %1528 = vmatpush1.xpose.msra.mxu0 0.0
        %1529 = vmatprep.subr.mxu0 0.0
        %1530 = vmatpush1.xpose.msra.mxu0 0.0
        %1531 = vmatprep.subr.mxu0 0.0
        %1532 = vmatpush1.xpose.msra.mxu0 0.0
        %1533 = vmatprep.subr.mxu0 0.0
        %1534 = vmatpush1.xpose.msra.mxu0 0.0
        %1535 = vmatprep.subr.mxu0 0.0
        %1536 = vmatpush1.xpose.msra.mxu0 0.0
        %1537 = vmatprep.subr.mxu0 0.0
        %1538 = vmatpush1.xpose.msra.mxu0 0.0
        %1539 = vmatprep.subr.mxu0 0.0
        %1540 = vmatpush1.xpose.msra.mxu0 0.0
        %1541 = vmatprep.subr.mxu0 0.0
        %1542 = vmatpush1.xpose.msra.mxu0 0.0
        %1543 = vmatprep.subr.mxu0 0.0
        %1544 = vmatpush1.xpose.msra.mxu0 0.0
        %1545 = vmatprep.subr.mxu0 0.0
        %1546 = vmatpush1.xpose.msra.mxu0 0.0
        %1547 = vmatprep.subr.mxu0 0.0
        %1548 = vmatpush1.xpose.msra.mxu0 0.0
        %1549 = vmatprep.subr.mxu0 0.0
        %1550 = vmatpush1.xpose.msra.mxu0 0.0
        %1551 = vmatprep.subr.mxu0 0.0
        %1552 = vmatpush1.xpose.msra.mxu0 0.0
        %1553 = vmatprep.subr.mxu0 0.0
        %1554 = vmatpush1.xpose.msra.mxu0 0.0
        %1555 = vmatprep.subr.mxu0 0.0
        %1556 = vmatpush1.xpose.msra.mxu0 0.0
        %1557 = vmatprep.subr.mxu0 0.0
        %1558 = vmatpush1.xpose.msra.mxu0 0.0
        %1559 = vmatprep.subr.mxu0 0.0
        %1560 = vmatpush1.xpose.msra.mxu0 0.0
        %1561 = vmatprep.subr.mxu0 0.0
        %1562 = vmatpush1.xpose.msra.mxu0 0.0
        %1563 = vmatprep.subr.mxu0 0.0
        %1564 = vmatpush1.xpose.msra.mxu0 0.0
        %1565 = vmatprep.subr.mxu0 0.0
        %1566 = vmatpush1.xpose.msra.mxu0 0.0
        %1567 = vmatprep.subr.mxu0 0.0
        %1568 = vmatpush1.xpose.msra.mxu0 0.0
        %1569 = vmatprep.subr.mxu0 0.0
        %1570 = vmatpush1.xpose.msra.mxu0 0.0
        %1571 = vmatprep.mubr.f32.mxu0 0.0
        %1572 = vmatmul.mubr.f32.gmra.mrb[0].mxu0 %v947
        %v1573 = vpop.f32.mrb[0].mxu0
        %v1574 = vadd.f32 0.0, %v1573
        %v1575 = vpop.f32.mrb[0].mxu0
        %1576 = vmatprep.mubr.f32.mxu0 0.0
        %1577 = vmatmul.mubr.f32.gmra.mrb[0].mxu0 %v951
        %v1578 = vpop.f32.mrb[0].mxu0
        %v1579 = vadd.f32 0.0, %v1578
        %v1580 = vpop.f32.mrb[0].mxu0
        %1581 = vmatprep.mubr.f32.mxu0 0.0
        %1582 = vmatmul.mubr.f32.gmra.mrb[0].mxu0 %v957
        %v1583 = vpop.f32.mrb[0].mxu0
        %v1584 = vadd.f32 0.0, %v1583
        %v1585 = vpop.f32.mrb[0].mxu0
        %1586 = vmatprep.mubr.f32.mxu0 0.0
        %1587 = vmatmul.mubr.f32.gmra.mrb[0].mxu0 %v961
        %v1588 = vpop.f32.mrb[0].mxu0
        %v1589 = vadd.f32 0.0, %v1588
        %v1590 = vpop.f32.mrb[0].mxu0
        %1591 = vmatprep.mubr.f32.mxu0 0.0
        %1592 = vmatmul.mubr.f32.gmra.mrb[0].mxu0 %v967
        %v1593 = vpop.f32.mrb[0].mxu0
        %v1594 = vadd.f32 0.0, %v1593
        %v1595 = vpop.f32.mrb[0].mxu0
        %1596 = vmatprep.mubr.f32.mxu0 0.0
        %1597 = vmatmul.mubr.f32.gmra.mrb[0].mxu0 %v971
        %v1598 = vpop.f32.mrb[0].mxu0
        %v1599 = vadd.f32 0.0, %v1598
        %v1600 = vpop.f32.mrb[0].mxu0
        %1601 = vmatprep.mubr.f32.mxu0 0.0
        %1602 = vmatmul.mubr.f32.gmra.mrb[0].mxu0 %v977
        %v1603 = vpop.f32.mrb[0].mxu0
        %v1604 = vadd.f32 0.0, %v1603
        %v1605 = vpop.f32.mrb[0].mxu0
        %1606 = vmatprep.mubr.f32.mxu0 0.0
        %1607 = vmatmul.mubr.f32.gmra.mrb[0].mxu0 %v981
        %v1608 = vpop.f32.mrb[0].mxu0
        %v1609 = vadd.f32 0.0, %v1608
        %v1610 = vpop.f32.mrb[0].mxu0
        %1611 = vdwg.mxu0
        %v1612 = vmul.f32 %v1574, 0.088388346
        %v1613 = vmul.f32 %v1579, 0.088388346
        %v1614 = vmul.f32 %v1584, 0.088388346
        %v1615 = vmul.f32 %v1589, 0.088388346
        %v1616 = vmul.f32 %v1594, 0.088388346
        %v1617 = vmul.f32 %v1599, 0.088388346
        %v1618 = vmul.f32 %v1604, 0.088388346
        %v1619 = vmul.f32 %v1609, 0.088388346
        %v1620 = vsel %vm1140, %v1612, -1e+30
        %v1621 = vsel %vm1141, %v1613, -1e+30
        %v1622 = vsel %vm1142, %v1614, -1e+30
        %v1623 = vsel %vm1143, %v1615, -1e+30
        %v1624 = vsel %vm1144, %v1616, -1e+30
        %v1625 = vsel %vm1145, %v1617, -1e+30
        %v1626 = vsel %vm1146, %v1618, -1e+30
        %v1627 = vsel %vm1147, %v1619, -1e+30
        %v1628 = vsel %vm1269, %v1620, -inf
        %1629 = vmax.xlane.f32.xlu0 %v1628
        %v1630 = vpop.xlane.xlu0 %1629
        %v1631 = vsel %vm1269, %v1621, -inf
        %1632 = vmax.xlane.f32.xlu0 %v1631
        %v1633 = vpop.xlane.xlu0 %1632
        %v1634 = vsel %vm1269, %v1622, -inf
        %1635 = vmax.xlane.f32.xlu0 %v1634
        %v1636 = vpop.xlane.xlu0 %1635
        %v1637 = vsel %vm1269, %v1623, -inf
        %1638 = vmax.xlane.f32.xlu0 %v1637
        %v1639 = vpop.xlane.xlu0 %1638
        %v1640 = vsel %vm1269, %v1624, -inf
        %1641 = vmax.xlane.f32.xlu0 %v1640
        %v1642 = vpop.xlane.xlu0 %1641
        %v1643 = vsel %vm1269, %v1625, -inf
        %1644 = vmax.xlane.f32.xlu0 %v1643
        %v1645 = vpop.xlane.xlu0 %1644
        %v1646 = vsel %vm1269, %v1626, -inf
        %1647 = vmax.xlane.f32.xlu0 %v1646
        %v1648 = vpop.xlane.xlu0 %1647
        %v1649 = vsel %vm1269, %v1627, -inf
        %1650 = vmax.xlane.f32.xlu0 %v1649
        %v1651 = vpop.xlane.xlu0 %1650
        %v1652 = vsub.f32 %v1620, %v1630
        %v1653 = vsub.f32 %v1621, %v1633
        %v1654 = vsub.f32 %v1622, %v1636
        %v1655 = vsub.f32 %v1623, %v1639
        %v1656 = vsub.f32 %v1624, %v1642
        %v1657 = vsub.f32 %v1625, %v1645
        %v1658 = vsub.f32 %v1626, %v1648
        %v1659 = vsub.f32 %v1627, %v1651
        %v1660 = vmul.f32 %v1652, 1.442695
        %v1661 = vpow.pop %v1660
        %v1662 = vmul.f32 %v1653, 1.442695
        %v1663 = vpow.pop %v1662
        %v1664 = vmul.f32 %v1654, 1.442695
        %v1665 = vpow.pop %v1664
        %v1666 = vmul.f32 %v1655, 1.442695
        %v1667 = vpow.pop %v1666
        %v1668 = vmul.f32 %v1656, 1.442695
        %v1669 = vpow.pop %v1668
        %v1670 = vmul.f32 %v1657, 1.442695
        %v1671 = vpow.pop %v1670
        %v1672 = vmul.f32 %v1658, 1.442695
        %v1673 = vpow.pop %v1672
        %v1674 = vmul.f32 %v1659, 1.442695
        %v1675 = vpow.pop %v1674
        %v1676 = vsel %vm1269, %v1661, 0.0
        %1677 = vadd.xlane.f32.xlu0 %v1676
        %v1678 = vpop.xlane.xlu0 %1677
        %v1679 = vsel %vm1269, %v1663, 0.0
        %1680 = vadd.xlane.f32.xlu0 %v1679
        %v1681 = vpop.xlane.xlu0 %1680
        %v1682 = vsel %vm1269, %v1665, 0.0
        %1683 = vadd.xlane.f32.xlu0 %v1682
        %v1684 = vpop.xlane.xlu0 %1683
        %v1685 = vsel %vm1269, %v1667, 0.0
        %1686 = vadd.xlane.f32.xlu0 %v1685
        %v1687 = vpop.xlane.xlu0 %1686
        %v1688 = vsel %vm1269, %v1669, 0.0
        %1689 = vadd.xlane.f32.xlu0 %v1688
        %v1690 = vpop.xlane.xlu0 %1689
        %v1691 = vsel %vm1269, %v1671, 0.0
        %1692 = vadd.xlane.f32.xlu0 %v1691
        %v1693 = vpop.xlane.xlu0 %1692
        %v1694 = vsel %vm1269, %v1673, 0.0
        %1695 = vadd.xlane.f32.xlu0 %v1694
        %v1696 = vpop.xlane.xlu0 %1695
        %v1697 = vsel %vm1269, %v1675, 0.0
        %1698 = vadd.xlane.f32.xlu0 %v1697
        %v1699 = vpop.xlane.xlu0 %1698
        %v1700 = vrcp.pop %v1678
        %v1701 = vrcp.pop %v1681
        %v1702 = vrcp.pop %v1684
        %v1703 = vrcp.pop %v1687
        %v1704 = vrcp.pop %v1690
        %v1705 = vrcp.pop %v1693
        %v1706 = vrcp.pop %v1696
        %v1707 = vrcp.pop %v1699
        %v1708 = vmul.f32 %v1661, %v1700
        %v1709 = vmul.f32 %v1663, %v1701
        %v1710 = vmul.f32 %v1665, %v1702
        %v1711 = vmul.f32 %v1667, %v1703
        %v1712 = vmul.f32 %v1669, %v1704
        %v1713 = vmul.f32 %v1671, %v1705
        %v1714 = vmul.f32 %v1673, %v1706
        %v1715 = vmul.f32 %v1675, %v1707
        %v1717 = vsel %vm1269, %v1708, 0
        %v1720 = vsel %vm1269, %v1709, 0
        %v1723 = vsel %vm1269, %v1710, 0
        %v1726 = vsel %vm1269, %v1711, 0
        %v1729 = vsel %vm1269, %v1712, 0
        %v1732 = vsel %vm1269, %v1713, 0
        %v1735 = vsel %vm1269, %v1714, 0
        %v1738 = vsel %vm1269, %v1715, 0
        %1740 = vmatprep.subr.mxu0 0.0
        %1741 = vmatpush1.msra.mxu0 %v1093
        %1742 = vmatprep.subr.mxu0 0.0
        %1743 = vmatpush1.msra.mxu0 %v1097
        %1744 = vmatprep.subr.mxu0 0.0
        %1745 = vmatpush1.msra.mxu0 %v1103
        %1746 = vmatprep.subr.mxu0 0.0
        %1747 = vmatpush1.msra.mxu0 %v1107
        %1748 = vmatprep.subr.mxu0 0.0
        %1749 = vmatpush1.msra.mxu0 %v1113
        %1750 = vmatprep.subr.mxu0 0.0
        %1751 = vmatpush1.msra.mxu0 %v1117
        %1752 = vmatprep.subr.mxu0 0.0
        %1753 = vmatpush1.msra.mxu0 %v1123
        %1754 = vmatprep.subr.mxu0 0.0
        %1755 = vmatpush1.msra.mxu0 %v1127
        %1756 = vmatprep.subr.mxu0 0.0
        %1757 = vmatpush1.msra.mxu0 0.0
        %1758 = vmatprep.subr.mxu0 0.0
        %1759 = vmatpush1.msra.mxu0 0.0
        %1760 = vmatprep.subr.mxu0 0.0
        %1761 = vmatpush1.msra.mxu0 0.0
        %1762 = vmatprep.subr.mxu0 0.0
        %1763 = vmatpush1.msra.mxu0 0.0
        %1764 = vmatprep.subr.mxu0 0.0
        %1765 = vmatpush1.msra.mxu0 0.0
        %1766 = vmatprep.subr.mxu0 0.0
        %1767 = vmatpush1.msra.mxu0 0.0
        %1768 = vmatprep.subr.mxu0 0.0
        %1769 = vmatpush1.msra.mxu0 0.0
        %1770 = vmatprep.subr.mxu0 0.0
        %1771 = vmatpush1.msra.mxu0 0.0
        %1772 = vmatprep.subr.mxu0 0.0
        %1773 = vmatpush1.msra.mxu0 0.0
        %1774 = vmatprep.subr.mxu0 0.0
        %1775 = vmatpush1.msra.mxu0 0.0
        %1776 = vmatprep.subr.mxu0 0.0
        %1777 = vmatpush1.msra.mxu0 0.0
        %1778 = vmatprep.subr.mxu0 0.0
        %1779 = vmatpush1.msra.mxu0 0.0
        %1780 = vmatprep.subr.mxu0 0.0
        %1781 = vmatpush1.msra.mxu0 0.0
        %1782 = vmatprep.subr.mxu0 0.0
        %1783 = vmatpush1.msra.mxu0 0.0
        %1784 = vmatprep.subr.mxu0 0.0
        %1785 = vmatpush1.msra.mxu0 0.0
        %1786 = vmatprep.subr.mxu0 0.0
        %1787 = vmatpush1.msra.mxu0 0.0
        %1788 = vmatprep.subr.mxu0 0.0
        %1789 = vmatpush1.msra.mxu0 0.0
        %1790 = vmatprep.subr.mxu0 0.0
        %1791 = vmatpush1.msra.mxu0 0.0
        %1792 = vmatprep.subr.mxu0 0.0
        %1793 = vmatpush1.msra.mxu0 0.0
        %1794 = vmatprep.subr.mxu0 0.0
        %1795 = vmatpush1.msra.mxu0 0.0
        %1796 = vmatprep.subr.mxu0 0.0
        %1797 = vmatpush1.msra.mxu0 0.0
        %1798 = vmatprep.subr.mxu0 0.0
        %1799 = vmatpush1.msra.mxu0 0.0
        %1800 = vmatprep.subr.mxu0 0.0
        %1801 = vmatpush1.msra.mxu0 0.0
        %1802 = vmatprep.subr.mxu0 0.0
        %1803 = vmatpush1.msra.mxu0 0.0
        %1804 = vmatprep.mubr.f32.mxu0 0.0
        %1805 = vmatmul.mubr.f32.gmra.mrb[0].mxu0 %v1717
        %v1806 = vpop.f32.mrb[0].mxu0
        %v1807 = vadd.f32 0.0, %v1806
        %v1808 = vpop.f32.mrb[0].mxu0
        %1809 = vmatprep.mubr.f32.mxu0 0.0
        %1810 = vmatmul.mubr.f32.gmra.mrb[0].mxu0 %v1720
        %v1811 = vpop.f32.mrb[0].mxu0
        %v1812 = vadd.f32 0.0, %v1811
        %v1813 = vpop.f32.mrb[0].mxu0
        %1814 = vmatprep.mubr.f32.mxu0 0.0
        %1815 = vmatmul.mubr.f32.gmra.mrb[0].mxu0 %v1723
        %v1816 = vpop.f32.mrb[0].mxu0
        %v1817 = vadd.f32 0.0, %v1816
        %v1818 = vpop.f32.mrb[0].mxu0
        %1819 = vmatprep.mubr.f32.mxu0 0.0
        %1820 = vmatmul.mubr.f32.gmra.mrb[0].mxu0 %v1726
        %v1821 = vpop.f32.mrb[0].mxu0
        %v1822 = vadd.f32 0.0, %v1821
        %v1823 = vpop.f32.mrb[0].mxu0
        %1824 = vmatprep.mubr.f32.mxu0 0.0
        %1825 = vmatmul.mubr.f32.gmra.mrb[0].mxu0 %v1729
        %v1826 = vpop.f32.mrb[0].mxu0
        %v1827 = vadd.f32 0.0, %v1826
        %v1828 = vpop.f32.mrb[0].mxu0
        %1829 = vmatprep.mubr.f32.mxu0 0.0
        %1830 = vmatmul.mubr.f32.gmra.mrb[0].mxu0 %v1732
        %v1831 = vpop.f32.mrb[0].mxu0
        %v1832 = vadd.f32 0.0, %v1831
        %v1833 = vpop.f32.mrb[0].mxu0
        %1834 = vmatprep.mubr.f32.mxu0 0.0
        %1835 = vmatmul.mubr.f32.gmra.mrb[0].mxu0 %v1735
        %v1836 = vpop.f32.mrb[0].mxu0
        %v1837 = vadd.f32 0.0, %v1836
        %v1838 = vpop.f32.mrb[0].mxu0
        %1839 = vmatprep.mubr.f32.mxu0 0.0
        %1840 = vmatmul.mubr.f32.gmra.mrb[0].mxu0 %v1738
        %v1841 = vpop.f32.mrb[0].mxu0
        %v1842 = vadd.f32 0.0, %v1841
        %v1843 = vpop.f32.mrb[0].mxu0
        %1844 = vdwg.mxu0
        %v1845 = vpack.c.bf16 %v1812, %v1807
        %v1846 = vpack.c.bf16 %v1822, %v1817
        %v1847 = vpack.c.bf16 %v1832, %v1827
        %v1848 = vpack.c.bf16 %v1842, %v1837
        %v1849 = vld [vmem:[#allocation8 + $0x40] sm:$0xf]
        %v1850 = vld [vmem:[#allocation8 + $0x44] sm:$0xf]
        %v1851 = vld [vmem:[#allocation8 + $0x48] sm:$0xf]
        %v1852 = vld [vmem:[#allocation8 + $0x4c] sm:$0xf]
        %v1853 = vld [vmem:[#allocation8 + $0x50] sm:$0xf]
        %v1854 = vld [vmem:[#allocation8 + $0x54] sm:$0xf]
        %v1855 = vld [vmem:[#allocation8 + $0x58] sm:$0xf]
        %v1856 = vld [vmem:[#allocation8 + $0x5c] sm:$0xf]
        %v1857 = vld [vmem:[#allocation8 + $0x60] sm:$0xf]
        %v1858 = vld [vmem:[#allocation8 + $0x64] sm:$0xf]
        %v1859 = vld [vmem:[#allocation8 + $0x68] sm:$0xf]
        %v1860 = vld [vmem:[#allocation8 + $0x6c] sm:$0xf]
        %v1861 = vld [vmem:[#allocation8 + $0x70] sm:$0xf]
        %v1862 = vld [vmem:[#allocation8 + $0x74] sm:$0xf]
        %v1863 = vld [vmem:[#allocation8 + $0x78] sm:$0xf]
        %v1864 = vld [vmem:[#allocation8 + $0x7c] sm:$0xf]
        %v1881 = vunpack.c.l.b16 %v1849
        %v1882 = vunpack.c.l.b16 %v1850
        %v1883 = vunpack.c.l.b16 %v1851
        %v1884 = vunpack.c.l.b16 %v1852
        %v1885 = vunpack.c.l.b16 %v1853
        %v1886 = vunpack.c.l.b16 %v1854
        %v1887 = vunpack.c.l.b16 %v1855
        %v1888 = vunpack.c.l.b16 %v1856
        %v1889 = vunpack.c.l.b16 %v1857
        %v1890 = vunpack.c.l.b16 %v1858
        %v1891 = vunpack.c.l.b16 %v1859
        %v1892 = vunpack.c.l.b16 %v1860
        %v1893 = vunpack.c.l.b16 %v1861
        %v1894 = vunpack.c.l.b16 %v1862
        %v1895 = vunpack.c.l.b16 %v1863
        %v1896 = vunpack.c.l.b16 %v1864
        %v1897 = vpack.c.b16 %v1882, %v1881
        %v1898 = vpack.c.b16 %v1884, %v1883
        %v1899 = vpack.c.b16 %v1886, %v1885
        %v1900 = vpack.c.b16 %v1888, %v1887
        %v1901 = vpack.c.b16 %v1890, %v1889
        %v1902 = vpack.c.b16 %v1892, %v1891
        %v1903 = vpack.c.b16 %v1894, %v1893
        %v1904 = vpack.c.b16 %v1896, %v1895
        %1913 = vmatprep.subr.bf16.mxu0 0
        %1914 = vmatpush1.bf16.msra.mxu0 %v1897
        %1915 = vmatprep.subr.bf16.mxu0 0
        %1916 = vmatpush1.bf16.msra.mxu0 %v1898
        %1917 = vmatprep.subr.bf16.mxu0 0
        %1918 = vmatpush1.bf16.msra.mxu0 %v1899
        %1919 = vmatprep.subr.bf16.mxu0 0
        %1920 = vmatpush1.bf16.msra.mxu0 %v1900
        %1921 = vmatprep.subr.bf16.mxu0 0
        %1922 = vmatpush1.bf16.msra.mxu0 %v1901
        %1923 = vmatprep.subr.bf16.mxu0 0
        %1924 = vmatpush1.bf16.msra.mxu0 %v1902
        %1925 = vmatprep.subr.bf16.mxu0 0
        %1926 = vmatpush1.bf16.msra.mxu0 %v1903
        %1927 = vmatprep.subr.bf16.mxu0 0
        %1928 = vmatpush1.bf16.msra.mxu0 %v1904
        %1929 = vmatprep.subr.bf16.mxu0 0
        %1930 = vmatpush1.bf16.msra.mxu0 0
        %1931 = vmatprep.subr.bf16.mxu0 0
        %1932 = vmatpush1.bf16.msra.mxu0 0
        %1933 = vmatprep.subr.bf16.mxu0 0
        %1934 = vmatpush1.bf16.msra.mxu0 0
        %1935 = vmatprep.subr.bf16.mxu0 0
        %1936 = vmatpush1.bf16.msra.mxu0 0
        %1937 = vmatprep.subr.bf16.mxu0 0
        %1938 = vmatpush1.bf16.msra.mxu0 0
        %1939 = vmatprep.subr.bf16.mxu0 0
        %1940 = vmatpush1.bf16.msra.mxu0 0
        %1941 = vmatprep.subr.bf16.mxu0 0
        %1942 = vmatpush1.bf16.msra.mxu0 0
        %1943 = vmatprep.subr.bf16.mxu0 0
        %1944 = vmatpush1.bf16.msra.mxu0 0
        %1945 = vmatprep.mubr.bf16.mxu0 0
        %1946 = vmatmul.mubr.bf16.gmra.mrb[0].mxu0 %v1845
        %v1947 = vpop.f32.mrb[0].mxu0
        %v1948 = vadd.f32 0.0, %v1947
        %v1949 = vpop.f32.mrb[0].mxu0
        %v1950 = vpop.f32.mrb[0].mxu0
        %v1951 = vadd.f32 0.0, %v1950
        %v1952 = vpop.f32.mrb[0].mxu0
        %1953 = vmatprep.mubr.bf16.mxu0 0
        %1954 = vmatmul.mubr.bf16.gmra.mrb[0].mxu0 %v1846
        %v1955 = vpop.f32.mrb[0].mxu0
        %v1956 = vadd.f32 0.0, %v1955
        %v1957 = vpop.f32.mrb[0].mxu0
        %v1958 = vpop.f32.mrb[0].mxu0
        %v1959 = vadd.f32 0.0, %v1958
        %v1960 = vpop.f32.mrb[0].mxu0
        %1961 = vmatprep.mubr.bf16.mxu0 0
        %1962 = vmatmul.mubr.bf16.gmra.mrb[0].mxu0 %v1847
        %v1963 = vpop.f32.mrb[0].mxu0
        %v1964 = vadd.f32 0.0, %v1963
        %v1965 = vpop.f32.mrb[0].mxu0
        %v1966 = vpop.f32.mrb[0].mxu0
        %v1967 = vadd.f32 0.0, %v1966
        %v1968 = vpop.f32.mrb[0].mxu0
        %1969 = vmatprep.mubr.bf16.mxu0 0
        %1970 = vmatmul.mubr.bf16.gmra.mrb[0].mxu0 %v1848
        %v1971 = vpop.f32.mrb[0].mxu0
        %v1972 = vadd.f32 0.0, %v1971
        %v1973 = vpop.f32.mrb[0].mxu0
        %v1974 = vpop.f32.mrb[0].mxu0
        %v1975 = vadd.f32 0.0, %v1974
        %v1976 = vpop.f32.mrb[0].mxu0
        %1977 = vdwg.mxu0
        %v1994 = vunpack.c.l.b16 %v1491
        %v1995 = vunpack.c.l.b16 %v1492
        %v1996 = vunpack.c.l.b16 %v1493
        %v1997 = vunpack.c.l.b16 %v1494
        %v1998 = vunpack.c.l.b16 %v1495
        %v1999 = vunpack.c.l.b16 %v1496
        %v2000 = vunpack.c.l.b16 %v1497
        %v2001 = vunpack.c.l.b16 %v1498
        %v2002 = vunpack.c.l.b16 %v1499
        %v2003 = vunpack.c.l.b16 %v1500
        %v2004 = vunpack.c.l.b16 %v1501
        %v2005 = vunpack.c.l.b16 %v1502
        %v2006 = vunpack.c.l.b16 %v1503
        %v2007 = vunpack.c.l.b16 %v1504
        %v2008 = vunpack.c.l.b16 %v1505
        %v2009 = vunpack.c.l.b16 %v1506
        %v2010 = vpack.c.b16 %v1995, %v1994
        %v2011 = vpack.c.b16 %v1997, %v1996
        %v2012 = vpack.c.b16 %v1999, %v1998
        %v2013 = vpack.c.b16 %v2001, %v2000
        %v2014 = vpack.c.b16 %v2003, %v2002
        %v2015 = vpack.c.b16 %v2005, %v2004
        %v2016 = vpack.c.b16 %v2007, %v2006
        %v2017 = vpack.c.b16 %v2009, %v2008
        %2026 = vmatprep.subr.bf16.mxu0 0
        %2027 = vmatpush1.bf16.msra.mxu0 %v2010
        %2028 = vmatprep.subr.bf16.mxu0 0
        %2029 = vmatpush1.bf16.msra.mxu0 %v2011
        %2030 = vmatprep.subr.bf16.mxu0 0
        %2031 = vmatpush1.bf16.msra.mxu0 %v2012
        %2032 = vmatprep.subr.bf16.mxu0 0
        %2033 = vmatpush1.bf16.msra.mxu0 %v2013
        %2034 = vmatprep.subr.bf16.mxu0 0
        %2035 = vmatpush1.bf16.msra.mxu0 %v2014
        %2036 = vmatprep.subr.bf16.mxu0 0
        %2037 = vmatpush1.bf16.msra.mxu0 %v2015
        %2038 = vmatprep.subr.bf16.mxu0 0
        %2039 = vmatpush1.bf16.msra.mxu0 %v2016
        %2040 = vmatprep.subr.bf16.mxu0 0
        %2041 = vmatpush1.bf16.msra.mxu0 %v2017
        %2042 = vmatprep.subr.bf16.mxu0 0
        %2043 = vmatpush1.bf16.msra.mxu0 0
        %2044 = vmatprep.subr.bf16.mxu0 0
        %2045 = vmatpush1.bf16.msra.mxu0 0
        %2046 = vmatprep.subr.bf16.mxu0 0
        %2047 = vmatpush1.bf16.msra.mxu0 0
        %2048 = vmatprep.subr.bf16.mxu0 0
        %2049 = vmatpush1.bf16.msra.mxu0 0
        %2050 = vmatprep.subr.bf16.mxu0 0
        %2051 = vmatpush1.bf16.msra.mxu0 0
        %2052 = vmatprep.subr.bf16.mxu0 0
        %2053 = vmatpush1.bf16.msra.mxu0 0
        %2054 = vmatprep.subr.bf16.mxu0 0
        %2055 = vmatpush1.bf16.msra.mxu0 0
        %2056 = vmatprep.subr.bf16.mxu0 0
        %2057 = vmatpush1.bf16.msra.mxu0 0
        %2058 = vmatprep.mubr.bf16.mxu0 0
        %2059 = vmatmul.mubr.bf16.gmra.mrb[0].mxu0 %v1487
        %v2060 = vpop.f32.mrb[0].mxu0
        %v2061 = vadd.f32 %v1948, %v2060
        %v2062 = vpop.f32.mrb[0].mxu0
        %v2063 = vpop.f32.mrb[0].mxu0
        %v2064 = vadd.f32 %v1951, %v2063
        %v2065 = vpop.f32.mrb[0].mxu0
        %2066 = vmatprep.mubr.bf16.mxu0 0
        %2067 = vmatmul.mubr.bf16.gmra.mrb[0].mxu0 %v1488
        %v2068 = vpop.f32.mrb[0].mxu0
        %v2069 = vadd.f32 %v1956, %v2068
        %v2070 = vpop.f32.mrb[0].mxu0
        %v2071 = vpop.f32.mrb[0].mxu0
        %v2072 = vadd.f32 %v1959, %v2071
        %v2073 = vpop.f32.mrb[0].mxu0
        %2074 = vmatprep.mubr.bf16.mxu0 0
        %2075 = vmatmul.mubr.bf16.gmra.mrb[0].mxu0 %v1489
        %v2076 = vpop.f32.mrb[0].mxu0
        %v2077 = vadd.f32 %v1964, %v2076
        %v2078 = vpop.f32.mrb[0].mxu0
        %v2079 = vpop.f32.mrb[0].mxu0
        %v2080 = vadd.f32 %v1967, %v2079
        %v2081 = vpop.f32.mrb[0].mxu0
        %2082 = vmatprep.mubr.bf16.mxu0 0
        %2083 = vmatmul.mubr.bf16.gmra.mrb[0].mxu0 %v1490
        %v2084 = vpop.f32.mrb[0].mxu0
        %v2085 = vadd.f32 %v1972, %v2084
        %v2086 = vpop.f32.mrb[0].mxu0
        %v2087 = vpop.f32.mrb[0].mxu0
        %v2088 = vadd.f32 %v1975, %v2087
        %v2089 = vpop.f32.mrb[0].mxu0
        %2090 = vdwg.mxu0
        %2091 = vst [vmem:[#allocation2] sm:$0xff] %v2061
        %2092 = vst [vmem:[#allocation2 + $0x8] sm:$0xff] %v2064
        %2093 = vst [vmem:[#allocation2 + $0x10] sm:$0xff] %v2069
        %2094 = vst [vmem:[#allocation2 + $0x18] sm:$0xff] %v2072
        %2095 = vst [vmem:[#allocation2 + $0x20] sm:$0xff] %v2077
        %2096 = vst [vmem:[#allocation2 + $0x28] sm:$0xff] %v2080
        %2097 = vst [vmem:[#allocation2 + $0x30] sm:$0xff] %v2085
        %2098 = vst [vmem:[#allocation2 + $0x38] sm:$0xff] %v2088
        %v2099 = vld [vmem:[#allocation2] sm:$0xff]
        %v2100 = vld [vmem:[#allocation2 + $0x8] sm:$0xff]
        %v2101 = vld [vmem:[#allocation2 + $0x10] sm:$0xff]
        %v2102 = vld [vmem:[#allocation2 + $0x18] sm:$0xff]
        %v2103 = vld [vmem:[#allocation2 + $0x20] sm:$0xff]
        %v2104 = vld [vmem:[#allocation2 + $0x28] sm:$0xff]
        %v2105 = vld [vmem:[#allocation2 + $0x30] sm:$0xff]
        %v2106 = vld [vmem:[#allocation2 + $0x38] sm:$0xff]
        %v2107 = vld [vmem:[%s5] sm:$0x1]
        %v2109 = vlaneseq
        %v2110 = vshrl.u32 %v2109, 7
        %v2111 = vsub.s32 0, %v2110
        %v2112 = vrot.slane %v2107, %v2111
        %v2114 = vadd.f32 %v2099, %v2112
        %v2115 = vadd.f32 %v2100, %v2112
        %v2116 = vadd.f32 %v2101, %v2112
        %v2117 = vadd.f32 %v2102, %v2112
        %v2118 = vadd.f32 %v2103, %v2112
        %v2119 = vadd.f32 %v2104, %v2112
        %v2120 = vadd.f32 %v2105, %v2112
        %v2121 = vadd.f32 %v2106, %v2112
        %v2122 = vadd.f32 %v2114, %v491
        %v2123 = vadd.f32 %v2115, %v492
        %v2124 = vadd.f32 %v2116, %v493
        %v2125 = vadd.f32 %v2117, %v494
        %v2126 = vadd.f32 %v2118, %v495
        %v2127 = vadd.f32 %v2119, %v496
        %v2128 = vadd.f32 %v2120, %v497
        %v2129 = vadd.f32 %v2121, %v498
        %v2130 = vld [vmem:[%s6] sm:$0x1]
        %v2131 = vld [vmem:[%s7] sm:$0x1]
        %2132 = vadd.xlane.f32.xlu0 %v2122
        %v2133 = vpop.xlane.xlu0 %2132
        %2134 = vadd.xlane.f32.xlu0 %v2123
        %v2135 = vpop.xlane.xlu0 %2134
        %2136 = vadd.xlane.f32.xlu0 %v2124
        %v2137 = vpop.xlane.xlu0 %2136
        %2138 = vadd.xlane.f32.xlu0 %v2125
        %v2139 = vpop.xlane.xlu0 %2138
        %2140 = vadd.xlane.f32.xlu0 %v2126
        %v2141 = vpop.xlane.xlu0 %2140
        %2142 = vadd.xlane.f32.xlu0 %v2127
        %v2143 = vpop.xlane.xlu0 %2142
        %2144 = vadd.xlane.f32.xlu0 %v2128
        %v2145 = vpop.xlane.xlu0 %2144
        %2146 = vadd.xlane.f32.xlu0 %v2129
        %v2147 = vpop.xlane.xlu0 %2146
        %v2148 = vmul.f32 %v2133, %v517
        %v2149 = vmul.f32 %v2135, %v517
        %v2150 = vmul.f32 %v2137, %v517
        %v2151 = vmul.f32 %v2139, %v517
        %v2152 = vmul.f32 %v2141, %v517
        %v2153 = vmul.f32 %v2143, %v517
        %v2154 = vmul.f32 %v2145, %v517
        %v2155 = vmul.f32 %v2147, %v517
        %v2156 = vsub.f32 %v2122, %v2148
        %v2157 = vsub.f32 %v2123, %v2149
        %v2158 = vsub.f32 %v2124, %v2150
        %v2159 = vsub.f32 %v2125, %v2151
        %v2160 = vsub.f32 %v2126, %v2152
        %v2161 = vsub.f32 %v2127, %v2153
        %v2162 = vsub.f32 %v2128, %v2154
        %v2163 = vsub.f32 %v2129, %v2155
        %v2164 = vmul.f32 %v2156, %v2156
        %v2165 = vmul.f32 %v2157, %v2157
        %v2166 = vmul.f32 %v2158, %v2158
        %v2167 = vmul.f32 %v2159, %v2159
        %v2168 = vmul.f32 %v2160, %v2160
        %v2169 = vmul.f32 %v2161, %v2161
        %v2170 = vmul.f32 %v2162, %v2162
        %v2171 = vmul.f32 %v2163, %v2163
        %2172 = vadd.xlane.f32.xlu0 %v2164
        %v2173 = vpop.xlane.xlu0 %2172
        %2174 = vadd.xlane.f32.xlu0 %v2165
        %v2175 = vpop.xlane.xlu0 %2174
        %2176 = vadd.xlane.f32.xlu0 %v2166
        %v2177 = vpop.xlane.xlu0 %2176
        %2178 = vadd.xlane.f32.xlu0 %v2167
        %v2179 = vpop.xlane.xlu0 %2178
        %2180 = vadd.xlane.f32.xlu0 %v2168
        %v2181 = vpop.xlane.xlu0 %2180
        %2182 = vadd.xlane.f32.xlu0 %v2169
        %v2183 = vpop.xlane.xlu0 %2182
        %2184 = vadd.xlane.f32.xlu0 %v2170
        %v2185 = vpop.xlane.xlu0 %2184
        %2186 = vadd.xlane.f32.xlu0 %v2171
        %v2187 = vpop.xlane.xlu0 %2186
        %v2188 = vmul.f32 %v2173, %v517
        %v2189 = vmul.f32 %v2175, %v517
        %v2190 = vmul.f32 %v2177, %v517
        %v2191 = vmul.f32 %v2179, %v517
        %v2192 = vmul.f32 %v2181, %v517
        %v2193 = vmul.f32 %v2183, %v517
        %v2194 = vmul.f32 %v2185, %v517
        %v2195 = vmul.f32 %v2187, %v517
        %v2196 = vadd.f32 %v2188, 1e-05
        %v2197 = vadd.f32 %v2189, 1e-05
        %v2198 = vadd.f32 %v2190, 1e-05
        %v2199 = vadd.f32 %v2191, 1e-05
        %v2200 = vadd.f32 %v2192, 1e-05
        %v2201 = vadd.f32 %v2193, 1e-05
        %v2202 = vadd.f32 %v2194, 1e-05
        %v2203 = vadd.f32 %v2195, 1e-05
        %v2204 = vrsqrt.pop %v2196
        %v2205 = vrsqrt.pop %v2197
        %v2206 = vrsqrt.pop %v2198
        %v2207 = vrsqrt.pop %v2199
        %v2208 = vrsqrt.pop %v2200
        %v2209 = vrsqrt.pop %v2201
        %v2210 = vrsqrt.pop %v2202
        %v2211 = vrsqrt.pop %v2203
        %v2212 = vmul.f32 %v2156, %v2204
        %v2213 = vmul.f32 %v2157, %v2205
        %v2214 = vmul.f32 %v2158, %v2206
        %v2215 = vmul.f32 %v2159, %v2207
        %v2216 = vmul.f32 %v2160, %v2208
        %v2217 = vmul.f32 %v2161, %v2209
        %v2218 = vmul.f32 %v2162, %v2210
        %v2219 = vmul.f32 %v2163, %v2211
        %v2221 = vlaneseq
        %v2222 = vshrl.u32 %v2221, 7
        %v2223 = vsub.s32 0, %v2222
        %v2224 = vrot.slane %v2130, %v2223
        %v2226 = vmul.f32 %v2212, %v2224
        %v2227 = vmul.f32 %v2213, %v2224
        %v2228 = vmul.f32 %v2214, %v2224
        %v2229 = vmul.f32 %v2215, %v2224
        %v2230 = vmul.f32 %v2216, %v2224
        %v2231 = vmul.f32 %v2217, %v2224
        %v2232 = vmul.f32 %v2218, %v2224
        %v2233 = vmul.f32 %v2219, %v2224
        %v2235 = vlaneseq
        %v2236 = vshrl.u32 %v2235, 7
        %v2237 = vsub.s32 0, %v2236
        %v2238 = vrot.slane %v2131, %v2237
        %v2240 = vadd.f32 %v2226, %v2238
        %v2241 = vadd.f32 %v2227, %v2238
        %v2242 = vadd.f32 %v2228, %v2238
        %v2243 = vadd.f32 %v2229, %v2238
        %v2244 = vadd.f32 %v2230, %v2238
        %v2245 = vadd.f32 %v2231, %v2238
        %v2246 = vadd.f32 %v2232, %v2238
        %v2247 = vadd.f32 %v2233, %v2238
        %v2248 = vpack.c.bf16 %v2241, %v2240
        %v2249 = vpack.c.bf16 %v2243, %v2242
        %v2250 = vpack.c.bf16 %v2245, %v2244
        %v2251 = vpack.c.bf16 %v2247, %v2246
        %v2252 = vld [vmem:[#allocation9] sm:$0xff]
        %v2253 = vld [vmem:[#allocation9 + $0x8] sm:$0xff]
        %v2254 = vld [vmem:[#allocation9 + $0x10] sm:$0xff]
        %v2255 = vld [vmem:[#allocation9 + $0x18] sm:$0xff]
        %v2256 = vld [vmem:[#allocation9 + $0x20] sm:$0xff]
        %v2257 = vld [vmem:[#allocation9 + $0x28] sm:$0xff]
        %v2258 = vld [vmem:[#allocation9 + $0x30] sm:$0xff]
        %v2259 = vld [vmem:[#allocation9 + $0x38] sm:$0xff]
        %v2260 = vld [vmem:[#allocation9 + $0x40] sm:$0xff]
        %v2261 = vld [vmem:[#allocation9 + $0x48] sm:$0xff]
        %v2262 = vld [vmem:[#allocation9 + $0x50] sm:$0xff]
        %v2263 = vld [vmem:[#allocation9 + $0x58] sm:$0xff]
        %v2264 = vld [vmem:[#allocation9 + $0x60] sm:$0xff]
        %v2265 = vld [vmem:[#allocation9 + $0x68] sm:$0xff]
        %v2266 = vld [vmem:[#allocation9 + $0x70] sm:$0xff]
        %v2267 = vld [vmem:[#allocation9 + $0x78] sm:$0xff]
        %v2268 = vld [vmem:[#allocation9 + $0x80] sm:$0xff]
        %v2269 = vld [vmem:[#allocation9 + $0x88] sm:$0xff]
        %v2270 = vld [vmem:[#allocation9 + $0x90] sm:$0xff]
        %v2271 = vld [vmem:[#allocation9 + $0x98] sm:$0xff]
        %v2272 = vld [vmem:[#allocation9 + $0xa0] sm:$0xff]
        %v2273 = vld [vmem:[#allocation9 + $0xa8] sm:$0xff]
        %v2274 = vld [vmem:[#allocation9 + $0xb0] sm:$0xff]
        %v2275 = vld [vmem:[#allocation9 + $0xb8] sm:$0xff]
        %v2276 = vld [vmem:[#allocation9 + $0xc0] sm:$0xff]
        %v2277 = vld [vmem:[#allocation9 + $0xc8] sm:$0xff]
        %v2278 = vld [vmem:[#allocation9 + $0xd0] sm:$0xff]
        %v2279 = vld [vmem:[#allocation9 + $0xd8] sm:$0xff]
        %v2280 = vld [vmem:[#allocation9 + $0xe0] sm:$0xff]
        %v2281 = vld [vmem:[#allocation9 + $0xe8] sm:$0xff]
        %v2282 = vld [vmem:[#allocation9 + $0xf0] sm:$0xff]
        %v2283 = vld [vmem:[#allocation9 + $0xf8] sm:$0xff]
        %v2284 = vld [vmem:[%s9] sm:$0xf]
        %v2286 = vlaneseq
        %v2287 = vshrl.u32 %v2286, 7
        %v2288 = vsub.s32 0, %v2287
        %v2289 = vrot.slane %v2284, %v2288
        %v2290 = vlaneseq
        %v2291 = vshrl.u32 %v2290, 7
        %v2292 = vsub.s32 1, %v2291
        %v2293 = vrot.slane %v2284, %v2292
        %v2294 = vlaneseq
        %v2295 = vshrl.u32 %v2294, 7
        %v2296 = vsub.s32 2, %v2295
        %v2297 = vrot.slane %v2284, %v2296
        %v2298 = vlaneseq
        %v2299 = vshrl.u32 %v2298, 7
        %v2300 = vsub.s32 3, %v2299
        %v2301 = vrot.slane %v2284, %v2300
        %v2338 = vunpack.c.l.b16 %v2252
        %v2339 = vunpack.c.h.b16 %v2252
        %v2340 = vunpack.c.l.b16 %v2253
        %v2341 = vunpack.c.h.b16 %v2253
        %v2342 = vunpack.c.l.b16 %v2254
        %v2343 = vunpack.c.h.b16 %v2254
        %v2344 = vunpack.c.l.b16 %v2255
        %v2345 = vunpack.c.h.b16 %v2255
        %v2346 = vunpack.c.l.b16 %v2256
        %v2347 = vunpack.c.h.b16 %v2256
        %v2348 = vunpack.c.l.b16 %v2257
        %v2349 = vunpack.c.h.b16 %v2257
        %v2350 = vunpack.c.l.b16 %v2258
        %v2351 = vunpack.c.h.b16 %v2258
        %v2352 = vunpack.c.l.b16 %v2259
        %v2353 = vunpack.c.h.b16 %v2259
        %v2354 = vunpack.c.l.b16 %v2260
        %v2355 = vunpack.c.h.b16 %v2260
        %v2356 = vunpack.c.l.b16 %v2261
        %v2357 = vunpack.c.h.b16 %v2261
        %v2358 = vunpack.c.l.b16 %v2262
        %v2359 = vunpack.c.h.b16 %v2262
        %v2360 = vunpack.c.l.b16 %v2263
        %v2361 = vunpack.c.h.b16 %v2263
        %v2362 = vunpack.c.l.b16 %v2264
        %v2363 = vunpack.c.h.b16 %v2264
        %v2364 = vunpack.c.l.b16 %v2265
        %v2365 = vunpack.c.h.b16 %v2265
        %v2366 = vunpack.c.l.b16 %v2266
        %v2367 = vunpack.c.h.b16 %v2266
        %v2368 = vunpack.c.l.b16 %v2267
        %v2369 = vunpack.c.h.b16 %v2267
        %v2370 = vunpack.c.l.b16 %v2268
        %v2371 = vunpack.c.h.b16 %v2268
        %v2372 = vunpack.c.l.b16 %v2269
        %v2373 = vunpack.c.h.b16 %v2269
        %v2374 = vunpack.c.l.b16 %v2270
        %v2375 = vunpack.c.h.b16 %v2270
        %v2376 = vunpack.c.l.b16 %v2271
        %v2377 = vunpack.c.h.b16 %v2271
        %v2378 = vunpack.c.l.b16 %v2272
        %v2379 = vunpack.c.h.b16 %v2272
        %v2380 = vunpack.c.l.b16 %v2273
        %v2381 = vunpack.c.h.b16 %v2273
        %v2382 = vunpack.c.l.b16 %v2274
        %v2383 = vunpack.c.h.b16 %v2274
        %v2384 = vunpack.c.l.b16 %v2275
        %v2385 = vunpack.c.h.b16 %v2275
        %v2386 = vunpack.c.l.b16 %v2276
        %v2387 = vunpack.c.h.b16 %v2276
        %v2388 = vunpack.c.l.b16 %v2277
        %v2389 = vunpack.c.h.b16 %v2277
        %v2390 = vunpack.c.l.b16 %v2278
        %v2391 = vunpack.c.h.b16 %v2278
        %v2392 = vunpack.c.l.b16 %v2279
        %v2393 = vunpack.c.h.b16 %v2279
        %v2394 = vunpack.c.l.b16 %v2280
        %v2395 = vunpack.c.h.b16 %v2280
        %v2396 = vunpack.c.l.b16 %v2281
        %v2397 = vunpack.c.h.b16 %v2281
        %v2398 = vunpack.c.l.b16 %v2282
        %v2399 = vunpack.c.h.b16 %v2282
        %v2400 = vunpack.c.l.b16 %v2283
        %v2401 = vunpack.c.h.b16 %v2283
        %v2402 = vpack.c.b16 %v2342, %v2338
        %v2403 = vpack.c.b16 %v2343, %v2339
        %v2404 = vpack.c.b16 %v2344, %v2340
        %v2405 = vpack.c.b16 %v2345, %v2341
        %v2406 = vpack.c.b16 %v2350, %v2346
        %v2407 = vpack.c.b16 %v2351, %v2347
        %v2408 = vpack.c.b16 %v2352, %v2348
        %v2409 = vpack.c.b16 %v2353, %v2349
        %v2410 = vpack.c.b16 %v2358, %v2354
        %v2411 = vpack.c.b16 %v2359, %v2355
        %v2412 = vpack.c.b16 %v2360, %v2356
        %v2413 = vpack.c.b16 %v2361, %v2357
        %v2414 = vpack.c.b16 %v2366, %v2362
        %v2415 = vpack.c.b16 %v2367, %v2363
        %v2416 = vpack.c.b16 %v2368, %v2364
        %v2417 = vpack.c.b16 %v2369, %v2365
        %v2418 = vpack.c.b16 %v2374, %v2370
        %v2419 = vpack.c.b16 %v2375, %v2371
        %v2420 = vpack.c.b16 %v2376, %v2372
        %v2421 = vpack.c.b16 %v2377, %v2373
        %v2422 = vpack.c.b16 %v2382, %v2378
        %v2423 = vpack.c.b16 %v2383, %v2379
        %v2424 = vpack.c.b16 %v2384, %v2380
        %v2425 = vpack.c.b16 %v2385, %v2381
        %v2426 = vpack.c.b16 %v2390, %v2386
        %v2427 = vpack.c.b16 %v2391, %v2387
        %v2428 = vpack.c.b16 %v2392, %v2388
        %v2429 = vpack.c.b16 %v2393, %v2389
        %v2430 = vpack.c.b16 %v2398, %v2394
        %v2431 = vpack.c.b16 %v2399, %v2395
        %v2432 = vpack.c.b16 %v2400, %v2396
        %v2433 = vpack.c.b16 %v2401, %v2397
        %2466 = vmatprep.subr.bf16.mxu0 %v2403
        %2467 = vmatpush1.bf16.msra.mxu0 %v2402
        %2468 = vmatprep.subr.bf16.mxu0 %v2407
        %2469 = vmatpush1.bf16.msra.mxu0 %v2406
        %2470 = vmatprep.subr.bf16.mxu0 %v2411
        %2471 = vmatpush1.bf16.msra.mxu0 %v2410
        %2472 = vmatprep.subr.bf16.mxu0 %v2415
        %2473 = vmatpush1.bf16.msra.mxu0 %v2414
        %2474 = vmatprep.subr.bf16.mxu0 %v2419
        %2475 = vmatpush1.bf16.msra.mxu0 %v2418
        %2476 = vmatprep.subr.bf16.mxu0 %v2423
        %2477 = vmatpush1.bf16.msra.mxu0 %v2422
        %2478 = vmatprep.subr.bf16.mxu0 %v2427
        %2479 = vmatpush1.bf16.msra.mxu0 %v2426
        %2480 = vmatprep.subr.bf16.mxu0 %v2431
        %2481 = vmatpush1.bf16.msra.mxu0 %v2430
        %2482 = vmatprep.subr.bf16.mxu0 0
        %2483 = vmatpush1.bf16.msra.mxu0 0
        %2484 = vmatprep.subr.bf16.mxu0 0
        %2485 = vmatpush1.bf16.msra.mxu0 0
        %2486 = vmatprep.subr.bf16.mxu0 0
        %2487 = vmatpush1.bf16.msra.mxu0 0
        %2488 = vmatprep.subr.bf16.mxu0 0
        %2489 = vmatpush1.bf16.msra.mxu0 0
        %2490 = vmatprep.subr.bf16.mxu0 0
        %2491 = vmatpush1.bf16.msra.mxu0 0
        %2492 = vmatprep.subr.bf16.mxu0 0
        %2493 = vmatpush1.bf16.msra.mxu0 0
        %2494 = vmatprep.subr.bf16.mxu0 0
        %2495 = vmatpush1.bf16.msra.mxu0 0
        %2496 = vmatprep.subr.bf16.mxu0 0
        %2497 = vmatpush1.bf16.msra.mxu0 0
        %2498 = vmatprep.mubr.bf16.mxu0 0
        %2499 = vmatmul.mubr.bf16.gmra.mrb[0].mxu0 %v2248
        %v2500 = vpop.f32.mrb[0].mxu0
        %v2501 = vadd.f32 %v2289, %v2500
        %v2502 = vpop.f32.mrb[0].mxu0
        %v2503 = vadd.f32 %v2293, %v2502
        %v2504 = vpop.f32.mrb[0].mxu0
        %v2505 = vadd.f32 %v2289, %v2504
        %v2506 = vpop.f32.mrb[0].mxu0
        %v2507 = vadd.f32 %v2293, %v2506
        %2508 = vmatprep.mubr.bf16.mxu0 0
        %2509 = vmatmul.mubr.bf16.gmra.mrb[0].mxu0 %v2249
        %v2510 = vpop.f32.mrb[0].mxu0
        %v2511 = vadd.f32 %v2289, %v2510
        %v2512 = vpop.f32.mrb[0].mxu0
        %v2513 = vadd.f32 %v2293, %v2512
        %v2514 = vpop.f32.mrb[0].mxu0
        %v2515 = vadd.f32 %v2289, %v2514
        %v2516 = vpop.f32.mrb[0].mxu0
        %v2517 = vadd.f32 %v2293, %v2516
        %2518 = vmatprep.mubr.bf16.mxu0 0
        %2519 = vmatmul.mubr.bf16.gmra.mrb[0].mxu0 %v2250
        %v2520 = vpop.f32.mrb[0].mxu0
        %v2521 = vadd.f32 %v2289, %v2520
        %v2522 = vpop.f32.mrb[0].mxu0
        %v2523 = vadd.f32 %v2293, %v2522
        %v2524 = vpop.f32.mrb[0].mxu0
        %v2525 = vadd.f32 %v2289, %v2524
        %v2526 = vpop.f32.mrb[0].mxu0
        %v2527 = vadd.f32 %v2293, %v2526
        %2528 = vmatprep.mubr.bf16.mxu0 0
        %2529 = vmatmul.mubr.bf16.gmra.mrb[0].mxu0 %v2251
        %v2530 = vpop.f32.mrb[0].mxu0
        %v2531 = vadd.f32 %v2289, %v2530
        %v2532 = vpop.f32.mrb[0].mxu0
        %v2533 = vadd.f32 %v2293, %v2532
        %v2534 = vpop.f32.mrb[0].mxu0
        %v2535 = vadd.f32 %v2289, %v2534
        %v2536 = vpop.f32.mrb[0].mxu0
        %v2537 = vadd.f32 %v2293, %v2536
        %2538 = vdwg.mxu0
        %2539 = vmatprep.subr.bf16.mxu0 %v2405
        %2540 = vmatpush1.bf16.msra.mxu0 %v2404
        %2541 = vmatprep.subr.bf16.mxu0 %v2409
        %2542 = vmatpush1.bf16.msra.mxu0 %v2408
        %2543 = vmatprep.subr.bf16.mxu0 %v2413
        %2544 = vmatpush1.bf16.msra.mxu0 %v2412
        %2545 = vmatprep.subr.bf16.mxu0 %v2417
        %2546 = vmatpush1.bf16.msra.mxu0 %v2416
        %2547 = vmatprep.subr.bf16.mxu0 %v2421
        %2548 = vmatpush1.bf16.msra.mxu0 %v2420
        %2549 = vmatprep.subr.bf16.mxu0 %v2425
        %2550 = vmatpush1.bf16.msra.mxu0 %v2424
        %2551 = vmatprep.subr.bf16.mxu0 %v2429
        %2552 = vmatpush1.bf16.msra.mxu0 %v2428
        %2553 = vmatprep.subr.bf16.mxu0 %v2433
        %2554 = vmatpush1.bf16.msra.mxu0 %v2432
        %2555 = vmatprep.subr.bf16.mxu0 0
        %2556 = vmatpush1.bf16.msra.mxu0 0
        %2557 = vmatprep.subr.bf16.mxu0 0
        %2558 = vmatpush1.bf16.msra.mxu0 0
        %2559 = vmatprep.subr.bf16.mxu0 0
        %2560 = vmatpush1.bf16.msra.mxu0 0
        %2561 = vmatprep.subr.bf16.mxu0 0
        %2562 = vmatpush1.bf16.msra.mxu0 0
        %2563 = vmatprep.subr.bf16.mxu0 0
        %2564 = vmatpush1.bf16.msra.mxu0 0
        %2565 = vmatprep.subr.bf16.mxu0 0
        %2566 = vmatpush1.bf16.msra.mxu0 0
        %2567 = vmatprep.subr.bf16.mxu0 0
        %2568 = vmatpush1.bf16.msra.mxu0 0
        %2569 = vmatprep.subr.bf16.mxu0 0
        %2570 = vmatpush1.bf16.msra.mxu0 0
        %2571 = vmatprep.mubr.bf16.mxu0 0
        %2572 = vmatmul.mubr.bf16.gmra.mrb[0].mxu0 %v2248
        %v2573 = vpop.f32.mrb[0].mxu0
        %v2574 = vadd.f32 %v2297, %v2573
        %v2575 = vpop.f32.mrb[0].mxu0
        %v2576 = vadd.f32 %v2301, %v2575
        %v2577 = vpop.f32.mrb[0].mxu0
        %v2578 = vadd.f32 %v2297, %v2577
        %v2579 = vpop.f32.mrb[0].mxu0
        %v2580 = vadd.f32 %v2301, %v2579
        %2581 = vmatprep.mubr.bf16.mxu0 0
        %2582 = vmatmul.mubr.bf16.gmra.mrb[0].mxu0 %v2249
        %v2583 = vpop.f32.mrb[0].mxu0
        %v2584 = vadd.f32 %v2297, %v2583
        %v2585 = vpop.f32.mrb[0].mxu0
        %v2586 = vadd.f32 %v2301, %v2585
        %v2587 = vpop.f32.mrb[0].mxu0
        %v2588 = vadd.f32 %v2297, %v2587
        %v2589 = vpop.f32.mrb[0].mxu0
        %v2590 = vadd.f32 %v2301, %v2589
        %2591 = vmatprep.mubr.bf16.mxu0 0
        %2592 = vmatmul.mubr.bf16.gmra.mrb[0].mxu0 %v2250
        %v2593 = vpop.f32.mrb[0].mxu0
        %v2594 = vadd.f32 %v2297, %v2593
        %v2595 = vpop.f32.mrb[0].mxu0
        %v2596 = vadd.f32 %v2301, %v2595
        %v2597 = vpop.f32.mrb[0].mxu0
        %v2598 = vadd.f32 %v2297, %v2597
        %v2599 = vpop.f32.mrb[0].mxu0
        %v2600 = vadd.f32 %v2301, %v2599
        %2601 = vmatprep.mubr.bf16.mxu0 0
        %2602 = vmatmul.mubr.bf16.gmra.mrb[0].mxu0 %v2251
        %v2603 = vpop.f32.mrb[0].mxu0
        %v2604 = vadd.f32 %v2297, %v2603
        %v2605 = vpop.f32.mrb[0].mxu0
        %v2606 = vadd.f32 %v2301, %v2605
        %v2607 = vpop.f32.mrb[0].mxu0
        %v2608 = vadd.f32 %v2297, %v2607
        %v2609 = vpop.f32.mrb[0].mxu0
        %v2610 = vadd.f32 %v2301, %v2609
        %2611 = vdwg.mxu0
        %v2612 = vmax.f32 %v2501, 0.0
        %v2613 = vmax.f32 %v2503, 0.0
        %v2614 = vmax.f32 %v2574, 0.0
        %v2615 = vmax.f32 %v2576, 0.0
        %v2616 = vmax.f32 %v2505, 0.0
        %v2617 = vmax.f32 %v2507, 0.0
        %v2618 = vmax.f32 %v2578, 0.0
        %v2619 = vmax.f32 %v2580, 0.0
        %v2620 = vmax.f32 %v2511, 0.0
        %v2621 = vmax.f32 %v2513, 0.0
        %v2622 = vmax.f32 %v2584, 0.0
        %v2623 = vmax.f32 %v2586, 0.0
        %v2624 = vmax.f32 %v2515, 0.0
        %v2625 = vmax.f32 %v2517, 0.0
        %v2626 = vmax.f32 %v2588, 0.0
        %v2627 = vmax.f32 %v2590, 0.0
        %v2628 = vmax.f32 %v2521, 0.0
        %v2629 = vmax.f32 %v2523, 0.0
        %v2630 = vmax.f32 %v2594, 0.0
        %v2631 = vmax.f32 %v2596, 0.0
        %v2632 = vmax.f32 %v2525, 0.0
        %v2633 = vmax.f32 %v2527, 0.0
        %v2634 = vmax.f32 %v2598, 0.0
        %v2635 = vmax.f32 %v2600, 0.0
        %v2636 = vmax.f32 %v2531, 0.0
        %v2637 = vmax.f32 %v2533, 0.0
        %v2638 = vmax.f32 %v2604, 0.0
        %v2639 = vmax.f32 %v2606, 0.0
        %v2640 = vmax.f32 %v2535, 0.0
        %v2641 = vmax.f32 %v2537, 0.0
        %v2642 = vmax.f32 %v2608, 0.0
        %v2643 = vmax.f32 %v2610, 0.0
        %v2644 = vpack.c.bf16 %v2616, %v2612
        %v2645 = vpack.c.bf16 %v2617, %v2613
        %v2646 = vpack.c.bf16 %v2618, %v2614
        %v2647 = vpack.c.bf16 %v2619, %v2615
        %v2648 = vpack.c.bf16 %v2624, %v2620
        %v2649 = vpack.c.bf16 %v2625, %v2621
        %v2650 = vpack.c.bf16 %v2626, %v2622
        %v2651 = vpack.c.bf16 %v2627, %v2623
        %v2652 = vpack.c.bf16 %v2632, %v2628
        %v2653 = vpack.c.bf16 %v2633, %v2629
        %v2654 = vpack.c.bf16 %v2634, %v2630
        %v2655 = vpack.c.bf16 %v2635, %v2631
        %v2656 = vpack.c.bf16 %v2640, %v2636
        %v2657 = vpack.c.bf16 %v2641, %v2637
        %v2658 = vpack.c.bf16 %v2642, %v2638
        %v2659 = vpack.c.bf16 %v2643, %v2639
        %v2660 = vld [vmem:[#allocation11] sm:$0xf]
        %v2661 = vld [vmem:[#allocation11 + $0x4] sm:$0xf]
        %v2662 = vld [vmem:[#allocation11 + $0x8] sm:$0xf]
        %v2663 = vld [vmem:[#allocation11 + $0xc] sm:$0xf]
        %v2664 = vld [vmem:[#allocation11 + $0x10] sm:$0xf]
        %v2665 = vld [vmem:[#allocation11 + $0x14] sm:$0xf]
        %v2666 = vld [vmem:[#allocation11 + $0x18] sm:$0xf]
        %v2667 = vld [vmem:[#allocation11 + $0x1c] sm:$0xf]
        %v2668 = vld [vmem:[#allocation11 + $0x20] sm:$0xf]
        %v2669 = vld [vmem:[#allocation11 + $0x24] sm:$0xf]
        %v2670 = vld [vmem:[#allocation11 + $0x28] sm:$0xf]
        %v2671 = vld [vmem:[#allocation11 + $0x2c] sm:$0xf]
        %v2672 = vld [vmem:[#allocation11 + $0x30] sm:$0xf]
        %v2673 = vld [vmem:[#allocation11 + $0x34] sm:$0xf]
        %v2674 = vld [vmem:[#allocation11 + $0x38] sm:$0xf]
        %v2675 = vld [vmem:[#allocation11 + $0x3c] sm:$0xf]
        %v2676 = vld [vmem:[#allocation11 + $0x40] sm:$0xf]
        %v2677 = vld [vmem:[#allocation11 + $0x44] sm:$0xf]
        %v2678 = vld [vmem:[#allocation11 + $0x48] sm:$0xf]
        %v2679 = vld [vmem:[#allocation11 + $0x4c] sm:$0xf]
        %v2680 = vld [vmem:[#allocation11 + $0x50] sm:$0xf]
        %v2681 = vld [vmem:[#allocation11 + $0x54] sm:$0xf]
        %v2682 = vld [vmem:[#allocation11 + $0x58] sm:$0xf]
        %v2683 = vld [vmem:[#allocation11 + $0x5c] sm:$0xf]
        %v2684 = vld [vmem:[#allocation11 + $0x60] sm:$0xf]
        %v2685 = vld [vmem:[#allocation11 + $0x64] sm:$0xf]
        %v2686 = vld [vmem:[#allocation11 + $0x68] sm:$0xf]
        %v2687 = vld [vmem:[#allocation11 + $0x6c] sm:$0xf]
        %v2688 = vld [vmem:[#allocation11 + $0x70] sm:$0xf]
        %v2689 = vld [vmem:[#allocation11 + $0x74] sm:$0xf]
        %v2690 = vld [vmem:[#allocation11 + $0x78] sm:$0xf]
        %v2691 = vld [vmem:[#allocation11 + $0x7c] sm:$0xf]
        %v2692 = vld [vmem:[#allocation11 + $0x80] sm:$0xf]
        %v2693 = vld [vmem:[#allocation11 + $0x84] sm:$0xf]
        %v2694 = vld [vmem:[#allocation11 + $0x88] sm:$0xf]
        %v2695 = vld [vmem:[#allocation11 + $0x8c] sm:$0xf]
        %v2696 = vld [vmem:[#allocation11 + $0x90] sm:$0xf]
        %v2697 = vld [vmem:[#allocation11 + $0x94] sm:$0xf]
        %v2698 = vld [vmem:[#allocation11 + $0x98] sm:$0xf]
        %v2699 = vld [vmem:[#allocation11 + $0x9c] sm:$0xf]
        %v2700 = vld [vmem:[#allocation11 + $0xa0] sm:$0xf]
        %v2701 = vld [vmem:[#allocation11 + $0xa4] sm:$0xf]
        %v2702 = vld [vmem:[#allocation11 + $0xa8] sm:$0xf]
        %v2703 = vld [vmem:[#allocation11 + $0xac] sm:$0xf]
        %v2704 = vld [vmem:[#allocation11 + $0xb0] sm:$0xf]
        %v2705 = vld [vmem:[#allocation11 + $0xb4] sm:$0xf]
        %v2706 = vld [vmem:[#allocation11 + $0xb8] sm:$0xf]
        %v2707 = vld [vmem:[#allocation11 + $0xbc] sm:$0xf]
        %v2708 = vld [vmem:[#allocation11 + $0xc0] sm:$0xf]
        %v2709 = vld [vmem:[#allocation11 + $0xc4] sm:$0xf]
        %v2710 = vld [vmem:[#allocation11 + $0xc8] sm:$0xf]
        %v2711 = vld [vmem:[#allocation11 + $0xcc] sm:$0xf]
        %v2712 = vld [vmem:[#allocation11 + $0xd0] sm:$0xf]
        %v2713 = vld [vmem:[#allocation11 + $0xd4] sm:$0xf]
        %v2714 = vld [vmem:[#allocation11 + $0xd8] sm:$0xf]
        %v2715 = vld [vmem:[#allocation11 + $0xdc] sm:$0xf]
        %v2716 = vld [vmem:[#allocation11 + $0xe0] sm:$0xf]
        %v2717 = vld [vmem:[#allocation11 + $0xe4] sm:$0xf]
        %v2718 = vld [vmem:[#allocation11 + $0xe8] sm:$0xf]
        %v2719 = vld [vmem:[#allocation11 + $0xec] sm:$0xf]
        %v2720 = vld [vmem:[#allocation11 + $0xf0] sm:$0xf]
        %v2721 = vld [vmem:[#allocation11 + $0xf4] sm:$0xf]
        %v2722 = vld [vmem:[#allocation11 + $0xf8] sm:$0xf]
        %v2723 = vld [vmem:[#allocation11 + $0xfc] sm:$0xf]
        %v2724 = vld [vmem:[%s11] sm:$0x1]
        %v2726 = vlaneseq
        %v2727 = vshrl.u32 %v2726, 7
        %v2728 = vsub.s32 0, %v2727
        %v2729 = vrot.slane %v2724, %v2728
        %v2795 = vunpack.c.l.b16 %v2660
        %v2796 = vunpack.c.l.b16 %v2661
        %v2797 = vunpack.c.l.b16 %v2662
        %v2798 = vunpack.c.l.b16 %v2663
        %v2799 = vunpack.c.l.b16 %v2664
        %v2800 = vunpack.c.l.b16 %v2665
        %v2801 = vunpack.c.l.b16 %v2666
        %v2802 = vunpack.c.l.b16 %v2667
        %v2803 = vunpack.c.l.b16 %v2668
        %v2804 = vunpack.c.l.b16 %v2669
        %v2805 = vunpack.c.l.b16 %v2670
        %v2806 = vunpack.c.l.b16 %v2671
        %v2807 = vunpack.c.l.b16 %v2672
        %v2808 = vunpack.c.l.b16 %v2673
        %v2809 = vunpack.c.l.b16 %v2674
        %v2810 = vunpack.c.l.b16 %v2675
        %v2811 = vunpack.c.l.b16 %v2676
        %v2812 = vunpack.c.l.b16 %v2677
        %v2813 = vunpack.c.l.b16 %v2678
        %v2814 = vunpack.c.l.b16 %v2679
        %v2815 = vunpack.c.l.b16 %v2680
        %v2816 = vunpack.c.l.b16 %v2681
        %v2817 = vunpack.c.l.b16 %v2682
        %v2818 = vunpack.c.l.b16 %v2683
        %v2819 = vunpack.c.l.b16 %v2684
        %v2820 = vunpack.c.l.b16 %v2685
        %v2821 = vunpack.c.l.b16 %v2686
        %v2822 = vunpack.c.l.b16 %v2687
        %v2823 = vunpack.c.l.b16 %v2688
        %v2824 = vunpack.c.l.b16 %v2689
        %v2825 = vunpack.c.l.b16 %v2690
        %v2826 = vunpack.c.l.b16 %v2691
        %v2827 = vunpack.c.l.b16 %v2692
        %v2828 = vunpack.c.l.b16 %v2693
        %v2829 = vunpack.c.l.b16 %v2694
        %v2830 = vunpack.c.l.b16 %v2695
        %v2831 = vunpack.c.l.b16 %v2696
        %v2832 = vunpack.c.l.b16 %v2697
        %v2833 = vunpack.c.l.b16 %v2698
        %v2834 = vunpack.c.l.b16 %v2699
        %v2835 = vunpack.c.l.b16 %v2700
        %v2836 = vunpack.c.l.b16 %v2701
        %v2837 = vunpack.c.l.b16 %v2702
        %v2838 = vunpack.c.l.b16 %v2703
        %v2839 = vunpack.c.l.b16 %v2704
        %v2840 = vunpack.c.l.b16 %v2705
        %v2841 = vunpack.c.l.b16 %v2706
        %v2842 = vunpack.c.l.b16 %v2707
        %v2843 = vunpack.c.l.b16 %v2708
        %v2844 = vunpack.c.l.b16 %v2709
        %v2845 = vunpack.c.l.b16 %v2710
        %v2846 = vunpack.c.l.b16 %v2711
        %v2847 = vunpack.c.l.b16 %v2712
        %v2848 = vunpack.c.l.b16 %v2713
        %v2849 = vunpack.c.l.b16 %v2714
        %v2850 = vunpack.c.l.b16 %v2715
        %v2851 = vunpack.c.l.b16 %v2716
        %v2852 = vunpack.c.l.b16 %v2717
        %v2853 = vunpack.c.l.b16 %v2718
        %v2854 = vunpack.c.l.b16 %v2719
        %v2855 = vunpack.c.l.b16 %v2720
        %v2856 = vunpack.c.l.b16 %v2721
        %v2857 = vunpack.c.l.b16 %v2722
        %v2858 = vunpack.c.l.b16 %v2723
        %v2859 = vpack.c.b16 %v2796, %v2795
        %v2860 = vpack.c.b16 %v2798, %v2797
        %v2861 = vpack.c.b16 %v2800, %v2799
        %v2862 = vpack.c.b16 %v2802, %v2801
        %v2863 = vpack.c.b16 %v2804, %v2803
        %v2864 = vpack.c.b16 %v2806, %v2805
        %v2865 = vpack.c.b16 %v2808, %v2807
        %v2866 = vpack.c.b16 %v2810, %v2809
        %v2867 = vpack.c.b16 %v2812, %v2811
        %v2868 = vpack.c.b16 %v2814, %v2813
        %v2869 = vpack.c.b16 %v2816, %v2815
        %v2870 = vpack.c.b16 %v2818, %v2817
        %v2871 = vpack.c.b16 %v2820, %v2819
        %v2872 = vpack.c.b16 %v2822, %v2821
        %v2873 = vpack.c.b16 %v2824, %v2823
        %v2874 = vpack.c.b16 %v2826, %v2825
        %v2875 = vpack.c.b16 %v2828, %v2827
        %v2876 = vpack.c.b16 %v2830, %v2829
        %v2877 = vpack.c.b16 %v2832, %v2831
        %v2878 = vpack.c.b16 %v2834, %v2833
        %v2879 = vpack.c.b16 %v2836, %v2835
        %v2880 = vpack.c.b16 %v2838, %v2837
        %v2881 = vpack.c.b16 %v2840, %v2839
        %v2882 = vpack.c.b16 %v2842, %v2841
        %v2883 = vpack.c.b16 %v2844, %v2843
        %v2884 = vpack.c.b16 %v2846, %v2845
        %v2885 = vpack.c.b16 %v2848, %v2847
        %v2886 = vpack.c.b16 %v2850, %v2849
        %v2887 = vpack.c.b16 %v2852, %v2851
        %v2888 = vpack.c.b16 %v2854, %v2853
        %v2889 = vpack.c.b16 %v2856, %v2855
        %v2890 = vpack.c.b16 %v2858, %v2857
        %2923 = vmatprep.subr.bf16.mxu0 0
        %2924 = vmatpush1.bf16.msra.mxu0 %v2859
        %2925 = vmatprep.subr.bf16.mxu0 0
        %2926 = vmatpush1.bf16.msra.mxu0 %v2860
        %2927 = vmatprep.subr.bf16.mxu0 0
        %2928 = vmatpush1.bf16.msra.mxu0 %v2861
        %2929 = vmatprep.subr.bf16.mxu0 0
        %2930 = vmatpush1.bf16.msra.mxu0 %v2862
        %2931 = vmatprep.subr.bf16.mxu0 0
        %2932 = vmatpush1.bf16.msra.mxu0 %v2863
        %2933 = vmatprep.subr.bf16.mxu0 0
        %2934 = vmatpush1.bf16.msra.mxu0 %v2864
        %2935 = vmatprep.subr.bf16.mxu0 0
        %2936 = vmatpush1.bf16.msra.mxu0 %v2865
        %2937 = vmatprep.subr.bf16.mxu0 0
        %2938 = vmatpush1.bf16.msra.mxu0 %v2866
        %2939 = vmatprep.subr.bf16.mxu0 0
        %2940 = vmatpush1.bf16.msra.mxu0 %v2867
        %2941 = vmatprep.subr.bf16.mxu0 0
        %2942 = vmatpush1.bf16.msra.mxu0 %v2868
        %2943 = vmatprep.subr.bf16.mxu0 0
        %2944 = vmatpush1.bf16.msra.mxu0 %v2869
        %2945 = vmatprep.subr.bf16.mxu0 0
        %2946 = vmatpush1.bf16.msra.mxu0 %v2870
        %2947 = vmatprep.subr.bf16.mxu0 0
        %2948 = vmatpush1.bf16.msra.mxu0 %v2871
        %2949 = vmatprep.subr.bf16.mxu0 0
        %2950 = vmatpush1.bf16.msra.mxu0 %v2872
        %2951 = vmatprep.subr.bf16.mxu0 0
        %2952 = vmatpush1.bf16.msra.mxu0 %v2873
        %2953 = vmatprep.subr.bf16.mxu0 0
        %2954 = vmatpush1.bf16.msra.mxu0 %v2874
        %2955 = vmatprep.mubr.bf16.mxu0 %v2645
        %2956 = vmatmul.mubr.bf16.gmra.mrb[0].mxu0 %v2644
        %v2957 = vpop.f32.mrb[0].mxu0
        %v2958 = vadd.f32 %v2729, %v2957
        %v2959 = vpop.f32.mrb[0].mxu0
        %v2960 = vpop.f32.mrb[0].mxu0
        %v2961 = vadd.f32 %v2729, %v2960
        %v2962 = vpop.f32.mrb[0].mxu0
        %2963 = vmatprep.mubr.bf16.mxu0 %v2649
        %2964 = vmatmul.mubr.bf16.gmra.mrb[0].mxu0 %v2648
        %v2965 = vpop.f32.mrb[0].mxu0
        %v2966 = vadd.f32 %v2729, %v2965
        %v2967 = vpop.f32.mrb[0].mxu0
        %v2968 = vpop.f32.mrb[0].mxu0
        %v2969 = vadd.f32 %v2729, %v2968
        %v2970 = vpop.f32.mrb[0].mxu0
        %2971 = vmatprep.mubr.bf16.mxu0 %v2653
        %2972 = vmatmul.mubr.bf16.gmra.mrb[0].mxu0 %v2652
        %v2973 = vpop.f32.mrb[0].mxu0
        %v2974 = vadd.f32 %v2729, %v2973
        %v2975 = vpop.f32.mrb[0].mxu0
        %v2976 = vpop.f32.mrb[0].mxu0
        %v2977 = vadd.f32 %v2729, %v2976
        %v2978 = vpop.f32.mrb[0].mxu0
        %2979 = vmatprep.mubr.bf16.mxu0 %v2657
        %2980 = vmatmul.mubr.bf16.gmra.mrb[0].mxu0 %v2656
        %v2981 = vpop.f32.mrb[0].mxu0
        %v2982 = vadd.f32 %v2729, %v2981
        %v2983 = vpop.f32.mrb[0].mxu0
        %v2984 = vpop.f32.mrb[0].mxu0
        %v2985 = vadd.f32 %v2729, %v2984
        %v2986 = vpop.f32.mrb[0].mxu0
        %2987 = vdwg.mxu0
        %2988 = vmatprep.subr.bf16.mxu0 0
        %2989 = vmatpush1.bf16.msra.mxu0 %v2875
        %2990 = vmatprep.subr.bf16.mxu0 0
        %2991 = vmatpush1.bf16.msra.mxu0 %v2876
        %2992 = vmatprep.subr.bf16.mxu0 0
        %2993 = vmatpush1.bf16.msra.mxu0 %v2877
        %2994 = vmatprep.subr.bf16.mxu0 0
        %2995 = vmatpush1.bf16.msra.mxu0 %v2878
        %2996 = vmatprep.subr.bf16.mxu0 0
        %2997 = vmatpush1.bf16.msra.mxu0 %v2879
        %2998 = vmatprep.subr.bf16.mxu0 0
        %2999 = vmatpush1.bf16.msra.mxu0 %v2880
        %3000 = vmatprep.subr.bf16.mxu0 0
        %3001 = vmatpush1.bf16.msra.mxu0 %v2881
        %3002 = vmatprep.subr.bf16.mxu0 0
        %3003 = vmatpush1.bf16.msra.mxu0 %v2882
        %3004 = vmatprep.subr.bf16.mxu0 0
        %3005 = vmatpush1.bf16.msra.mxu0 %v2883
        %3006 = vmatprep.subr.bf16.mxu0 0
        %3007 = vmatpush1.bf16.msra.mxu0 %v2884
        %3008 = vmatprep.subr.bf16.mxu0 0
        %3009 = vmatpush1.bf16.msra.mxu0 %v2885
        %3010 = vmatprep.subr.bf16.mxu0 0
        %3011 = vmatpush1.bf16.msra.mxu0 %v2886
        %3012 = vmatprep.subr.bf16.mxu0 0
        %3013 = vmatpush1.bf16.msra.mxu0 %v2887
        %3014 = vmatprep.subr.bf16.mxu0 0
        %3015 = vmatpush1.bf16.msra.mxu0 %v2888
        %3016 = vmatprep.subr.bf16.mxu0 0
        %3017 = vmatpush1.bf16.msra.mxu0 %v2889
        %3018 = vmatprep.subr.bf16.mxu0 0
        %3019 = vmatpush1.bf16.msra.mxu0 %v2890
        %3020 = vmatprep.mubr.bf16.mxu0 %v2647
        %3021 = vmatmul.mubr.bf16.gmra.mrb[0].mxu0 %v2646
        %v3022 = vpop.f32.mrb[0].mxu0
        %v3023 = vadd.f32 %v2958, %v3022
        %v3024 = vpop.f32.mrb[0].mxu0
        %v3025 = vpop.f32.mrb[0].mxu0
        %v3026 = vadd.f32 %v2961, %v3025
        %v3027 = vpop.f32.mrb[0].mxu0
        %3028 = vmatprep.mubr.bf16.mxu0 %v2651
        %3029 = vmatmul.mubr.bf16.gmra.mrb[0].mxu0 %v2650
        %v3030 = vpop.f32.mrb[0].mxu0
        %v3031 = vadd.f32 %v2966, %v3030
        %v3032 = vpop.f32.mrb[0].mxu0
        %v3033 = vpop.f32.mrb[0].mxu0
        %v3034 = vadd.f32 %v2969, %v3033
        %v3035 = vpop.f32.mrb[0].mxu0
        %3036 = vmatprep.mubr.bf16.mxu0 %v2655
        %3037 = vmatmul.mubr.bf16.gmra.mrb[0].mxu0 %v2654
        %v3038 = vpop.f32.mrb[0].mxu0
        %v3039 = vadd.f32 %v2974, %v3038
        %v3040 = vpop.f32.mrb[0].mxu0
        %v3041 = vpop.f32.mrb[0].mxu0
        %v3042 = vadd.f32 %v2977, %v3041
        %v3043 = vpop.f32.mrb[0].mxu0
        %3044 = vmatprep.mubr.bf16.mxu0 %v2659
        %3045 = vmatmul.mubr.bf16.gmra.mrb[0].mxu0 %v2658
        %v3046 = vpop.f32.mrb[0].mxu0
        %v3047 = vadd.f32 %v2982, %v3046
        %v3048 = vpop.f32.mrb[0].mxu0
        %v3049 = vpop.f32.mrb[0].mxu0
        %v3050 = vadd.f32 %v2985, %v3049
        %v3051 = vpop.f32.mrb[0].mxu0
        %3052 = vdwg.mxu0
        %v3053 = vadd.f32 %v3023, %v2122
        %v3054 = vadd.f32 %v3026, %v2123
        %v3055 = vadd.f32 %v3031, %v2124
        %v3056 = vadd.f32 %v3034, %v2125
        %v3057 = vadd.f32 %v3039, %v2126
        %v3058 = vadd.f32 %v3042, %v2127
        %v3059 = vadd.f32 %v3047, %v2128
        %v3060 = vadd.f32 %v3050, %v2129
        %3061 = vst [vmem:[%s489] sm:$0xff] %v3053
        %3062 = vst [vmem:[%s489 + $0x8] sm:$0xff] %v3054
        %3063 = vst [vmem:[%s489 + $0x10] sm:$0xff] %v3055
        %3064 = vst [vmem:[%s489 + $0x18] sm:$0xff] %v3056
        %3065 = vst [vmem:[%s489 + $0x20] sm:$0xff] %v3057
        %3066 = vst [vmem:[%s489 + $0x28] sm:$0xff] %v3058
        %3067 = vst [vmem:[%s489 + $0x30] sm:$0xff] %v3059
        %3068 = vst [vmem:[%s489 + $0x38] sm:$0xff] %v3060
        %s3069 = sand.u32 %s296, 1
        %s3070 = scalar_lea.sflag [#allocation5], %s3069
        %s3071 = sand.u32 %s296, 1
        %s3072 = smul.addr %s3071, 64
        %s3073 = scalar_lea.vmem [#allocation12], %s3072
        // Predicated region
        $region89: #{tpu_custom_call.1} parent=67 // pred_check
          %p3074 = pneg %p306
        $region90: #{tpu_custom_call.1} parent=67 // pred_check_branch
          %3076 = sbr.rel (%p3074) target = $region92
        $region91: #{tpu_custom_call.1} parent=67 // pred_region
          %s3078 = ssub.s32 1024, 1024
          %3079 = vsyncadd %s3070, %s3078
          %s3080 = smul.addr %s31, 8
          %s3081 = smul.addr %s3080, 128
          %s3082 = scalar_lea.hbm %s12, %s3081
          %s3083 = sshll.u32 %s3073, 4
          %s3084 = int_to_ptr.vmem [resolvable:$true] %s3083
          %3089 = dma.vmem_to_hbm [thread:$0]  %s3084, 1024, %s3082, %s3070, 128, 128, 8
        $region92: #{tpu_custom_call.1} parent=67 // pred_fallthru
          _
      $region68: #{tpu_custom_call.1} parent=5 // pred_fallthru
        _
      %p3090 = scmp.le.s32.totalorder 2, %s26
      // Predicated region
      $region93: #{tpu_custom_call.1} parent=5 // pred_check
        %p3091 = pneg %p3090
      $region94: #{tpu_custom_call.1} parent=5 // pred_check_branch
        %3093 = sbr.rel (%p3091) target = $region96
      $region95: #{tpu_custom_call.1} parent=5 // pred_region
        %s3094 = ssub.s32 %s26, 2
        // Predicated region
        $region97: #{tpu_custom_call.1} parent=95 // pred_check
          %p3095 = pneg %p312
        $region98: #{tpu_custom_call.1} parent=95 // pred_check_branch
          %3097 = sbr.rel (%p3095) target = $region100
        $region99: #{tpu_custom_call.1} parent=95 // pred_region
          %s3098 = sand.u32 %s297, 1
          %s3099 = scalar_lea.sflag [#allocation5], %s3098
          %s3100 = sand.u32 %s297, 1
          %s3101 = smul.addr %s3100, 64
          %s3102 = scalar_lea.vmem [#allocation12], %s3101
          %3103 = dma.done %s3099, 1024
        $region100: #{tpu_custom_call.1} parent=95 // pred_fallthru
          _
      $region96: #{tpu_custom_call.1} parent=5 // pred_fallthru
        _
    $region6: #{tpu_custom_call.1} parent=1 // loop_footer
      %s30 = sadd.s32 1, %s26
    $region7: #{tpu_custom_call.1} parent=1 // loop_footer_branch
      %25 = sbr.rel target = $region3
    $region8: #{tpu_custom_call.1} parent=1 // loop_exit
      _
    %3104 = vsyncpa [#allocation4], 1
    %s3105 = scalar_lea.sflag [#allocation4], 1
    %3106 = vsyncpa %s3105, 1
    %3107 = vsyncpa [#allocation7], 1
    %3108 = vsyncpa [#allocation10], 1
    %3109 = vsyncpa [#allocation5], 1
    %s3110 = scalar_lea.sflag [#allocation5], 1
    %3111 = vsyncpa %s3110, 1

</llo_original>
